<compile_context>
chip_gen: v5e
topology: v5e:2x2
jax: 0.10.0
libtpu: 0.0.40
codegen_flags: <defaults>
</compile_context>

<pallas_src>
import jax
import jax.numpy as jnp
from jax import lax
from jax.experimental import pallas as pl
from jax.experimental.pallas import tpu as pltpu


def basic_block_kernel(xpad_ref, w1_ref, w2_ref, s1_ref, b1_ref, s2_ref,
                       b2_ref, out_ref, y1pad_ref):
  """One batch element of the BasicBlock forward pass (NHWC, channels padded).

  xpad_ref : (1, H+2, W+2, Cp)  bf16 zero-padded input tile
  w1_ref   : (3, 3*Cp, Cp)      bf16 conv1 weights, dx taps fused along K
  w2_ref   : (3, 3*Cp, Cp)      bf16 conv2 weights, dx taps fused along K
  s*_ref   : (1, Cp)            f32 folded BN scale
  b*_ref   : (1, Cp)            f32 folded BN bias
  out_ref  : (1, H, W, Cp)      f32 output tile
  y1pad_ref: (H+2, W+2, Cp)     f32 scratch for the padded intermediate
  """
  _, H, W, Cp = out_ref.shape
  K = 3 * Cp

  def conv_rows(rows_bf16, w_ref, dy, acc):
    # rows_bf16: (H, W+2, Cp) bf16.  Fuse the three dx taps into one K=3*Cp
    # lane-dense matmul on the MXU; accumulate in f32.
    slab = jnp.concatenate(
        [rows_bf16[:, 0:W, :],
         rows_bf16[:, 1:W + 1, :],
         rows_bf16[:, 2:W + 2, :]], axis=-1)               # (H, W, 3*Cp)
    return acc + jnp.dot(slab.reshape(H * W, K), w_ref[dy],
                         preferred_element_type=jnp.float32)

  # ---- conv1: 3 fused matmuls (one per dy) -------------------------------
  acc1 = jnp.zeros((H * W, Cp), jnp.float32)
  identity = None
  for dy in range(3):
    rows = xpad_ref[0, dy:dy + H, :, :]                    # (H, W+2, Cp) bf16
    if dy == 1:
      identity = rows[:, 1:W + 1, :]                       # == original x
    acc1 = conv_rows(rows, w1_ref, dy, acc1)

  # ---- bn1 + relu ---------------------------------------------------------
  y1 = jnp.maximum(acc1 * s1_ref[...] + b1_ref[...], 0.0)  # (H*W, Cp) f32

  # ---- write intermediate: zero only the 1-wide halo, then the interior ---
  zrow = jnp.zeros((1, W + 2, Cp), jnp.float32)
  zcol = jnp.zeros((H + 2, 1, Cp), jnp.float32)
  y1pad_ref[0:1, :, :] = zrow
  y1pad_ref[H + 1:H + 2, :, :] = zrow
  y1pad_ref[:, 0:1, :] = zcol
  y1pad_ref[:, W + 1:W + 2, :] = zcol
  y1pad_ref[1:H + 1, 1:W + 1, :] = y1.reshape(H, W, Cp)

  # ---- conv2: 3 fused matmuls --------------------------------------------
  acc2 = jnp.zeros((H * W, Cp), jnp.float32)
  for dy in range(3):
    rows2 = y1pad_ref[dy:dy + H, :, :].astype(jnp.bfloat16)
    acc2 = conv_rows(rows2, w2_ref, dy, acc2)

  # ---- bn2 + residual add + relu ------------------------------------------
  y2 = acc2 * s2_ref[...] + b2_ref[...]
  res = identity.reshape(H * W, Cp).astype(jnp.float32)
  out = jnp.maximum(y2 + res, 0.0)
  out_ref[...] = out.reshape(1, H, W, Cp).astype(out_ref.dtype)


def basic_block_forward(x_nchw, w1, w2, bn1, bn2, eps=1e-5):
  """x_nchw: (N, C, H, W) float32.  Returns (N, C, H, W) float32."""
  N, C, H, W = x_nchw.shape
  Cout = w1.shape[0]
  assert Cout == C, "stride=1 / no downsample requires inplanes == planes"

  # Lane-dense channel count (multiple of 128).
  Cp = ((C + 127) // 128) * 128

  # NCHW -> NHWC, zero-pad spatial by 1 (conv padding=1) and channels to Cp.
  x_nhwc = jnp.transpose(x_nchw, (0, 2, 3, 1))
  xpad = jnp.pad(x_nhwc, ((0, 0), (1, 1), (1, 1), (0, Cp - C)))
  xpad = xpad.astype(jnp.bfloat16)

  def prep_weights(w):
    # (O, I, 3, 3) -> (3, 3, I, O) -> pad channels -> fuse dx along K.
    wt = jnp.transpose(w, (2, 3, 1, 0))
    wt = jnp.pad(wt, ((0, 0), (0, 0), (0, Cp - C), (0, Cp - C)))
    return wt.reshape(3, 3 * Cp, Cp).astype(jnp.bfloat16)

  w1f = prep_weights(w1)
  w2f = prep_weights(w2)

  # Fold BN (inference mode) into per-channel scale/bias, pad to Cp.
  def fold(bn):
    gamma, beta, mean, var = bn
    s = gamma / jnp.sqrt(var + eps)
    b = beta - mean * s
    s = jnp.pad(s, (0, Cp - C), constant_values=1.0)
    b = jnp.pad(b, (0, Cp - C))
    return (s.reshape(1, Cp).astype(jnp.float32),
            b.reshape(1, Cp).astype(jnp.float32))

  s1, b1 = fold(bn1)
  s2, b2 = fold(bn2)

  Hp, Wp = H + 2, W + 2
  out_nhwc = pl.pallas_call(
      basic_block_kernel,
      out_shape=jax.ShapeDtypeStruct((N, H, W, Cp), jnp.float32),
      grid_spec=pltpu.PrefetchScalarGridSpec(
          num_scalar_prefetch=0,
          grid=(N,),
          in_specs=[
              pl.BlockSpec((1, Hp, Wp, Cp), lambda n: (n, 0, 0, 0)),
              pl.BlockSpec((3, 3 * Cp, Cp), lambda n: (0, 0, 0)),
              pl.BlockSpec((3, 3 * Cp, Cp), lambda n: (0, 0, 0)),
              pl.BlockSpec((1, Cp), lambda n: (0, 0)),
              pl.BlockSpec((1, Cp), lambda n: (0, 0)),
              pl.BlockSpec((1, Cp), lambda n: (0, 0)),
              pl.BlockSpec((1, Cp), lambda n: (0, 0)),
          ],
          out_specs=pl.BlockSpec((1, H, W, Cp), lambda n: (n, 0, 0, 0)),
          scratch_shapes=[pltpu.VMEM((Hp, Wp, Cp), jnp.float32)],
      ),
      compiler_params=pltpu.CompilerParams(
          dimension_semantics=("parallel",),
          vmem_limit_bytes=32 * 1024 * 1024),
  )(xpad, w1f, w2f, s1, b1, s2, b2)

  # Drop channel padding, NHWC -> NCHW.
  return jnp.transpose(out_nhwc[..., :C], (0, 3, 1, 2))


def basic_block_reference(x_nchw, w1, w2, bn1, bn2, eps=1e-5):
  """Pure-JAX f32 reference (NCHW convs via lax.conv_general_dilated)."""
  def conv(x, w):
    return lax.conv_general_dilated(
        x, w, window_strides=(1, 1), padding=((1, 1), (1, 1)),
        dimension_numbers=("NCHW", "OIHW", "NCHW"))

  def bn(x, p):
    gamma, beta, mean, var = (v.reshape(1, -1, 1, 1) for v in p)
    return (x - mean) / jnp.sqrt(var + eps) * gamma + beta

  out = jax.nn.relu(bn(conv(x_nchw, w1), bn1))
  out = bn(conv(out, w2), bn2)
  return jax.nn.relu(out + x_nchw)


if __name__ == "__main__":
  N, C, H, W = 2, 8, 16, 16  # inplanes == planes == 8, stride=1, no downsample
  key = jax.random.PRNGKey(0)
  kx, kw1, kw2, kg1, kb1, km1, kv1, kg2, kb2, km2, kv2 = jax.random.split(key, 11)

  x = jax.random.normal(kx, (N, C, H, W), jnp.float32)

  # conv3x3 weights (out, in, 3, 3), no bias.
  w1 = jax.random.normal(kw1, (C, C, 3, 3), jnp.float32) * 0.1
  w2 = jax.random.normal(kw2, (C, C, 3, 3), jnp.float32) * 0.1

  # BatchNorm params: (gamma, beta, running_mean, running_var)
  bn1 = (1.0 + 0.1 * jax.random.normal(kg1, (C,), jnp.float32),
         0.1 * jax.random.normal(kb1, (C,), jnp.float32),
         0.1 * jax.random.normal(km1, (C,), jnp.float32),
         1.0 + 0.1 * jax.random.uniform(kv1, (C,), jnp.float32))
  bn2 = (1.0 + 0.1 * jax.random.normal(kg2, (C,), jnp.float32),
         0.1 * jax.random.normal(kb2, (C,), jnp.float32),
         0.1 * jax.random.normal(km2, (C,), jnp.float32),
         1.0 + 0.1 * jax.random.uniform(kv2, (C,), jnp.float32))

  out = basic_block_forward(x, w1, w2, bn1, bn2)
  out = jax.block_until_ready(out)

  ref = basic_block_reference(x, w1, w2, bn1, bn2)
  assert out.shape == (N, C, H, W)
  # bf16 matmul operands (f32 accumulation) -> tolerance loosened vs pure f32.
  max_err = jnp.max(jnp.abs(out - ref))
  assert jnp.allclose(out, ref, atol=5e-2, rtol=5e-2), f"max err {max_err}"

  print("KERNEL_OK")
</pallas_src>

<mosaic_0001>
module attributes {stable_mosaic.version = 11 : i64} {
  func.func @basic_block_kernel(%arg0: i32, %arg1: memref<1x18x18x128xbf16, #tpu.memory_space<vmem>>, %arg2: memref<3x384x128xbf16, #tpu.memory_space<vmem>>, %arg3: memref<3x384x128xbf16, #tpu.memory_space<vmem>>, %arg4: memref<1x128xf32, #tpu.memory_space<vmem>>, %arg5: memref<1x128xf32, #tpu.memory_space<vmem>>, %arg6: memref<1x128xf32, #tpu.memory_space<vmem>>, %arg7: memref<1x128xf32, #tpu.memory_space<vmem>>, %arg8: memref<1x16x16x128xf32, #tpu.memory_space<vmem>>, %arg9: memref<18x18x128xf32, #tpu.memory_space<vmem>>) attributes {dimension_semantics = [#tpu.dimension_semantics<parallel>], iteration_bounds = array<i64: 2>, scalar_prefetch = 0 : i64, scratch_operands = 1 : i64, tpu.core_type = #tpu.core_type<tc>, window_params = [{transform_indices = @transform_0, window_bounds = array<i64: 1, 18, 18, 128>}, {pipeline_mode = #tpu.pipeline_mode<synchronous>, transform_indices = @transform_1, window_bounds = array<i64: 3, 384, 128>}, {pipeline_mode = #tpu.pipeline_mode<synchronous>, transform_indices = @transform_2, window_bounds = array<i64: 3, 384, 128>}, {pipeline_mode = #tpu.pipeline_mode<synchronous>, transform_indices = @transform_3, window_bounds = array<i64: 1, 128>}, {pipeline_mode = #tpu.pipeline_mode<synchronous>, transform_indices = @transform_4, window_bounds = array<i64: 1, 128>}, {pipeline_mode = #tpu.pipeline_mode<synchronous>, transform_indices = @transform_5, window_bounds = array<i64: 1, 128>}, {pipeline_mode = #tpu.pipeline_mode<synchronous>, transform_indices = @transform_6, window_bounds = array<i64: 1, 128>}, {transform_indices = @transform_7, window_bounds = array<i64: 1, 16, 16, 128>}]} {
    %cst = arith.constant 0.000000e+00 : f32
    %0 = vector.broadcast %cst : f32 to vector<256x128xf32>
    %c0 = arith.constant 0 : index
    %c0_0 = arith.constant 0 : index
    %c0_1 = arith.constant 0 : index
    %c0_2 = arith.constant 0 : index
    %1 = vector.load %arg1[%c0, %c0_0, %c0_1, %c0_2] : memref<1x18x18x128xbf16, #tpu.memory_space<vmem>>, vector<1x16x18x128xbf16>
    %2 = vector.shape_cast %1 : vector<1x16x18x128xbf16> to vector<16x18x128xbf16>
    %3 = vector.extract_strided_slice %2 {offsets = [0, 0, 0], sizes = [16, 16, 128], strides = [1, 1, 1]} : vector<16x18x128xbf16> to vector<16x16x128xbf16>
    %4 = vector.extract_strided_slice %2 {offsets = [0, 1, 0], sizes = [16, 16, 128], strides = [1, 1, 1]} : vector<16x18x128xbf16> to vector<16x16x128xbf16>
    %5 = vector.extract_strided_slice %2 {offsets = [0, 2, 0], sizes = [16, 16, 128], strides = [1, 1, 1]} : vector<16x18x128xbf16> to vector<16x16x128xbf16>
    %6 = tpu.concatenate %3, %4, %5 in 2 : vector<16x16x128xbf16>, vector<16x16x128xbf16>, vector<16x16x128xbf16> -> vector<16x16x384xbf16>
    %7 = vector.shape_cast %6 : vector<16x16x384xbf16> to vector<256x384xbf16>
    %c0_3 = arith.constant 0 : index
    %c0_4 = arith.constant 0 : index
    %c0_5 = arith.constant 0 : index
    %8 = vector.load %arg2[%c0_3, %c0_4, %c0_5] : memref<3x384x128xbf16, #tpu.memory_space<vmem>>, vector<1x384x128xbf16>
    %9 = vector.shape_cast %8 : vector<1x384x128xbf16> to vector<384x128xbf16>
    %cst_6 = arith.constant dense<0.000000e+00> : vector<256x128xf32>
    %10 = tpu.matmul %7, %9, %cst_6 {dimension_numbers = #tpu.dot_dimension_numbers<[1], [0], [0], [1], [0, 0, 1, 1], [], []>} : vector<256x384xbf16>, vector<384x128xbf16>, vector<256x128xf32> -> vector<256x128xf32>
    %11 = arith.addf %0, %10 : vector<256x128xf32>
    %c0_7 = arith.constant 0 : index
    %c1 = arith.constant 1 : index
    %c0_8 = arith.constant 0 : index
    %c0_9 = arith.constant 0 : index
    %12 = vector.load %arg1[%c0_7, %c1, %c0_8, %c0_9] : memref<1x18x18x128xbf16, #tpu.memory_space<vmem>>, vector<1x16x18x128xbf16>
    %13 = vector.shape_cast %12 : vector<1x16x18x128xbf16> to vector<16x18x128xbf16>
    %14 = vector.extract_strided_slice %13 {offsets = [0, 1, 0], sizes = [16, 16, 128], strides = [1, 1, 1]} : vector<16x18x128xbf16> to vector<16x16x128xbf16>
    %15 = vector.extract_strided_slice %13 {offsets = [0, 0, 0], sizes = [16, 16, 128], strides = [1, 1, 1]} : vector<16x18x128xbf16> to vector<16x16x128xbf16>
    %16 = vector.extract_strided_slice %13 {offsets = [0, 1, 0], sizes = [16, 16, 128], strides = [1, 1, 1]} : vector<16x18x128xbf16> to vector<16x16x128xbf16>
    %17 = vector.extract_strided_slice %13 {offsets = [0, 2, 0], sizes = [16, 16, 128], strides = [1, 1, 1]} : vector<16x18x128xbf16> to vector<16x16x128xbf16>
    %18 = tpu.concatenate %15, %16, %17 in 2 : vector<16x16x128xbf16>, vector<16x16x128xbf16>, vector<16x16x128xbf16> -> vector<16x16x384xbf16>
    %19 = vector.shape_cast %18 : vector<16x16x384xbf16> to vector<256x384xbf16>
    %c1_10 = arith.constant 1 : index
    %c0_11 = arith.constant 0 : index
    %c0_12 = arith.constant 0 : index
    %20 = vector.load %arg2[%c1_10, %c0_11, %c0_12] : memref<3x384x128xbf16, #tpu.memory_space<vmem>>, vector<1x384x128xbf16>
    %21 = vector.shape_cast %20 : vector<1x384x128xbf16> to vector<384x128xbf16>
    %cst_13 = arith.constant dense<0.000000e+00> : vector<256x128xf32>
    %22 = tpu.matmul %19, %21, %cst_13 {dimension_numbers = #tpu.dot_dimension_numbers<[1], [0], [0], [1], [0, 0, 1, 1], [], []>} : vector<256x384xbf16>, vector<384x128xbf16>, vector<256x128xf32> -> vector<256x128xf32>
    %23 = arith.addf %11, %22 : vector<256x128xf32>
    %c0_14 = arith.constant 0 : index
    %c2 = arith.constant 2 : index
    %c0_15 = arith.constant 0 : index
    %c0_16 = arith.constant 0 : index
    %24 = vector.load %arg1[%c0_14, %c2, %c0_15, %c0_16] : memref<1x18x18x128xbf16, #tpu.memory_space<vmem>>, vector<1x16x18x128xbf16>
    %25 = vector.shape_cast %24 : vector<1x16x18x128xbf16> to vector<16x18x128xbf16>
    %26 = vector.extract_strided_slice %25 {offsets = [0, 0, 0], sizes = [16, 16, 128], strides = [1, 1, 1]} : vector<16x18x128xbf16> to vector<16x16x128xbf16>
    %27 = vector.extract_strided_slice %25 {offsets = [0, 1, 0], sizes = [16, 16, 128], strides = [1, 1, 1]} : vector<16x18x128xbf16> to vector<16x16x128xbf16>
    %28 = vector.extract_strided_slice %25 {offsets = [0, 2, 0], sizes = [16, 16, 128], strides = [1, 1, 1]} : vector<16x18x128xbf16> to vector<16x16x128xbf16>
    %29 = tpu.concatenate %26, %27, %28 in 2 : vector<16x16x128xbf16>, vector<16x16x128xbf16>, vector<16x16x128xbf16> -> vector<16x16x384xbf16>
    %30 = vector.shape_cast %29 : vector<16x16x384xbf16> to vector<256x384xbf16>
    %c2_17 = arith.constant 2 : index
    %c0_18 = arith.constant 0 : index
    %c0_19 = arith.constant 0 : index
    %31 = vector.load %arg2[%c2_17, %c0_18, %c0_19] : memref<3x384x128xbf16, #tpu.memory_space<vmem>>, vector<1x384x128xbf16>
    %32 = vector.shape_cast %31 : vector<1x384x128xbf16> to vector<384x128xbf16>
    %cst_20 = arith.constant dense<0.000000e+00> : vector<256x128xf32>
    %33 = tpu.matmul %30, %32, %cst_20 {dimension_numbers = #tpu.dot_dimension_numbers<[1], [0], [0], [1], [0, 0, 1, 1], [], []>} : vector<256x384xbf16>, vector<384x128xbf16>, vector<256x128xf32> -> vector<256x128xf32>
    %34 = arith.addf %23, %33 : vector<256x128xf32>
    %c0_21 = arith.constant 0 : index
    %c0_22 = arith.constant 0 : index
    %35 = vector.load %arg4[%c0_21, %c0_22] : memref<1x128xf32, #tpu.memory_space<vmem>>, vector<1x128xf32>
    %36 = vector.broadcast %35 : vector<1x128xf32> to vector<256x128xf32>
    %37 = arith.mulf %34, %36 : vector<256x128xf32>
    %c0_23 = arith.constant 0 : index
    %c0_24 = arith.constant 0 : index
    %38 = vector.load %arg5[%c0_23, %c0_24] : memref<1x128xf32, #tpu.memory_space<vmem>>, vector<1x128xf32>
    %39 = vector.broadcast %38 : vector<1x128xf32> to vector<256x128xf32>
    %40 = arith.addf %37, %39 : vector<256x128xf32>
    %cst_25 = arith.constant 0.000000e+00 : f32
    %41 = vector.broadcast %cst_25 : f32 to vector<256x128xf32>
    %42 = arith.maximumf %40, %41 : vector<256x128xf32>
    %cst_26 = arith.constant 0.000000e+00 : f32
    %43 = vector.broadcast %cst_26 : f32 to vector<1x18x128xf32>
    %cst_27 = arith.constant 0.000000e+00 : f32
    %44 = vector.broadcast %cst_27 : f32 to vector<18x1x128xf32>
    %c0_28 = arith.constant 0 : index
    %c0_29 = arith.constant 0 : index
    %c0_30 = arith.constant 0 : index
    %45 = vector.load %arg9[%c0_28, %c0_29, %c0_30] : memref<18x18x128xf32, #tpu.memory_space<vmem>>, vector<1x18x128xf32>
    tpu.vector_store %arg9[%c0_28, %c0_29, %c0_30], %43 {strides = array<i32>} : memref<18x18x128xf32, #tpu.memory_space<vmem>>, vector<1x18x128xf32>,
    %c17 = arith.constant 17 : index
    %c0_31 = arith.constant 0 : index
    %c0_32 = arith.constant 0 : index
    %46 = vector.load %arg9[%c17, %c0_31, %c0_32] : memref<18x18x128xf32, #tpu.memory_space<vmem>>, vector<1x18x128xf32>
    tpu.vector_store %arg9[%c17, %c0_31, %c0_32], %43 {strides = array<i32>} : memref<18x18x128xf32, #tpu.memory_space<vmem>>, vector<1x18x128xf32>,
    %c0_33 = arith.constant 0 : index
    %c0_34 = arith.constant 0 : index
    %c0_35 = arith.constant 0 : index
    %47 = vector.load %arg9[%c0_33, %c0_34, %c0_35] : memref<18x18x128xf32, #tpu.memory_space<vmem>>, vector<18x1x128xf32>
    tpu.vector_store %arg9[%c0_33, %c0_34, %c0_35], %44 {strides = array<i32>} : memref<18x18x128xf32, #tpu.memory_space<vmem>>, vector<18x1x128xf32>,
    %c0_36 = arith.constant 0 : index
    %c17_37 = arith.constant 17 : index
    %c0_38 = arith.constant 0 : index
    %48 = vector.load %arg9[%c0_36, %c17_37, %c0_38] : memref<18x18x128xf32, #tpu.memory_space<vmem>>, vector<18x1x128xf32>
    tpu.vector_store %arg9[%c0_36, %c17_37, %c0_38], %44 {strides = array<i32>} : memref<18x18x128xf32, #tpu.memory_space<vmem>>, vector<18x1x128xf32>,
    %49 = vector.shape_cast %42 : vector<256x128xf32> to vector<16x16x128xf32>
    %c1_39 = arith.constant 1 : index
    %c1_40 = arith.constant 1 : index
    %c0_41 = arith.constant 0 : index
    %50 = vector.load %arg9[%c1_39, %c1_40, %c0_41] : memref<18x18x128xf32, #tpu.memory_space<vmem>>, vector<16x16x128xf32>
    tpu.vector_store %arg9[%c1_39, %c1_40, %c0_41], %49 {strides = array<i32>} : memref<18x18x128xf32, #tpu.memory_space<vmem>>, vector<16x16x128xf32>,
    %cst_42 = arith.constant 0.000000e+00 : f32
    %51 = vector.broadcast %cst_42 : f32 to vector<256x128xf32>
    %c0_43 = arith.constant 0 : index
    %c0_44 = arith.constant 0 : index
    %c0_45 = arith.constant 0 : index
    %52 = vector.load %arg9[%c0_43, %c0_44, %c0_45] : memref<18x18x128xf32, #tpu.memory_space<vmem>>, vector<16x18x128xf32>
    %53 = arith.truncf %52 : vector<16x18x128xf32> to vector<16x18x128xbf16>
    %54 = vector.extract_strided_slice %53 {offsets = [0, 0, 0], sizes = [16, 16, 128], strides = [1, 1, 1]} : vector<16x18x128xbf16> to vector<16x16x128xbf16>
    %55 = vector.extract_strided_slice %53 {offsets = [0, 1, 0], sizes = [16, 16, 128], strides = [1, 1, 1]} : vector<16x18x128xbf16> to vector<16x16x128xbf16>
    %56 = vector.extract_strided_slice %53 {offsets = [0, 2, 0], sizes = [16, 16, 128], strides = [1, 1, 1]} : vector<16x18x128xbf16> to vector<16x16x128xbf16>
    %57 = tpu.concatenate %54, %55, %56 in 2 : vector<16x16x128xbf16>, vector<16x16x128xbf16>, vector<16x16x128xbf16> -> vector<16x16x384xbf16>
    %58 = vector.shape_cast %57 : vector<16x16x384xbf16> to vector<256x384xbf16>
    %c0_46 = arith.constant 0 : index
    %c0_47 = arith.constant 0 : index
    %c0_48 = arith.constant 0 : index
    %59 = vector.load %arg3[%c0_46, %c0_47, %c0_48] : memref<3x384x128xbf16, #tpu.memory_space<vmem>>, vector<1x384x128xbf16>
    %60 = vector.shape_cast %59 : vector<1x384x128xbf16> to vector<384x128xbf16>
    %cst_49 = arith.constant dense<0.000000e+00> : vector<256x128xf32>
    %61 = tpu.matmul %58, %60, %cst_49 {dimension_numbers = #tpu.dot_dimension_numbers<[1], [0], [0], [1], [0, 0, 1, 1], [], []>} : vector<256x384xbf16>, vector<384x128xbf16>, vector<256x128xf32> -> vector<256x128xf32>
    %62 = arith.addf %51, %61 : vector<256x128xf32>
    %c1_50 = arith.constant 1 : index
    %c0_51 = arith.constant 0 : index
    %c0_52 = arith.constant 0 : index
    %63 = vector.load %arg9[%c1_50, %c0_51, %c0_52] : memref<18x18x128xf32, #tpu.memory_space<vmem>>, vector<16x18x128xf32>
    %64 = arith.truncf %63 : vector<16x18x128xf32> to vector<16x18x128xbf16>
    %65 = vector.extract_strided_slice %64 {offsets = [0, 0, 0], sizes = [16, 16, 128], strides = [1, 1, 1]} : vector<16x18x128xbf16> to vector<16x16x128xbf16>
    %66 = vector.extract_strided_slice %64 {offsets = [0, 1, 0], sizes = [16, 16, 128], strides = [1, 1, 1]} : vector<16x18x128xbf16> to vector<16x16x128xbf16>
    %67 = vector.extract_strided_slice %64 {offsets = [0, 2, 0], sizes = [16, 16, 128], strides = [1, 1, 1]} : vector<16x18x128xbf16> to vector<16x16x128xbf16>
    %68 = tpu.concatenate %65, %66, %67 in 2 : vector<16x16x128xbf16>, vector<16x16x128xbf16>, vector<16x16x128xbf16> -> vector<16x16x384xbf16>
    %69 = vector.shape_cast %68 : vector<16x16x384xbf16> to vector<256x384xbf16>
    %c1_53 = arith.constant 1 : index
    %c0_54 = arith.constant 0 : index
    %c0_55 = arith.constant 0 : index
    %70 = vector.load %arg3[%c1_53, %c0_54, %c0_55] : memref<3x384x128xbf16, #tpu.memory_space<vmem>>, vector<1x384x128xbf16>
    %71 = vector.shape_cast %70 : vector<1x384x128xbf16> to vector<384x128xbf16>
    %cst_56 = arith.constant dense<0.000000e+00> : vector<256x128xf32>
    %72 = tpu.matmul %69, %71, %cst_56 {dimension_numbers = #tpu.dot_dimension_numbers<[1], [0], [0], [1], [0, 0, 1, 1], [], []>} : vector<256x384xbf16>, vector<384x128xbf16>, vector<256x128xf32> -> vector<256x128xf32>
    %73 = arith.addf %62, %72 : vector<256x128xf32>
    %c2_57 = arith.constant 2 : index
    %c0_58 = arith.constant 0 : index
    %c0_59 = arith.constant 0 : index
    %74 = vector.load %arg9[%c2_57, %c0_58, %c0_59] : memref<18x18x128xf32, #tpu.memory_space<vmem>>, vector<16x18x128xf32>
    %75 = arith.truncf %74 : vector<16x18x128xf32> to vector<16x18x128xbf16>
    %76 = vector.extract_strided_slice %75 {offsets = [0, 0, 0], sizes = [16, 16, 128], strides = [1, 1, 1]} : vector<16x18x128xbf16> to vector<16x16x128xbf16>
    %77 = vector.extract_strided_slice %75 {offsets = [0, 1, 0], sizes = [16, 16, 128], strides = [1, 1, 1]} : vector<16x18x128xbf16> to vector<16x16x128xbf16>
    %78 = vector.extract_strided_slice %75 {offsets = [0, 2, 0], sizes = [16, 16, 128], strides = [1, 1, 1]} : vector<16x18x128xbf16> to vector<16x16x128xbf16>
    %79 = tpu.concatenate %76, %77, %78 in 2 : vector<16x16x128xbf16>, vector<16x16x128xbf16>, vector<16x16x128xbf16> -> vector<16x16x384xbf16>
    %80 = vector.shape_cast %79 : vector<16x16x384xbf16> to vector<256x384xbf16>
    %c2_60 = arith.constant 2 : index
    %c0_61 = arith.constant 0 : index
    %c0_62 = arith.constant 0 : index
    %81 = vector.load %arg3[%c2_60, %c0_61, %c0_62] : memref<3x384x128xbf16, #tpu.memory_space<vmem>>, vector<1x384x128xbf16>
    %82 = vector.shape_cast %81 : vector<1x384x128xbf16> to vector<384x128xbf16>
    %cst_63 = arith.constant dense<0.000000e+00> : vector<256x128xf32>
    %83 = tpu.matmul %80, %82, %cst_63 {dimension_numbers = #tpu.dot_dimension_numbers<[1], [0], [0], [1], [0, 0, 1, 1], [], []>} : vector<256x384xbf16>, vector<384x128xbf16>, vector<256x128xf32> -> vector<256x128xf32>
    %84 = arith.addf %73, %83 : vector<256x128xf32>
    %c0_64 = arith.constant 0 : index
    %c0_65 = arith.constant 0 : index
    %85 = vector.load %arg6[%c0_64, %c0_65] : memref<1x128xf32, #tpu.memory_space<vmem>>, vector<1x128xf32>
    %86 = vector.broadcast %85 : vector<1x128xf32> to vector<256x128xf32>
    %87 = arith.mulf %84, %86 : vector<256x128xf32>
    %c0_66 = arith.constant 0 : index
    %c0_67 = arith.constant 0 : index
    %88 = vector.load %arg7[%c0_66, %c0_67] : memref<1x128xf32, #tpu.memory_space<vmem>>, vector<1x128xf32>
    %89 = vector.broadcast %88 : vector<1x128xf32> to vector<256x128xf32>
    %90 = arith.addf %87, %89 : vector<256x128xf32>
    %91 = vector.shape_cast %14 : vector<16x16x128xbf16> to vector<256x128xbf16>
    %92 = arith.extf %91 : vector<256x128xbf16> to vector<256x128xf32>
    %93 = arith.addf %90, %92 : vector<256x128xf32>
    %cst_68 = arith.constant 0.000000e+00 : f32
    %94 = vector.broadcast %cst_68 : f32 to vector<256x128xf32>
    %95 = arith.maximumf %93, %94 : vector<256x128xf32>
    %96 = vector.shape_cast %95 : vector<256x128xf32> to vector<1x16x16x128xf32>
    %c0_69 = arith.constant 0 : index
    %c0_70 = arith.constant 0 : index
    %c0_71 = arith.constant 0 : index
    %c0_72 = arith.constant 0 : index
    %97 = vector.load %arg8[%c0_69, %c0_70, %c0_71, %c0_72] : memref<1x16x16x128xf32, #tpu.memory_space<vmem>>, vector<1x16x16x128xf32>
    tpu.vector_store %arg8[%c0_69, %c0_70, %c0_71, %c0_72], %96 {strides = array<i32>} : memref<1x16x16x128xf32, #tpu.memory_space<vmem>>, vector<1x16x16x128xf32>,
    return
  }
  func.func @transform_0(%arg0: i32) -> (i32, i32, i32, i32) {
    %c0_i32 = arith.constant 0 : i32
    %c0_i32_0 = arith.constant 0 : i32
    %c0_i32_1 = arith.constant 0 : i32
    %c0_i32_2 = arith.constant 0 : i32
    return %arg0, %c0_i32, %c0_i32_0, %c0_i32_1 : i32, i32, i32, i32
  }
  func.func @transform_1(%arg0: i32) -> (i32, i32, i32) {
    %c0_i32 = arith.constant 0 : i32
    %c0_i32_0 = arith.constant 0 : i32
    %c0_i32_1 = arith.constant 0 : i32
    %c0_i32_2 = arith.constant 0 : i32
    return %c0_i32, %c0_i32_0, %c0_i32_1 : i32, i32, i32
  }
  func.func @transform_2(%arg0: i32) -> (i32, i32, i32) {
    %c0_i32 = arith.constant 0 : i32
    %c0_i32_0 = arith.constant 0 : i32
    %c0_i32_1 = arith.constant 0 : i32
    %c0_i32_2 = arith.constant 0 : i32
    return %c0_i32, %c0_i32_0, %c0_i32_1 : i32, i32, i32
  }
  func.func @transform_3(%arg0: i32) -> (i32, i32) {
    %c0_i32 = arith.constant 0 : i32
    %c0_i32_0 = arith.constant 0 : i32
    %c0_i32_1 = arith.constant 0 : i32
    return %c0_i32, %c0_i32_0 : i32, i32
  }
  func.func @transform_4(%arg0: i32) -> (i32, i32) {
    %c0_i32 = arith.constant 0 : i32
    %c0_i32_0 = arith.constant 0 : i32
    %c0_i32_1 = arith.constant 0 : i32
    return %c0_i32, %c0_i32_0 : i32, i32
  }
  func.func @transform_5(%arg0: i32) -> (i32, i32) {
    %c0_i32 = arith.constant 0 : i32
    %c0_i32_0 = arith.constant 0 : i32
    %c0_i32_1 = arith.constant 0 : i32
    return %c0_i32, %c0_i32_0 : i32, i32
  }
  func.func @transform_6(%arg0: i32) -> (i32, i32) {
    %c0_i32 = arith.constant 0 : i32
    %c0_i32_0 = arith.constant 0 : i32
    %c0_i32_1 = arith.constant 0 : i32
    return %c0_i32, %c0_i32_0 : i32, i32
  }
  func.func @transform_7(%arg0: i32) -> (i32, i32, i32, i32) {
    %c0_i32 = arith.constant 0 : i32
    %c0_i32_0 = arith.constant 0 : i32
    %c0_i32_1 = arith.constant 0 : i32
    %c0_i32_2 = arith.constant 0 : i32
    return %arg0, %c0_i32, %c0_i32_0, %c0_i32_1 : i32, i32, i32, i32
  }
}

</mosaic_0001>

<llo_original>
// kernel: tpu_custom_call.1
$region0: #{tpu_custom_call.1}
  #allocation0 [shape = 'u32[]', space=smem, size = 0x4, offset = 0x4, fixed_abs, tag = 'smem constant byte address 0x4 - core index']
  #allocation1 [shape = 'u32[72,128]{1,0:T(1,128)}', space=vmem, size = 0x9000, scoped, tag = 'internal scratch']
  #allocation2 [shape = 'f32[18,18,128]{2,1,0:T(8,128)}', space=vmem, size = 0x36000, scoped, tag = 'scratch operand']
  %s0 = inlined_call_operand.vmem [shape: bf16[2,18,18,128], index: 0, kind: input, shape index: {}]
  %s1 = inlined_call_operand.vmem [shape: bf16[3,384,128], index: 1, kind: input, shape index: {}]
  %s2 = inlined_call_operand.hbm [shape: bf16[3,384,128], index: 2, kind: input, shape index: {}]
  %s3 = inlined_call_operand.vmem [shape: f32[1,128], index: 3, kind: input, shape index: {}]
  %s4 = inlined_call_operand.vmem [shape: f32[1,128], index: 4, kind: input, shape index: {}]
  %s5 = inlined_call_operand.vmem [shape: f32[1,128], index: 5, kind: input, shape index: {}]
  %s6 = inlined_call_operand.vmem [shape: f32[1,128], index: 6, kind: input, shape index: {}]
  %s7 = inlined_call_operand.hbm [shape: f32[2,16,16,128], index: 7, kind: output, shape index: {}]
  %s8 = sld [smem:[#allocation0]]
  $region65: #{tpu_custom_call.1} parent=0
    _
  %s10 = ssub.s32 1, %s8
  %s11 = scalar_select 0, %s10, %s8
  $region1: #{tpu_custom_call.1} parent=0
    #allocation3 [shape = 'u8[294912]{0}', space=vmem, size = 0x48000, scoped, tag = 'input window, operand 2, single buffered']
    #allocation4 [shape = 's32[2]{0}', space=sflag, size = 0x8, scoped, tag = 'scoped memory for tpu_custom_call.1']
    #allocation5 [shape = 's32[2]{0}', space=sflag, size = 0x8, scoped, tag = 'scoped memory for tpu_custom_call.1']
    #allocation6 [shape = 'u8[262144]{0}', space=vmem, size = 0x40000, scoped, tag = 'output window, operand 0']
    %12 = vsyncpa [#allocation4], 0
    %13 = vsyncpa [#allocation5], 0
    %s14 = scalar_lea.sflag [#allocation5], 1
    %15 = vsyncpa %s14, 0
    loop: start=0, step=1, limit=4
    $region2: #{tpu_custom_call.1} parent=1 // loop_pre_header
      _
    $region3: #{tpu_custom_call.1} parent=1 // loop_header
      %s17 = sphi 0, %s21
      %p18 = scmp.ge.s32.totalorder %s17, 4
      %s27 = sphi 0, %s29
      %s30 = sphi 0, %s27
      %s31 = sphi 0, %s30
      %s47 = sphi 0, %s31
      %s51 = sphi 0, %s51
      %s53 = sphi 0, %s51
      %s54 = sphi 0, %s53
      %s68 = sphi 0, %s54
      %s72 = sphi 0, %s72
      %s74 = sphi 0, %s72
      %s75 = sphi 0, %s74
      %s89 = sphi 0, %s75
      %s93 = sphi 0, %s93
      %s95 = sphi 0, %s93
      %s96 = sphi 0, %s95
      %s110 = sphi 0, %s96
      %s114 = sphi 0, %s114
      %s116 = sphi 0, %s114
      %s117 = sphi 0, %s116
      %s131 = sphi 0, %s117
      %s135 = sphi 0, %s135
      %s137 = sphi 0, %s135
      %s138 = sphi 0, %s137
      %s152 = sphi 0, %s138
      %s156 = sphi 0, %s156
      %s158 = sphi 0, %s156
      %s159 = sphi 0, %s158
      %s173 = sphi 0, %s159
      %s179 = sphi 0, %s181
      %s182 = sphi 0, %s179
      %s183 = sphi 0, %s182
      %s199 = sphi 0, %s183
    $region4: #{tpu_custom_call.1} parent=1 // loop_header_branch
      %20 = sbr.rel (%p18) target = $region8
    $region5: #{tpu_custom_call.1} parent=1 // loop_body
      %s22 = ssub.s32 %s17, 1
      %s23 = ssub.s32 %s17, 2
      %s24 = sadd.s32 %s17, 1
      %s25 = ssub.s32 %s17, %s24
      %p26 = scmp.eq.s32.totalorder %s25, 0
      %s28 = sadd.s32 %s27, 1
      %s29 = scalar_select %p26, %s27, %s28
      %p32 = pneg %p26
      %p33 = scmp.eq.s32.totalorder %s17, 1
      %p34 = por %p32, %p33
      %p35 = scmp.ne.s32.totalorder %s27, %s30
      %p36 = scmp.eq.s32.totalorder %s17, 0
      %p37 = por %p35, %p36
      %p38 = scmp.ne.s32.totalorder %s27, %s30
      %p39 = scmp.eq.s32.totalorder %s22, 1
      %p40 = por %p38, %p39
      %p41 = scmp.ne.s32.totalorder %s30, %s31
      %p42 = scmp.eq.s32.totalorder %s22, 0
      %p43 = por %p41, %p42
      %p44 = scmp.ne.s32.totalorder %s30, %s31
      %p45 = scmp.eq.s32.totalorder %s23, 1
      %p46 = por %p44, %p45
      %p48 = scmp.ne.s32.totalorder %s31, %s47
      %p49 = scmp.eq.s32.totalorder %s23, 0
      %p50 = por %p48, %p49
      %s52 = sadd.s32 %s51, 1
      %p55 = scmp.eq.s32.totalorder %s17, 1
      %p56 = scmp.ne.s32.totalorder %s51, %s53
      %p57 = scmp.eq.s32.totalorder %s17, 0
      %p58 = por %p56, %p57
      %p59 = scmp.ne.s32.totalorder %s51, %s53
      %p60 = scmp.eq.s32.totalorder %s22, 1
      %p61 = por %p59, %p60
      %p62 = scmp.ne.s32.totalorder %s53, %s54
      %p63 = scmp.eq.s32.totalorder %s22, 0
      %p64 = por %p62, %p63
      %p65 = scmp.ne.s32.totalorder %s53, %s54
      %p66 = scmp.eq.s32.totalorder %s23, 1
      %p67 = por %p65, %p66
      %p69 = scmp.ne.s32.totalorder %s54, %s68
      %p70 = scmp.eq.s32.totalorder %s23, 0
      %p71 = por %p69, %p70
      %s73 = sadd.s32 %s72, 1
      %p76 = scmp.eq.s32.totalorder %s17, 1
      %p77 = scmp.ne.s32.totalorder %s72, %s74
      %p78 = scmp.eq.s32.totalorder %s17, 0
      %p79 = por %p77, %p78
      %p80 = scmp.ne.s32.totalorder %s72, %s74
      %p81 = scmp.eq.s32.totalorder %s22, 1
      %p82 = por %p80, %p81
      %p83 = scmp.ne.s32.totalorder %s74, %s75
      %p84 = scmp.eq.s32.totalorder %s22, 0
      %p85 = por %p83, %p84
      %p86 = scmp.ne.s32.totalorder %s74, %s75
      %p87 = scmp.eq.s32.totalorder %s23, 1
      %p88 = por %p86, %p87
      %p90 = scmp.ne.s32.totalorder %s75, %s89
      %p91 = scmp.eq.s32.totalorder %s23, 0
      %p92 = por %p90, %p91
      %s94 = sadd.s32 %s93, 1
      %p97 = scmp.eq.s32.totalorder %s17, 1
      %p98 = scmp.ne.s32.totalorder %s93, %s95
      %p99 = scmp.eq.s32.totalorder %s17, 0
      %p100 = por %p98, %p99
      %p101 = scmp.ne.s32.totalorder %s93, %s95
      %p102 = scmp.eq.s32.totalorder %s22, 1
      %p103 = por %p101, %p102
      %p104 = scmp.ne.s32.totalorder %s95, %s96
      %p105 = scmp.eq.s32.totalorder %s22, 0
      %p106 = por %p104, %p105
      %p107 = scmp.ne.s32.totalorder %s95, %s96
      %p108 = scmp.eq.s32.totalorder %s23, 1
      %p109 = por %p107, %p108
      %p111 = scmp.ne.s32.totalorder %s96, %s110
      %p112 = scmp.eq.s32.totalorder %s23, 0
      %p113 = por %p111, %p112
      %s115 = sadd.s32 %s114, 1
      %p118 = scmp.eq.s32.totalorder %s17, 1
      %p119 = scmp.ne.s32.totalorder %s114, %s116
      %p120 = scmp.eq.s32.totalorder %s17, 0
      %p121 = por %p119, %p120
      %p122 = scmp.ne.s32.totalorder %s114, %s116
      %p123 = scmp.eq.s32.totalorder %s22, 1
      %p124 = por %p122, %p123
      %p125 = scmp.ne.s32.totalorder %s116, %s117
      %p126 = scmp.eq.s32.totalorder %s22, 0
      %p127 = por %p125, %p126
      %p128 = scmp.ne.s32.totalorder %s116, %s117
      %p129 = scmp.eq.s32.totalorder %s23, 1
      %p130 = por %p128, %p129
      %p132 = scmp.ne.s32.totalorder %s117, %s131
      %p133 = scmp.eq.s32.totalorder %s23, 0
      %p134 = por %p132, %p133
      %s136 = sadd.s32 %s135, 1
      %p139 = scmp.eq.s32.totalorder %s17, 1
      %p140 = scmp.ne.s32.totalorder %s135, %s137
      %p141 = scmp.eq.s32.totalorder %s17, 0
      %p142 = por %p140, %p141
      %p143 = scmp.ne.s32.totalorder %s135, %s137
      %p144 = scmp.eq.s32.totalorder %s22, 1
      %p145 = por %p143, %p144
      %p146 = scmp.ne.s32.totalorder %s137, %s138
      %p147 = scmp.eq.s32.totalorder %s22, 0
      %p148 = por %p146, %p147
      %p149 = scmp.ne.s32.totalorder %s137, %s138
      %p150 = scmp.eq.s32.totalorder %s23, 1
      %p151 = por %p149, %p150
      %p153 = scmp.ne.s32.totalorder %s138, %s152
      %p154 = scmp.eq.s32.totalorder %s23, 0
      %p155 = por %p153, %p154
      %s157 = sadd.s32 %s156, 1
      %p160 = scmp.eq.s32.totalorder %s17, 1
      %p161 = scmp.ne.s32.totalorder %s156, %s158
      %p162 = scmp.eq.s32.totalorder %s17, 0
      %p163 = por %p161, %p162
      %p164 = scmp.ne.s32.totalorder %s156, %s158
      %p165 = scmp.eq.s32.totalorder %s22, 1
      %p166 = por %p164, %p165
      %p167 = scmp.ne.s32.totalorder %s158, %s159
      %p168 = scmp.eq.s32.totalorder %s22, 0
      %p169 = por %p167, %p168
      %p170 = scmp.ne.s32.totalorder %s158, %s159
      %p171 = scmp.eq.s32.totalorder %s23, 1
      %p172 = por %p170, %p171
      %p174 = scmp.ne.s32.totalorder %s159, %s173
      %p175 = scmp.eq.s32.totalorder %s23, 0
      %p176 = por %p174, %p175
      %s177 = ssub.s32 %s17, %s24
      %p178 = scmp.eq.s32.totalorder %s177, 0
      %s180 = sadd.s32 %s179, 1
      %s181 = scalar_select %p178, %s179, %s180
      %p184 = pneg %p178
      %p185 = scmp.eq.s32.totalorder %s17, 1
      %p186 = por %p184, %p185
      %p187 = scmp.ne.s32.totalorder %s179, %s182
      %p188 = scmp.eq.s32.totalorder %s17, 0
      %p189 = por %p187, %p188
      %p190 = scmp.ne.s32.totalorder %s179, %s182
      %p191 = scmp.eq.s32.totalorder %s22, 1
      %p192 = por %p190, %p191
      %p193 = scmp.ne.s32.totalorder %s182, %s183
      %p194 = scmp.eq.s32.totalorder %s22, 0
      %p195 = por %p193, %p194
      %p196 = scmp.ne.s32.totalorder %s182, %s183
      %p197 = scmp.eq.s32.totalorder %s23, 1
      %p198 = por %p196, %p197
      %p200 = scmp.ne.s32.totalorder %s183, %s199
      %p201 = scmp.eq.s32.totalorder %s23, 0
      %p202 = por %p200, %p201
      %p203 = scmp.le.s32.totalorder 1, %s17
      %p204 = scmp.lt.s32.totalorder %s17, 3
      %p205 = pnand %p203, %p204
      %p206 = pneg %p205
      // Predicated region
      $region9: #{tpu_custom_call.1} parent=5 // pred_check
        _
      $region10: #{tpu_custom_call.1} parent=5 // pred_check_branch
        %208 = sbr.rel (%p205) target = $region12
      $region11: #{tpu_custom_call.1} parent=5 // pred_region
        %s209 = ssub.s32 %s17, 1
        // Predicated region
        $region13: #{tpu_custom_call.1} parent=11 // pred_check
          %p210 = pneg %p64
        $region14: #{tpu_custom_call.1} parent=11 // pred_check_branch
          %212 = sbr.rel (%p210) target = $region16
        $region15: #{tpu_custom_call.1} parent=11 // pred_region
          _
        $region16: #{tpu_custom_call.1} parent=11 // pred_fallthru
          _
        // Predicated region
        $region17: #{tpu_custom_call.1} parent=11 // pred_check
          %p213 = pneg %p85
        $region18: #{tpu_custom_call.1} parent=11 // pred_check_branch
          %215 = sbr.rel (%p213) target = $region20
        $region19: #{tpu_custom_call.1} parent=11 // pred_region
          %217 = vsyncadd [#allocation4], 0
          %s218 = sshll.u32 %s2, 4
          %s219 = int_to_ptr.hbm [resolvable:$true] %s218
          %s220 = sshll.u32 [#allocation3], 4
          %s221 = int_to_ptr.vmem [resolvable:$true] %s220
          %226 = dma.hbm_to_vmem [thread:$0]  %s219, 9216, %s221, [#allocation4], 64, 64, 4
        $region20: #{tpu_custom_call.1} parent=11 // pred_fallthru
          _
        // Predicated region
        $region21: #{tpu_custom_call.1} parent=11 // pred_check
          %p227 = pneg %p106
        $region22: #{tpu_custom_call.1} parent=11 // pred_check_branch
          %229 = sbr.rel (%p227) target = $region24
        $region23: #{tpu_custom_call.1} parent=11 // pred_region
          _
        $region24: #{tpu_custom_call.1} parent=11 // pred_fallthru
          _
        // Predicated region
        $region25: #{tpu_custom_call.1} parent=11 // pred_check
          %p230 = pneg %p127
        $region26: #{tpu_custom_call.1} parent=11 // pred_check_branch
          %232 = sbr.rel (%p230) target = $region28
        $region27: #{tpu_custom_call.1} parent=11 // pred_region
          _
        $region28: #{tpu_custom_call.1} parent=11 // pred_fallthru
          _
        // Predicated region
        $region29: #{tpu_custom_call.1} parent=11 // pred_check
          %p233 = pneg %p148
        $region30: #{tpu_custom_call.1} parent=11 // pred_check_branch
          %235 = sbr.rel (%p233) target = $region32
        $region31: #{tpu_custom_call.1} parent=11 // pred_region
          _
        $region32: #{tpu_custom_call.1} parent=11 // pred_fallthru
          _
        // Predicated region
        $region33: #{tpu_custom_call.1} parent=11 // pred_check
          %p236 = pneg %p169
        $region34: #{tpu_custom_call.1} parent=11 // pred_check_branch
          %238 = sbr.rel (%p236) target = $region36
        $region35: #{tpu_custom_call.1} parent=11 // pred_region
          _
        $region36: #{tpu_custom_call.1} parent=11 // pred_fallthru
          _
      $region12: #{tpu_custom_call.1} parent=5 // pred_fallthru
        _
      %p239 = scmp.lt.s32.totalorder %s17, 2
      // Predicated region
      $region37: #{tpu_custom_call.1} parent=5 // pred_check
        %p240 = pneg %p239
      $region38: #{tpu_custom_call.1} parent=5 // pred_check_branch
        %242 = sbr.rel (%p240) target = $region40
      $region39: #{tpu_custom_call.1} parent=5 // pred_region
        // Predicated region
        $region41: #{tpu_custom_call.1} parent=39 // pred_check
          %p243 = pneg %p37
        $region42: #{tpu_custom_call.1} parent=39 // pred_check_branch
          %245 = sbr.rel (%p243) target = $region44
        $region43: #{tpu_custom_call.1} parent=39 // pred_region
          %p246 = scmp.lt.s32.totalorder %s17, 1
          %s247 = scalar_select %p246, %s17, 1
          %s248 = smul.addr %s247, 54
          %s249 = smul.addr %s248, 4
          %s250 = scalar_lea.vmem %s0, %s249
        $region44: #{tpu_custom_call.1} parent=39 // pred_fallthru
          _
      $region40: #{tpu_custom_call.1} parent=5 // pred_fallthru
        _
      %p251 = scmp.le.s32.totalorder 1, %s17
      %p252 = scmp.lt.s32.totalorder %s17, 3
      %p253 = pnand %p251, %p252
      %p254 = pneg %p253
      // Predicated region
      $region45: #{tpu_custom_call.1} parent=5 // pred_check
        _
      $region46: #{tpu_custom_call.1} parent=5 // pred_check_branch
        %256 = sbr.rel (%p253) target = $region48
      $region47: #{tpu_custom_call.1} parent=5 // pred_region
        %s257 = ssub.s32 %s17, 1
        // Predicated region
        $region49: #{tpu_custom_call.1} parent=47 // pred_check
          %p258 = pneg %p85
        $region50: #{tpu_custom_call.1} parent=47 // pred_check_branch
          %260 = sbr.rel (%p258) target = $region52
        $region51: #{tpu_custom_call.1} parent=47 // pred_region
          %262 = dma.done [#allocation4], 9216
        $region52: #{tpu_custom_call.1} parent=47 // pred_fallthru
          _
        %p263 = scmp.lt.s32.totalorder %s22, 1
        %s264 = scalar_select %p263, %s22, 1
        %s265 = smul.addr %s264, 54
        %s266 = smul.addr %s265, 4
        %s267 = scalar_lea.vmem %s0, %s266
        %p268 = pneg %p43
        %p269 = pneg %p40
        %p270 = pneg %p64
        %p271 = pneg %p61
        %p272 = pneg %p85
        %p273 = pneg %p82
        %p274 = pneg %p106
        %p275 = pneg %p103
        %p276 = pneg %p127
        %p277 = pneg %p124
        %p278 = pneg %p148
        %p279 = pneg %p145
        %p280 = pneg %p169
        %p281 = pneg %p166
        %p282 = pneg %p195
        %p283 = pneg %p192
        %s284 = sand.u32 %s182, 1
        %s285 = scalar_lea.sflag [#allocation5], %s284
        %s286 = sand.u32 %s182, 1
        %s287 = smul.addr %s286, 256
        %s288 = scalar_lea.vmem [#allocation6], %s287
        %p289 = scmp.lt.s32.totalorder %s22, 1
        %s290 = scalar_select %p289, %s22, 1
        %s291 = smul.addr %s290, 54
        %s292 = smul.addr %s291, 4
        %s293 = scalar_lea.vmem %s0, %s292
        %v294 = vld [vmem:[%s293] sm:$0xf]
        %v295 = vld [vmem:[%s293 + $0x4] sm:$0xf]
        %v296 = vld [vmem:[%s293 + $0x8] sm:$0x1]
        %v297 = vld [vmem:[%s293 + $0xc] sm:$0xf]
        %v298 = vld [vmem:[%s293 + $0x10] sm:$0xf]
        %v299 = vld [vmem:[%s293 + $0x14] sm:$0x1]
        %v300 = vld [vmem:[%s293 + $0x18] sm:$0xf]
        %v301 = vld [vmem:[%s293 + $0x1c] sm:$0xf]
        %v302 = vld [vmem:[%s293 + $0x20] sm:$0x1]
        %v303 = vld [vmem:[%s293 + $0x24] sm:$0xf]
        %v304 = vld [vmem:[%s293 + $0x28] sm:$0xf]
        %v305 = vld [vmem:[%s293 + $0x2c] sm:$0x1]
        %v306 = vld [vmem:[%s293 + $0x30] sm:$0xf]
        %v307 = vld [vmem:[%s293 + $0x34] sm:$0xf]
        %v308 = vld [vmem:[%s293 + $0x38] sm:$0x1]
        %v309 = vld [vmem:[%s293 + $0x3c] sm:$0xf]
        %v310 = vld [vmem:[%s293 + $0x40] sm:$0xf]
        %v311 = vld [vmem:[%s293 + $0x44] sm:$0x1]
        %v312 = vld [vmem:[%s293 + $0x48] sm:$0xf]
        %v313 = vld [vmem:[%s293 + $0x4c] sm:$0xf]
        %v314 = vld [vmem:[%s293 + $0x50] sm:$0x1]
        %v315 = vld [vmem:[%s293 + $0x54] sm:$0xf]
        %v316 = vld [vmem:[%s293 + $0x58] sm:$0xf]
        %v317 = vld [vmem:[%s293 + $0x5c] sm:$0x1]
        %v318 = vld [vmem:[%s293 + $0x60] sm:$0xf]
        %v319 = vld [vmem:[%s293 + $0x64] sm:$0xf]
        %v320 = vld [vmem:[%s293 + $0x68] sm:$0x1]
        %v321 = vld [vmem:[%s293 + $0x6c] sm:$0xf]
        %v322 = vld [vmem:[%s293 + $0x70] sm:$0xf]
        %v323 = vld [vmem:[%s293 + $0x74] sm:$0x1]
        %v324 = vld [vmem:[%s293 + $0x78] sm:$0xf]
        %v325 = vld [vmem:[%s293 + $0x7c] sm:$0xf]
        %v326 = vld [vmem:[%s293 + $0x80] sm:$0x1]
        %v327 = vld [vmem:[%s293 + $0x84] sm:$0xf]
        %v328 = vld [vmem:[%s293 + $0x88] sm:$0xf]
        %v329 = vld [vmem:[%s293 + $0x8c] sm:$0x1]
        %v330 = vld [vmem:[%s293 + $0x90] sm:$0xf]
        %v331 = vld [vmem:[%s293 + $0x94] sm:$0xf]
        %v332 = vld [vmem:[%s293 + $0x98] sm:$0x1]
        %v333 = vld [vmem:[%s293 + $0x9c] sm:$0xf]
        %v334 = vld [vmem:[%s293 + $0xa0] sm:$0xf]
        %v335 = vld [vmem:[%s293 + $0xa4] sm:$0x1]
        %v336 = vld [vmem:[%s293 + $0xa8] sm:$0xf]
        %v337 = vld [vmem:[%s293 + $0xac] sm:$0xf]
        %v338 = vld [vmem:[%s293 + $0xb0] sm:$0x1]
        %v339 = vld [vmem:[%s293 + $0xb4] sm:$0xf]
        %v340 = vld [vmem:[%s293 + $0xb8] sm:$0xf]
        %v341 = vld [vmem:[%s293 + $0xbc] sm:$0x1]
        %v374 = vunpack.c.l.b16 %v294
        %v375 = vunpack.c.l.b16 %v295
        %v376 = vunpack.c.l.b16 %v297
        %v377 = vunpack.c.l.b16 %v298
        %v378 = vunpack.c.l.b16 %v300
        %v379 = vunpack.c.l.b16 %v301
        %v380 = vunpack.c.l.b16 %v303
        %v381 = vunpack.c.l.b16 %v304
        %v382 = vunpack.c.l.b16 %v306
        %v383 = vunpack.c.l.b16 %v307
        %v384 = vunpack.c.l.b16 %v309
        %v385 = vunpack.c.l.b16 %v310
        %v386 = vunpack.c.l.b16 %v312
        %v387 = vunpack.c.l.b16 %v313
        %v388 = vunpack.c.l.b16 %v315
        %v389 = vunpack.c.l.b16 %v316
        %v390 = vunpack.c.l.b16 %v318
        %v391 = vunpack.c.l.b16 %v319
        %v392 = vunpack.c.l.b16 %v321
        %v393 = vunpack.c.l.b16 %v322
        %v394 = vunpack.c.l.b16 %v324
        %v395 = vunpack.c.l.b16 %v325
        %v396 = vunpack.c.l.b16 %v327
        %v397 = vunpack.c.l.b16 %v328
        %v398 = vunpack.c.l.b16 %v330
        %v399 = vunpack.c.l.b16 %v331
        %v400 = vunpack.c.l.b16 %v333
        %v401 = vunpack.c.l.b16 %v334
        %v402 = vunpack.c.l.b16 %v336
        %v403 = vunpack.c.l.b16 %v337
        %v404 = vunpack.c.l.b16 %v339
        %v405 = vunpack.c.l.b16 %v340
        %v406 = vpack.c.b16 %v375, %v374
        %v407 = vpack.c.b16 %v377, %v376
        %v408 = vpack.c.b16 %v379, %v378
        %v409 = vpack.c.b16 %v381, %v380
        %v410 = vpack.c.b16 %v383, %v382
        %v411 = vpack.c.b16 %v385, %v384
        %v412 = vpack.c.b16 %v387, %v386
        %v413 = vpack.c.b16 %v389, %v388
        %v414 = vpack.c.b16 %v391, %v390
        %v415 = vpack.c.b16 %v393, %v392
        %v416 = vpack.c.b16 %v395, %v394
        %v417 = vpack.c.b16 %v397, %v396
        %v418 = vpack.c.b16 %v399, %v398
        %v419 = vpack.c.b16 %v401, %v400
        %v420 = vpack.c.b16 %v403, %v402
        %v421 = vpack.c.b16 %v405, %v404
        %v454 = vunpack.c.l.b16 %v296
        %v455 = vunpack.c.l.b16 %v299
        %v456 = vunpack.c.l.b16 %v302
        %v457 = vunpack.c.l.b16 %v305
        %v458 = vunpack.c.l.b16 %v308
        %v459 = vunpack.c.l.b16 %v311
        %v460 = vunpack.c.l.b16 %v314
        %v461 = vunpack.c.l.b16 %v317
        %v462 = vunpack.c.l.b16 %v320
        %v463 = vunpack.c.l.b16 %v323
        %v464 = vunpack.c.l.b16 %v326
        %v465 = vunpack.c.l.b16 %v329
        %v466 = vunpack.c.l.b16 %v332
        %v467 = vunpack.c.l.b16 %v335
        %v468 = vunpack.c.l.b16 %v338
        %v469 = vunpack.c.l.b16 %v341
        %v470 = vpack.c.b16 %v454, %v454
        %v471 = vpack.c.b16 %v455, %v455
        %v472 = vpack.c.b16 %v456, %v456
        %v473 = vpack.c.b16 %v457, %v457
        %v474 = vpack.c.b16 %v458, %v458
        %v475 = vpack.c.b16 %v459, %v459
        %v476 = vpack.c.b16 %v460, %v460
        %v477 = vpack.c.b16 %v461, %v461
        %v478 = vpack.c.b16 %v462, %v462
        %v479 = vpack.c.b16 %v463, %v463
        %v480 = vpack.c.b16 %v464, %v464
        %v481 = vpack.c.b16 %v465, %v465
        %v482 = vpack.c.b16 %v466, %v466
        %v483 = vpack.c.b16 %v467, %v467
        %v484 = vpack.c.b16 %v468, %v468
        %v485 = vpack.c.b16 %v469, %v469
        %vm486 = vsmask.f32 7424
        %v488 = vshrl.u32 %v406, 16
        %v490 = vshll.u32 %v406, 16
        %v492 = vrot.slane %v490, 1
        %v493 = vor.u32 %v488, %v492
        %v495 = vshll.u32 %v470, 16
        %v497 = vrot.slane %v495, 1
        %v498 = vsel %vm486, %v493, %v497
        %v500 = vshrl.u32 %v407, 16
        %v502 = vshll.u32 %v407, 16
        %v504 = vrot.slane %v502, 1
        %v505 = vor.u32 %v500, %v504
        %v507 = vshll.u32 %v471, 16
        %v509 = vrot.slane %v507, 1
        %v510 = vsel %vm486, %v505, %v509
        %v512 = vshrl.u32 %v408, 16
        %v514 = vshll.u32 %v408, 16
        %v516 = vrot.slane %v514, 1
        %v517 = vor.u32 %v512, %v516
        %v519 = vshll.u32 %v472, 16
        %v521 = vrot.slane %v519, 1
        %v522 = vsel %vm486, %v517, %v521
        %v524 = vshrl.u32 %v409, 16
        %v526 = vshll.u32 %v409, 16
        %v528 = vrot.slane %v526, 1
        %v529 = vor.u32 %v524, %v528
        %v531 = vshll.u32 %v473, 16
        %v533 = vrot.slane %v531, 1
        %v534 = vsel %vm486, %v529, %v533
        %v536 = vshrl.u32 %v410, 16
        %v538 = vshll.u32 %v410, 16
        %v540 = vrot.slane %v538, 1
        %v541 = vor.u32 %v536, %v540
        %v543 = vshll.u32 %v474, 16
        %v545 = vrot.slane %v543, 1
        %v546 = vsel %vm486, %v541, %v545
        %v548 = vshrl.u32 %v411, 16
        %v550 = vshll.u32 %v411, 16
        %v552 = vrot.slane %v550, 1
        %v553 = vor.u32 %v548, %v552
        %v555 = vshll.u32 %v475, 16
        %v557 = vrot.slane %v555, 1
        %v558 = vsel %vm486, %v553, %v557
        %v560 = vshrl.u32 %v412, 16
        %v562 = vshll.u32 %v412, 16
        %v564 = vrot.slane %v562, 1
        %v565 = vor.u32 %v560, %v564
        %v567 = vshll.u32 %v476, 16
        %v569 = vrot.slane %v567, 1
        %v570 = vsel %vm486, %v565, %v569
        %v572 = vshrl.u32 %v413, 16
        %v574 = vshll.u32 %v413, 16
        %v576 = vrot.slane %v574, 1
        %v577 = vor.u32 %v572, %v576
        %v579 = vshll.u32 %v477, 16
        %v581 = vrot.slane %v579, 1
        %v582 = vsel %vm486, %v577, %v581
        %v584 = vshrl.u32 %v414, 16
        %v586 = vshll.u32 %v414, 16
        %v588 = vrot.slane %v586, 1
        %v589 = vor.u32 %v584, %v588
        %v591 = vshll.u32 %v478, 16
        %v593 = vrot.slane %v591, 1
        %v594 = vsel %vm486, %v589, %v593
        %v596 = vshrl.u32 %v415, 16
        %v598 = vshll.u32 %v415, 16
        %v600 = vrot.slane %v598, 1
        %v601 = vor.u32 %v596, %v600
        %v603 = vshll.u32 %v479, 16
        %v605 = vrot.slane %v603, 1
        %v606 = vsel %vm486, %v601, %v605
        %v608 = vshrl.u32 %v416, 16
        %v610 = vshll.u32 %v416, 16
        %v612 = vrot.slane %v610, 1
        %v613 = vor.u32 %v608, %v612
        %v615 = vshll.u32 %v480, 16
        %v617 = vrot.slane %v615, 1
        %v618 = vsel %vm486, %v613, %v617
        %v620 = vshrl.u32 %v417, 16
        %v622 = vshll.u32 %v417, 16
        %v624 = vrot.slane %v622, 1
        %v625 = vor.u32 %v620, %v624
        %v627 = vshll.u32 %v481, 16
        %v629 = vrot.slane %v627, 1
        %v630 = vsel %vm486, %v625, %v629
        %v632 = vshrl.u32 %v418, 16
        %v634 = vshll.u32 %v418, 16
        %v636 = vrot.slane %v634, 1
        %v637 = vor.u32 %v632, %v636
        %v639 = vshll.u32 %v482, 16
        %v641 = vrot.slane %v639, 1
        %v642 = vsel %vm486, %v637, %v641
        %v644 = vshrl.u32 %v419, 16
        %v646 = vshll.u32 %v419, 16
        %v648 = vrot.slane %v646, 1
        %v649 = vor.u32 %v644, %v648
        %v651 = vshll.u32 %v483, 16
        %v653 = vrot.slane %v651, 1
        %v654 = vsel %vm486, %v649, %v653
        %v656 = vshrl.u32 %v420, 16
        %v658 = vshll.u32 %v420, 16
        %v660 = vrot.slane %v658, 1
        %v661 = vor.u32 %v656, %v660
        %v663 = vshll.u32 %v484, 16
        %v665 = vrot.slane %v663, 1
        %v666 = vsel %vm486, %v661, %v665
        %v668 = vshrl.u32 %v421, 16
        %v670 = vshll.u32 %v421, 16
        %v672 = vrot.slane %v670, 1
        %v673 = vor.u32 %v668, %v672
        %v675 = vshll.u32 %v485, 16
        %v677 = vrot.slane %v675, 1
        %v678 = vsel %vm486, %v673, %v677
        %vm695 = vcmask 1046528
        %v696 = vrot.slane %v406, 1
        %v697 = vrot.slane %v470, 1
        %v698 = vsel %vm695, %v696, %v697
        %v699 = vrot.slane %v407, 1
        %v700 = vrot.slane %v471, 1
        %v701 = vsel %vm695, %v699, %v700
        %v702 = vrot.slane %v408, 1
        %v703 = vrot.slane %v472, 1
        %v704 = vsel %vm695, %v702, %v703
        %v705 = vrot.slane %v409, 1
        %v706 = vrot.slane %v473, 1
        %v707 = vsel %vm695, %v705, %v706
        %v708 = vrot.slane %v410, 1
        %v709 = vrot.slane %v474, 1
        %v710 = vsel %vm695, %v708, %v709
        %v711 = vrot.slane %v411, 1
        %v712 = vrot.slane %v475, 1
        %v713 = vsel %vm695, %v711, %v712
        %v714 = vrot.slane %v412, 1
        %v715 = vrot.slane %v476, 1
        %v716 = vsel %vm695, %v714, %v715
        %v717 = vrot.slane %v413, 1
        %v718 = vrot.slane %v477, 1
        %v719 = vsel %vm695, %v717, %v718
        %v720 = vrot.slane %v414, 1
        %v721 = vrot.slane %v478, 1
        %v722 = vsel %vm695, %v720, %v721
        %v723 = vrot.slane %v415, 1
        %v724 = vrot.slane %v479, 1
        %v725 = vsel %vm695, %v723, %v724
        %v726 = vrot.slane %v416, 1
        %v727 = vrot.slane %v480, 1
        %v728 = vsel %vm695, %v726, %v727
        %v729 = vrot.slane %v417, 1
        %v730 = vrot.slane %v481, 1
        %v731 = vsel %vm695, %v729, %v730
        %v732 = vrot.slane %v418, 1
        %v733 = vrot.slane %v482, 1
        %v734 = vsel %vm695, %v732, %v733
        %v735 = vrot.slane %v419, 1
        %v736 = vrot.slane %v483, 1
        %v737 = vsel %vm695, %v735, %v736
        %v738 = vrot.slane %v420, 1
        %v739 = vrot.slane %v484, 1
        %v740 = vsel %vm695, %v738, %v739
        %v741 = vrot.slane %v421, 1
        %v742 = vrot.slane %v485, 1
        %v743 = vsel %vm695, %v741, %v742
        %v760 = vld [vmem:[%s1] sm:$0xf]
        %v761 = vld [vmem:[%s1 + $0x4] sm:$0xf]
        %v762 = vld [vmem:[%s1 + $0x8] sm:$0xf]
        %v763 = vld [vmem:[%s1 + $0xc] sm:$0xf]
        %v764 = vld [vmem:[%s1 + $0x10] sm:$0xf]
        %v765 = vld [vmem:[%s1 + $0x14] sm:$0xf]
        %v766 = vld [vmem:[%s1 + $0x18] sm:$0xf]
        %v767 = vld [vmem:[%s1 + $0x1c] sm:$0xf]
        %v768 = vld [vmem:[%s1 + $0x20] sm:$0xf]
        %v769 = vld [vmem:[%s1 + $0x24] sm:$0xf]
        %v770 = vld [vmem:[%s1 + $0x28] sm:$0xf]
        %v771 = vld [vmem:[%s1 + $0x2c] sm:$0xf]
        %v772 = vld [vmem:[%s1 + $0x30] sm:$0xf]
        %v773 = vld [vmem:[%s1 + $0x34] sm:$0xf]
        %v774 = vld [vmem:[%s1 + $0x38] sm:$0xf]
        %v775 = vld [vmem:[%s1 + $0x3c] sm:$0xf]
        %v776 = vld [vmem:[%s1 + $0x40] sm:$0xf]
        %v777 = vld [vmem:[%s1 + $0x44] sm:$0xf]
        %v778 = vld [vmem:[%s1 + $0x48] sm:$0xf]
        %v779 = vld [vmem:[%s1 + $0x4c] sm:$0xf]
        %v780 = vld [vmem:[%s1 + $0x50] sm:$0xf]
        %v781 = vld [vmem:[%s1 + $0x54] sm:$0xf]
        %v782 = vld [vmem:[%s1 + $0x58] sm:$0xf]
        %v783 = vld [vmem:[%s1 + $0x5c] sm:$0xf]
        %v784 = vld [vmem:[%s1 + $0x60] sm:$0xf]
        %v785 = vld [vmem:[%s1 + $0x64] sm:$0xf]
        %v786 = vld [vmem:[%s1 + $0x68] sm:$0xf]
        %v787 = vld [vmem:[%s1 + $0x6c] sm:$0xf]
        %v788 = vld [vmem:[%s1 + $0x70] sm:$0xf]
        %v789 = vld [vmem:[%s1 + $0x74] sm:$0xf]
        %v790 = vld [vmem:[%s1 + $0x78] sm:$0xf]
        %v791 = vld [vmem:[%s1 + $0x7c] sm:$0xf]
        %v792 = vld [vmem:[%s1 + $0x80] sm:$0xf]
        %v793 = vld [vmem:[%s1 + $0x84] sm:$0xf]
        %v794 = vld [vmem:[%s1 + $0x88] sm:$0xf]
        %v795 = vld [vmem:[%s1 + $0x8c] sm:$0xf]
        %v796 = vld [vmem:[%s1 + $0x90] sm:$0xf]
        %v797 = vld [vmem:[%s1 + $0x94] sm:$0xf]
        %v798 = vld [vmem:[%s1 + $0x98] sm:$0xf]
        %v799 = vld [vmem:[%s1 + $0x9c] sm:$0xf]
        %v800 = vld [vmem:[%s1 + $0xa0] sm:$0xf]
        %v801 = vld [vmem:[%s1 + $0xa4] sm:$0xf]
        %v802 = vld [vmem:[%s1 + $0xa8] sm:$0xf]
        %v803 = vld [vmem:[%s1 + $0xac] sm:$0xf]
        %v804 = vld [vmem:[%s1 + $0xb0] sm:$0xf]
        %v805 = vld [vmem:[%s1 + $0xb4] sm:$0xf]
        %v806 = vld [vmem:[%s1 + $0xb8] sm:$0xf]
        %v807 = vld [vmem:[%s1 + $0xbc] sm:$0xf]
        %s808 = scalar_lea.vmem %s293, 12
        %v809 = vld [vmem:[%s808] sm:$0xf]
        %v810 = vld [vmem:[%s808 + $0x4] sm:$0xf]
        %v811 = vld [vmem:[%s808 + $0x8] sm:$0x1]
        %v812 = vld [vmem:[%s808 + $0xc] sm:$0xf]
        %v813 = vld [vmem:[%s808 + $0x10] sm:$0xf]
        %v814 = vld [vmem:[%s808 + $0x14] sm:$0x1]
        %v815 = vld [vmem:[%s808 + $0x18] sm:$0xf]
        %v816 = vld [vmem:[%s808 + $0x1c] sm:$0xf]
        %v817 = vld [vmem:[%s808 + $0x20] sm:$0x1]
        %v818 = vld [vmem:[%s808 + $0x24] sm:$0xf]
        %v819 = vld [vmem:[%s808 + $0x28] sm:$0xf]
        %v820 = vld [vmem:[%s808 + $0x2c] sm:$0x1]
        %v821 = vld [vmem:[%s808 + $0x30] sm:$0xf]
        %v822 = vld [vmem:[%s808 + $0x34] sm:$0xf]
        %v823 = vld [vmem:[%s808 + $0x38] sm:$0x1]
        %v824 = vld [vmem:[%s808 + $0x3c] sm:$0xf]
        %v825 = vld [vmem:[%s808 + $0x40] sm:$0xf]
        %v826 = vld [vmem:[%s808 + $0x44] sm:$0x1]
        %v827 = vld [vmem:[%s808 + $0x48] sm:$0xf]
        %v828 = vld [vmem:[%s808 + $0x4c] sm:$0xf]
        %v829 = vld [vmem:[%s808 + $0x50] sm:$0x1]
        %v830 = vld [vmem:[%s808 + $0x54] sm:$0xf]
        %v831 = vld [vmem:[%s808 + $0x58] sm:$0xf]
        %v832 = vld [vmem:[%s808 + $0x5c] sm:$0x1]
        %v833 = vld [vmem:[%s808 + $0x60] sm:$0xf]
        %v834 = vld [vmem:[%s808 + $0x64] sm:$0xf]
        %v835 = vld [vmem:[%s808 + $0x68] sm:$0x1]
        %v836 = vld [vmem:[%s808 + $0x6c] sm:$0xf]
        %v837 = vld [vmem:[%s808 + $0x70] sm:$0xf]
        %v838 = vld [vmem:[%s808 + $0x74] sm:$0x1]
        %v839 = vld [vmem:[%s808 + $0x78] sm:$0xf]
        %v840 = vld [vmem:[%s808 + $0x7c] sm:$0xf]
        %v841 = vld [vmem:[%s808 + $0x80] sm:$0x1]
        %v842 = vld [vmem:[%s808 + $0x84] sm:$0xf]
        %v843 = vld [vmem:[%s808 + $0x88] sm:$0xf]
        %v844 = vld [vmem:[%s808 + $0x8c] sm:$0x1]
        %v845 = vld [vmem:[%s808 + $0x90] sm:$0xf]
        %v846 = vld [vmem:[%s808 + $0x94] sm:$0xf]
        %v847 = vld [vmem:[%s808 + $0x98] sm:$0x1]
        %v848 = vld [vmem:[%s808 + $0x9c] sm:$0xf]
        %v849 = vld [vmem:[%s808 + $0xa0] sm:$0xf]
        %v850 = vld [vmem:[%s808 + $0xa4] sm:$0x1]
        %v851 = vld [vmem:[%s808 + $0xa8] sm:$0xf]
        %v852 = vld [vmem:[%s808 + $0xac] sm:$0xf]
        %v853 = vld [vmem:[%s808 + $0xb0] sm:$0x1]
        %v854 = vld [vmem:[%s808 + $0xb4] sm:$0xf]
        %v855 = vld [vmem:[%s808 + $0xb8] sm:$0xf]
        %v856 = vld [vmem:[%s808 + $0xbc] sm:$0x1]
        %v889 = vunpack.c.l.b16 %v809
        %v890 = vunpack.c.l.b16 %v810
        %v891 = vunpack.c.l.b16 %v812
        %v892 = vunpack.c.l.b16 %v813
        %v893 = vunpack.c.l.b16 %v815
        %v894 = vunpack.c.l.b16 %v816
        %v895 = vunpack.c.l.b16 %v818
        %v896 = vunpack.c.l.b16 %v819
        %v897 = vunpack.c.l.b16 %v821
        %v898 = vunpack.c.l.b16 %v822
        %v899 = vunpack.c.l.b16 %v824
        %v900 = vunpack.c.l.b16 %v825
        %v901 = vunpack.c.l.b16 %v827
        %v902 = vunpack.c.l.b16 %v828
        %v903 = vunpack.c.l.b16 %v830
        %v904 = vunpack.c.l.b16 %v831
        %v905 = vunpack.c.l.b16 %v833
        %v906 = vunpack.c.l.b16 %v834
        %v907 = vunpack.c.l.b16 %v836
        %v908 = vunpack.c.l.b16 %v837
        %v909 = vunpack.c.l.b16 %v839
        %v910 = vunpack.c.l.b16 %v840
        %v911 = vunpack.c.l.b16 %v842
        %v912 = vunpack.c.l.b16 %v843
        %v913 = vunpack.c.l.b16 %v845
        %v914 = vunpack.c.l.b16 %v846
        %v915 = vunpack.c.l.b16 %v848
        %v916 = vunpack.c.l.b16 %v849
        %v917 = vunpack.c.l.b16 %v851
        %v918 = vunpack.c.l.b16 %v852
        %v919 = vunpack.c.l.b16 %v854
        %v920 = vunpack.c.l.b16 %v855
        %v921 = vpack.c.b16 %v890, %v889
        %v922 = vpack.c.b16 %v892, %v891
        %v923 = vpack.c.b16 %v894, %v893
        %v924 = vpack.c.b16 %v896, %v895
        %v925 = vpack.c.b16 %v898, %v897
        %v926 = vpack.c.b16 %v900, %v899
        %v927 = vpack.c.b16 %v902, %v901
        %v928 = vpack.c.b16 %v904, %v903
        %v929 = vpack.c.b16 %v906, %v905
        %v930 = vpack.c.b16 %v908, %v907
        %v931 = vpack.c.b16 %v910, %v909
        %v932 = vpack.c.b16 %v912, %v911
        %v933 = vpack.c.b16 %v914, %v913
        %v934 = vpack.c.b16 %v916, %v915
        %v935 = vpack.c.b16 %v918, %v917
        %v936 = vpack.c.b16 %v920, %v919
        %v969 = vunpack.c.l.b16 %v811
        %v970 = vunpack.c.l.b16 %v814
        %v971 = vunpack.c.l.b16 %v817
        %v972 = vunpack.c.l.b16 %v820
        %v973 = vunpack.c.l.b16 %v823
        %v974 = vunpack.c.l.b16 %v826
        %v975 = vunpack.c.l.b16 %v829
        %v976 = vunpack.c.l.b16 %v832
        %v977 = vunpack.c.l.b16 %v835
        %v978 = vunpack.c.l.b16 %v838
        %v979 = vunpack.c.l.b16 %v841
        %v980 = vunpack.c.l.b16 %v844
        %v981 = vunpack.c.l.b16 %v847
        %v982 = vunpack.c.l.b16 %v850
        %v983 = vunpack.c.l.b16 %v853
        %v984 = vunpack.c.l.b16 %v856
        %v985 = vpack.c.b16 %v969, %v969
        %v986 = vpack.c.b16 %v970, %v970
        %v987 = vpack.c.b16 %v971, %v971
        %v988 = vpack.c.b16 %v972, %v972
        %v989 = vpack.c.b16 %v973, %v973
        %v990 = vpack.c.b16 %v974, %v974
        %v991 = vpack.c.b16 %v975, %v975
        %v992 = vpack.c.b16 %v976, %v976
        %v993 = vpack.c.b16 %v977, %v977
        %v994 = vpack.c.b16 %v978, %v978
        %v995 = vpack.c.b16 %v979, %v979
        %v996 = vpack.c.b16 %v980, %v980
        %v997 = vpack.c.b16 %v981, %v981
        %v998 = vpack.c.b16 %v982, %v982
        %v999 = vpack.c.b16 %v983, %v983
        %v1000 = vpack.c.b16 %v984, %v984
        %v1002 = vshrl.u32 %v921, 16
        %v1004 = vshll.u32 %v921, 16
        %v1006 = vrot.slane %v1004, 1
        %v1007 = vor.u32 %v1002, %v1006
        %v1009 = vshll.u32 %v985, 16
        %v1011 = vrot.slane %v1009, 1
        %v1012 = vsel %vm486, %v1007, %v1011
        %v1014 = vshrl.u32 %v922, 16
        %v1016 = vshll.u32 %v922, 16
        %v1018 = vrot.slane %v1016, 1
        %v1019 = vor.u32 %v1014, %v1018
        %v1021 = vshll.u32 %v986, 16
        %v1023 = vrot.slane %v1021, 1
        %v1024 = vsel %vm486, %v1019, %v1023
        %v1026 = vshrl.u32 %v923, 16
        %v1028 = vshll.u32 %v923, 16
        %v1030 = vrot.slane %v1028, 1
        %v1031 = vor.u32 %v1026, %v1030
        %v1033 = vshll.u32 %v987, 16
        %v1035 = vrot.slane %v1033, 1
        %v1036 = vsel %vm486, %v1031, %v1035
        %v1038 = vshrl.u32 %v924, 16
        %v1040 = vshll.u32 %v924, 16
        %v1042 = vrot.slane %v1040, 1
        %v1043 = vor.u32 %v1038, %v1042
        %v1045 = vshll.u32 %v988, 16
        %v1047 = vrot.slane %v1045, 1
        %v1048 = vsel %vm486, %v1043, %v1047
        %v1050 = vshrl.u32 %v925, 16
        %v1052 = vshll.u32 %v925, 16
        %v1054 = vrot.slane %v1052, 1
        %v1055 = vor.u32 %v1050, %v1054
        %v1057 = vshll.u32 %v989, 16
        %v1059 = vrot.slane %v1057, 1
        %v1060 = vsel %vm486, %v1055, %v1059
        %v1062 = vshrl.u32 %v926, 16
        %v1064 = vshll.u32 %v926, 16
        %v1066 = vrot.slane %v1064, 1
        %v1067 = vor.u32 %v1062, %v1066
        %v1069 = vshll.u32 %v990, 16
        %v1071 = vrot.slane %v1069, 1
        %v1072 = vsel %vm486, %v1067, %v1071
        %v1074 = vshrl.u32 %v927, 16
        %v1076 = vshll.u32 %v927, 16
        %v1078 = vrot.slane %v1076, 1
        %v1079 = vor.u32 %v1074, %v1078
        %v1081 = vshll.u32 %v991, 16
        %v1083 = vrot.slane %v1081, 1
        %v1084 = vsel %vm486, %v1079, %v1083
        %v1086 = vshrl.u32 %v928, 16
        %v1088 = vshll.u32 %v928, 16
        %v1090 = vrot.slane %v1088, 1
        %v1091 = vor.u32 %v1086, %v1090
        %v1093 = vshll.u32 %v992, 16
        %v1095 = vrot.slane %v1093, 1
        %v1096 = vsel %vm486, %v1091, %v1095
        %v1098 = vshrl.u32 %v929, 16
        %v1100 = vshll.u32 %v929, 16
        %v1102 = vrot.slane %v1100, 1
        %v1103 = vor.u32 %v1098, %v1102
        %v1105 = vshll.u32 %v993, 16
        %v1107 = vrot.slane %v1105, 1
        %v1108 = vsel %vm486, %v1103, %v1107
        %v1110 = vshrl.u32 %v930, 16
        %v1112 = vshll.u32 %v930, 16
        %v1114 = vrot.slane %v1112, 1
        %v1115 = vor.u32 %v1110, %v1114
        %v1117 = vshll.u32 %v994, 16
        %v1119 = vrot.slane %v1117, 1
        %v1120 = vsel %vm486, %v1115, %v1119
        %v1122 = vshrl.u32 %v931, 16
        %v1124 = vshll.u32 %v931, 16
        %v1126 = vrot.slane %v1124, 1
        %v1127 = vor.u32 %v1122, %v1126
        %v1129 = vshll.u32 %v995, 16
        %v1131 = vrot.slane %v1129, 1
        %v1132 = vsel %vm486, %v1127, %v1131
        %v1134 = vshrl.u32 %v932, 16
        %v1136 = vshll.u32 %v932, 16
        %v1138 = vrot.slane %v1136, 1
        %v1139 = vor.u32 %v1134, %v1138
        %v1141 = vshll.u32 %v996, 16
        %v1143 = vrot.slane %v1141, 1
        %v1144 = vsel %vm486, %v1139, %v1143
        %v1146 = vshrl.u32 %v933, 16
        %v1148 = vshll.u32 %v933, 16
        %v1150 = vrot.slane %v1148, 1
        %v1151 = vor.u32 %v1146, %v1150
        %v1153 = vshll.u32 %v997, 16
        %v1155 = vrot.slane %v1153, 1
        %v1156 = vsel %vm486, %v1151, %v1155
        %v1158 = vshrl.u32 %v934, 16
        %v1160 = vshll.u32 %v934, 16
        %v1162 = vrot.slane %v1160, 1
        %v1163 = vor.u32 %v1158, %v1162
        %v1165 = vshll.u32 %v998, 16
        %v1167 = vrot.slane %v1165, 1
        %v1168 = vsel %vm486, %v1163, %v1167
        %v1170 = vshrl.u32 %v935, 16
        %v1172 = vshll.u32 %v935, 16
        %v1174 = vrot.slane %v1172, 1
        %v1175 = vor.u32 %v1170, %v1174
        %v1177 = vshll.u32 %v999, 16
        %v1179 = vrot.slane %v1177, 1
        %v1180 = vsel %vm486, %v1175, %v1179
        %v1182 = vshrl.u32 %v936, 16
        %v1184 = vshll.u32 %v936, 16
        %v1186 = vrot.slane %v1184, 1
        %v1187 = vor.u32 %v1182, %v1186
        %v1189 = vshll.u32 %v1000, 16
        %v1191 = vrot.slane %v1189, 1
        %v1192 = vsel %vm486, %v1187, %v1191
        %v1209 = vrot.slane %v921, 1
        %v1210 = vrot.slane %v985, 1
        %v1211 = vsel %vm695, %v1209, %v1210
        %v1212 = vrot.slane %v922, 1
        %v1213 = vrot.slane %v986, 1
        %v1214 = vsel %vm695, %v1212, %v1213
        %v1215 = vrot.slane %v923, 1
        %v1216 = vrot.slane %v987, 1
        %v1217 = vsel %vm695, %v1215, %v1216
        %v1218 = vrot.slane %v924, 1
        %v1219 = vrot.slane %v988, 1
        %v1220 = vsel %vm695, %v1218, %v1219
        %v1221 = vrot.slane %v925, 1
        %v1222 = vrot.slane %v989, 1
        %v1223 = vsel %vm695, %v1221, %v1222
        %v1224 = vrot.slane %v926, 1
        %v1225 = vrot.slane %v990, 1
        %v1226 = vsel %vm695, %v1224, %v1225
        %v1227 = vrot.slane %v927, 1
        %v1228 = vrot.slane %v991, 1
        %v1229 = vsel %vm695, %v1227, %v1228
        %v1230 = vrot.slane %v928, 1
        %v1231 = vrot.slane %v992, 1
        %v1232 = vsel %vm695, %v1230, %v1231
        %v1233 = vrot.slane %v929, 1
        %v1234 = vrot.slane %v993, 1
        %v1235 = vsel %vm695, %v1233, %v1234
        %v1236 = vrot.slane %v930, 1
        %v1237 = vrot.slane %v994, 1
        %v1238 = vsel %vm695, %v1236, %v1237
        %v1239 = vrot.slane %v931, 1
        %v1240 = vrot.slane %v995, 1
        %v1241 = vsel %vm695, %v1239, %v1240
        %v1242 = vrot.slane %v932, 1
        %v1243 = vrot.slane %v996, 1
        %v1244 = vsel %vm695, %v1242, %v1243
        %v1245 = vrot.slane %v933, 1
        %v1246 = vrot.slane %v997, 1
        %v1247 = vsel %vm695, %v1245, %v1246
        %v1248 = vrot.slane %v934, 1
        %v1249 = vrot.slane %v998, 1
        %v1250 = vsel %vm695, %v1248, %v1249
        %v1251 = vrot.slane %v935, 1
        %v1252 = vrot.slane %v999, 1
        %v1253 = vsel %vm695, %v1251, %v1252
        %v1254 = vrot.slane %v936, 1
        %v1255 = vrot.slane %v1000, 1
        %v1256 = vsel %vm695, %v1254, %v1255
        %s1273 = scalar_lea.vmem %s1, 192
        %v1274 = vld [vmem:[%s1273] sm:$0xf]
        %v1275 = vld [vmem:[%s1273 + $0x4] sm:$0xf]
        %v1276 = vld [vmem:[%s1273 + $0x8] sm:$0xf]
        %v1277 = vld [vmem:[%s1273 + $0xc] sm:$0xf]
        %v1278 = vld [vmem:[%s1273 + $0x10] sm:$0xf]
        %v1279 = vld [vmem:[%s1273 + $0x14] sm:$0xf]
        %v1280 = vld [vmem:[%s1273 + $0x18] sm:$0xf]
        %v1281 = vld [vmem:[%s1273 + $0x1c] sm:$0xf]
        %v1282 = vld [vmem:[%s1273 + $0x20] sm:$0xf]
        %v1283 = vld [vmem:[%s1273 + $0x24] sm:$0xf]
        %v1284 = vld [vmem:[%s1273 + $0x28] sm:$0xf]
        %v1285 = vld [vmem:[%s1273 + $0x2c] sm:$0xf]
        %v1286 = vld [vmem:[%s1273 + $0x30] sm:$0xf]
        %v1287 = vld [vmem:[%s1273 + $0x34] sm:$0xf]
        %v1288 = vld [vmem:[%s1273 + $0x38] sm:$0xf]
        %v1289 = vld [vmem:[%s1273 + $0x3c] sm:$0xf]
        %v1290 = vld [vmem:[%s1273 + $0x40] sm:$0xf]
        %v1291 = vld [vmem:[%s1273 + $0x44] sm:$0xf]
        %v1292 = vld [vmem:[%s1273 + $0x48] sm:$0xf]
        %v1293 = vld [vmem:[%s1273 + $0x4c] sm:$0xf]
        %v1294 = vld [vmem:[%s1273 + $0x50] sm:$0xf]
        %v1295 = vld [vmem:[%s1273 + $0x54] sm:$0xf]
        %v1296 = vld [vmem:[%s1273 + $0x58] sm:$0xf]
        %v1297 = vld [vmem:[%s1273 + $0x5c] sm:$0xf]
        %v1298 = vld [vmem:[%s1273 + $0x60] sm:$0xf]
        %v1299 = vld [vmem:[%s1273 + $0x64] sm:$0xf]
        %v1300 = vld [vmem:[%s1273 + $0x68] sm:$0xf]
        %v1301 = vld [vmem:[%s1273 + $0x6c] sm:$0xf]
        %v1302 = vld [vmem:[%s1273 + $0x70] sm:$0xf]
        %v1303 = vld [vmem:[%s1273 + $0x74] sm:$0xf]
        %v1304 = vld [vmem:[%s1273 + $0x78] sm:$0xf]
        %v1305 = vld [vmem:[%s1273 + $0x7c] sm:$0xf]
        %v1306 = vld [vmem:[%s1273 + $0x80] sm:$0xf]
        %v1307 = vld [vmem:[%s1273 + $0x84] sm:$0xf]
        %v1308 = vld [vmem:[%s1273 + $0x88] sm:$0xf]
        %v1309 = vld [vmem:[%s1273 + $0x8c] sm:$0xf]
        %v1310 = vld [vmem:[%s1273 + $0x90] sm:$0xf]
        %v1311 = vld [vmem:[%s1273 + $0x94] sm:$0xf]
        %v1312 = vld [vmem:[%s1273 + $0x98] sm:$0xf]
        %v1313 = vld [vmem:[%s1273 + $0x9c] sm:$0xf]
        %v1314 = vld [vmem:[%s1273 + $0xa0] sm:$0xf]
        %v1315 = vld [vmem:[%s1273 + $0xa4] sm:$0xf]
        %v1316 = vld [vmem:[%s1273 + $0xa8] sm:$0xf]
        %v1317 = vld [vmem:[%s1273 + $0xac] sm:$0xf]
        %v1318 = vld [vmem:[%s1273 + $0xb0] sm:$0xf]
        %v1319 = vld [vmem:[%s1273 + $0xb4] sm:$0xf]
        %v1320 = vld [vmem:[%s1273 + $0xb8] sm:$0xf]
        %v1321 = vld [vmem:[%s1273 + $0xbc] sm:$0xf]
        %v1370 = vunpack.c.l.b16 %v1274
        %v1371 = vunpack.c.l.b16 %v1275
        %v1372 = vunpack.c.l.b16 %v1276
        %v1373 = vunpack.c.l.b16 %v1277
        %v1374 = vunpack.c.l.b16 %v1278
        %v1375 = vunpack.c.l.b16 %v1279
        %v1376 = vunpack.c.l.b16 %v1280
        %v1377 = vunpack.c.l.b16 %v1281
        %v1378 = vunpack.c.l.b16 %v1282
        %v1379 = vunpack.c.l.b16 %v1283
        %v1380 = vunpack.c.l.b16 %v1284
        %v1381 = vunpack.c.l.b16 %v1285
        %v1382 = vunpack.c.l.b16 %v1286
        %v1383 = vunpack.c.l.b16 %v1287
        %v1384 = vunpack.c.l.b16 %v1288
        %v1385 = vunpack.c.l.b16 %v1289
        %v1386 = vunpack.c.l.b16 %v1290
        %v1387 = vunpack.c.l.b16 %v1291
        %v1388 = vunpack.c.l.b16 %v1292
        %v1389 = vunpack.c.l.b16 %v1293
        %v1390 = vunpack.c.l.b16 %v1294
        %v1391 = vunpack.c.l.b16 %v1295
        %v1392 = vunpack.c.l.b16 %v1296
        %v1393 = vunpack.c.l.b16 %v1297
        %v1394 = vunpack.c.l.b16 %v1298
        %v1395 = vunpack.c.l.b16 %v1299
        %v1396 = vunpack.c.l.b16 %v1300
        %v1397 = vunpack.c.l.b16 %v1301
        %v1398 = vunpack.c.l.b16 %v1302
        %v1399 = vunpack.c.l.b16 %v1303
        %v1400 = vunpack.c.l.b16 %v1304
        %v1401 = vunpack.c.l.b16 %v1305
        %v1402 = vunpack.c.l.b16 %v1306
        %v1403 = vunpack.c.l.b16 %v1307
        %v1404 = vunpack.c.l.b16 %v1308
        %v1405 = vunpack.c.l.b16 %v1309
        %v1406 = vunpack.c.l.b16 %v1310
        %v1407 = vunpack.c.l.b16 %v1311
        %v1408 = vunpack.c.l.b16 %v1312
        %v1409 = vunpack.c.l.b16 %v1313
        %v1410 = vunpack.c.l.b16 %v1314
        %v1411 = vunpack.c.l.b16 %v1315
        %v1412 = vunpack.c.l.b16 %v1316
        %v1413 = vunpack.c.l.b16 %v1317
        %v1414 = vunpack.c.l.b16 %v1318
        %v1415 = vunpack.c.l.b16 %v1319
        %v1416 = vunpack.c.l.b16 %v1320
        %v1417 = vunpack.c.l.b16 %v1321
        %v1418 = vpack.c.b16 %v1371, %v1370
        %v1419 = vpack.c.b16 %v1373, %v1372
        %v1420 = vpack.c.b16 %v1375, %v1374
        %v1421 = vpack.c.b16 %v1377, %v1376
        %v1422 = vpack.c.b16 %v1379, %v1378
        %v1423 = vpack.c.b16 %v1381, %v1380
        %v1424 = vpack.c.b16 %v1383, %v1382
        %v1425 = vpack.c.b16 %v1385, %v1384
        %v1426 = vpack.c.b16 %v1387, %v1386
        %v1427 = vpack.c.b16 %v1389, %v1388
        %v1428 = vpack.c.b16 %v1391, %v1390
        %v1429 = vpack.c.b16 %v1393, %v1392
        %v1430 = vpack.c.b16 %v1395, %v1394
        %v1431 = vpack.c.b16 %v1397, %v1396
        %v1432 = vpack.c.b16 %v1399, %v1398
        %v1433 = vpack.c.b16 %v1401, %v1400
        %v1434 = vpack.c.b16 %v1403, %v1402
        %v1435 = vpack.c.b16 %v1405, %v1404
        %v1436 = vpack.c.b16 %v1407, %v1406
        %v1437 = vpack.c.b16 %v1409, %v1408
        %v1438 = vpack.c.b16 %v1411, %v1410
        %v1439 = vpack.c.b16 %v1413, %v1412
        %v1440 = vpack.c.b16 %v1415, %v1414
        %v1441 = vpack.c.b16 %v1417, %v1416
        %1466 = vmatpush.bf16.msra.mxu0 %v1425
        %1467 = vmatpush.bf16.msra.mxu0 %v1424
        %1468 = vmatpush.bf16.msra.mxu0 %v1423
        %1469 = vmatpush.bf16.msra.mxu0 %v1422
        %1470 = vmatpush.bf16.msra.mxu0 %v1421
        %1471 = vmatpush.bf16.msra.mxu0 %v1420
        %1472 = vmatpush.bf16.msra.mxu0 %v1419
        %1473 = vmatpush.bf16.msra.mxu0 %v1418
        %1474 = vmatmul.bf16.gmra.mxu0 %v921
        %v1475 = vpop.f32.mrf.mxu0
        %v1476 = vadd.f32 0.0, %v1475
        %v1477 = vpop.f32.mrf.mxu0
        %v1478 = vadd.f32 0.0, %v1477
        %1479 = vmatmul.bf16.gmra.mxu0 %v922
        %v1480 = vpop.f32.mrf.mxu0
        %v1481 = vadd.f32 0.0, %v1480
        %v1482 = vpop.f32.mrf.mxu0
        %v1483 = vadd.f32 0.0, %v1482
        %1484 = vmatmul.bf16.gmra.mxu0 %v923
        %v1485 = vpop.f32.mrf.mxu0
        %v1486 = vadd.f32 0.0, %v1485
        %v1487 = vpop.f32.mrf.mxu0
        %v1488 = vadd.f32 0.0, %v1487
        %1489 = vmatmul.bf16.gmra.mxu0 %v924
        %v1490 = vpop.f32.mrf.mxu0
        %v1491 = vadd.f32 0.0, %v1490
        %v1492 = vpop.f32.mrf.mxu0
        %v1493 = vadd.f32 0.0, %v1492
        %1494 = vmatmul.bf16.gmra.mxu0 %v925
        %v1495 = vpop.f32.mrf.mxu0
        %v1496 = vadd.f32 0.0, %v1495
        %v1497 = vpop.f32.mrf.mxu0
        %v1498 = vadd.f32 0.0, %v1497
        %1499 = vmatmul.bf16.gmra.mxu0 %v926
        %v1500 = vpop.f32.mrf.mxu0
        %v1501 = vadd.f32 0.0, %v1500
        %v1502 = vpop.f32.mrf.mxu0
        %v1503 = vadd.f32 0.0, %v1502
        %1504 = vmatmul.bf16.gmra.mxu0 %v927
        %v1505 = vpop.f32.mrf.mxu0
        %v1506 = vadd.f32 0.0, %v1505
        %v1507 = vpop.f32.mrf.mxu0
        %v1508 = vadd.f32 0.0, %v1507
        %1509 = vmatmul.bf16.gmra.mxu0 %v928
        %v1510 = vpop.f32.mrf.mxu0
        %v1511 = vadd.f32 0.0, %v1510
        %v1512 = vpop.f32.mrf.mxu0
        %v1513 = vadd.f32 0.0, %v1512
        %1514 = vmatmul.bf16.gmra.mxu0 %v929
        %v1515 = vpop.f32.mrf.mxu0
        %v1516 = vadd.f32 0.0, %v1515
        %v1517 = vpop.f32.mrf.mxu0
        %v1518 = vadd.f32 0.0, %v1517
        %1519 = vmatmul.bf16.gmra.mxu0 %v930
        %v1520 = vpop.f32.mrf.mxu0
        %v1521 = vadd.f32 0.0, %v1520
        %v1522 = vpop.f32.mrf.mxu0
        %v1523 = vadd.f32 0.0, %v1522
        %1524 = vmatmul.bf16.gmra.mxu0 %v931
        %v1525 = vpop.f32.mrf.mxu0
        %v1526 = vadd.f32 0.0, %v1525
        %v1527 = vpop.f32.mrf.mxu0
        %v1528 = vadd.f32 0.0, %v1527
        %1529 = vmatmul.bf16.gmra.mxu0 %v932
        %v1530 = vpop.f32.mrf.mxu0
        %v1531 = vadd.f32 0.0, %v1530
        %v1532 = vpop.f32.mrf.mxu0
        %v1533 = vadd.f32 0.0, %v1532
        %1534 = vmatmul.bf16.gmra.mxu0 %v933
        %v1535 = vpop.f32.mrf.mxu0
        %v1536 = vadd.f32 0.0, %v1535
        %v1537 = vpop.f32.mrf.mxu0
        %v1538 = vadd.f32 0.0, %v1537
        %1539 = vmatmul.bf16.gmra.mxu0 %v934
        %v1540 = vpop.f32.mrf.mxu0
        %v1541 = vadd.f32 0.0, %v1540
        %v1542 = vpop.f32.mrf.mxu0
        %v1543 = vadd.f32 0.0, %v1542
        %1544 = vmatmul.bf16.gmra.mxu0 %v935
        %v1545 = vpop.f32.mrf.mxu0
        %v1546 = vadd.f32 0.0, %v1545
        %v1547 = vpop.f32.mrf.mxu0
        %v1548 = vadd.f32 0.0, %v1547
        %1549 = vmatmul.bf16.gmra.mxu0 %v936
        %v1550 = vpop.f32.mrf.mxu0
        %v1551 = vadd.f32 0.0, %v1550
        %v1552 = vpop.f32.mrf.mxu0
        %v1553 = vadd.f32 0.0, %v1552
        %1554 = vdwg.mxu0
        %1555 = vmatpush.bf16.msra.mxu0 %v1433
        %1556 = vmatpush.bf16.msra.mxu0 %v1432
        %1557 = vmatpush.bf16.msra.mxu0 %v1431
        %1558 = vmatpush.bf16.msra.mxu0 %v1430
        %1559 = vmatpush.bf16.msra.mxu0 %v1429
        %1560 = vmatpush.bf16.msra.mxu0 %v1428
        %1561 = vmatpush.bf16.msra.mxu0 %v1427
        %1562 = vmatpush.bf16.msra.mxu0 %v1426
        %1563 = vmatmul.bf16.gmra.mxu0 %v1012
        %v1564 = vpop.f32.mrf.mxu0
        %v1565 = vadd.f32 %v1476, %v1564
        %v1566 = vpop.f32.mrf.mxu0
        %v1567 = vadd.f32 %v1478, %v1566
        %1568 = vmatmul.bf16.gmra.mxu0 %v1024
        %v1569 = vpop.f32.mrf.mxu0
        %v1570 = vadd.f32 %v1481, %v1569
        %v1571 = vpop.f32.mrf.mxu0
        %v1572 = vadd.f32 %v1483, %v1571
        %1573 = vmatmul.bf16.gmra.mxu0 %v1036
        %v1574 = vpop.f32.mrf.mxu0
        %v1575 = vadd.f32 %v1486, %v1574
        %v1576 = vpop.f32.mrf.mxu0
        %v1577 = vadd.f32 %v1488, %v1576
        %1578 = vmatmul.bf16.gmra.mxu0 %v1048
        %v1579 = vpop.f32.mrf.mxu0
        %v1580 = vadd.f32 %v1491, %v1579
        %v1581 = vpop.f32.mrf.mxu0
        %v1582 = vadd.f32 %v1493, %v1581
        %1583 = vmatmul.bf16.gmra.mxu0 %v1060
        %v1584 = vpop.f32.mrf.mxu0
        %v1585 = vadd.f32 %v1496, %v1584
        %v1586 = vpop.f32.mrf.mxu0
        %v1587 = vadd.f32 %v1498, %v1586
        %1588 = vmatmul.bf16.gmra.mxu0 %v1072
        %v1589 = vpop.f32.mrf.mxu0
        %v1590 = vadd.f32 %v1501, %v1589
        %v1591 = vpop.f32.mrf.mxu0
        %v1592 = vadd.f32 %v1503, %v1591
        %1593 = vmatmul.bf16.gmra.mxu0 %v1084
        %v1594 = vpop.f32.mrf.mxu0
        %v1595 = vadd.f32 %v1506, %v1594
        %v1596 = vpop.f32.mrf.mxu0
        %v1597 = vadd.f32 %v1508, %v1596
        %1598 = vmatmul.bf16.gmra.mxu0 %v1096
        %v1599 = vpop.f32.mrf.mxu0
        %v1600 = vadd.f32 %v1511, %v1599
        %v1601 = vpop.f32.mrf.mxu0
        %v1602 = vadd.f32 %v1513, %v1601
        %1603 = vmatmul.bf16.gmra.mxu0 %v1108
        %v1604 = vpop.f32.mrf.mxu0
        %v1605 = vadd.f32 %v1516, %v1604
        %v1606 = vpop.f32.mrf.mxu0
        %v1607 = vadd.f32 %v1518, %v1606
        %1608 = vmatmul.bf16.gmra.mxu0 %v1120
        %v1609 = vpop.f32.mrf.mxu0
        %v1610 = vadd.f32 %v1521, %v1609
        %v1611 = vpop.f32.mrf.mxu0
        %v1612 = vadd.f32 %v1523, %v1611
        %1613 = vmatmul.bf16.gmra.mxu0 %v1132
        %v1614 = vpop.f32.mrf.mxu0
        %v1615 = vadd.f32 %v1526, %v1614
        %v1616 = vpop.f32.mrf.mxu0
        %v1617 = vadd.f32 %v1528, %v1616
        %1618 = vmatmul.bf16.gmra.mxu0 %v1144
        %v1619 = vpop.f32.mrf.mxu0
        %v1620 = vadd.f32 %v1531, %v1619
        %v1621 = vpop.f32.mrf.mxu0
        %v1622 = vadd.f32 %v1533, %v1621
        %1623 = vmatmul.bf16.gmra.mxu0 %v1156
        %v1624 = vpop.f32.mrf.mxu0
        %v1625 = vadd.f32 %v1536, %v1624
        %v1626 = vpop.f32.mrf.mxu0
        %v1627 = vadd.f32 %v1538, %v1626
        %1628 = vmatmul.bf16.gmra.mxu0 %v1168
        %v1629 = vpop.f32.mrf.mxu0
        %v1630 = vadd.f32 %v1541, %v1629
        %v1631 = vpop.f32.mrf.mxu0
        %v1632 = vadd.f32 %v1543, %v1631
        %1633 = vmatmul.bf16.gmra.mxu0 %v1180
        %v1634 = vpop.f32.mrf.mxu0
        %v1635 = vadd.f32 %v1546, %v1634
        %v1636 = vpop.f32.mrf.mxu0
        %v1637 = vadd.f32 %v1548, %v1636
        %1638 = vmatmul.bf16.gmra.mxu0 %v1192
        %v1639 = vpop.f32.mrf.mxu0
        %v1640 = vadd.f32 %v1551, %v1639
        %v1641 = vpop.f32.mrf.mxu0
        %v1642 = vadd.f32 %v1553, %v1641
        %1643 = vdwg.mxu0
        %1644 = vmatpush.bf16.msra.mxu0 %v1441
        %1645 = vmatpush.bf16.msra.mxu0 %v1440
        %1646 = vmatpush.bf16.msra.mxu0 %v1439
        %1647 = vmatpush.bf16.msra.mxu0 %v1438
        %1648 = vmatpush.bf16.msra.mxu0 %v1437
        %1649 = vmatpush.bf16.msra.mxu0 %v1436
        %1650 = vmatpush.bf16.msra.mxu0 %v1435
        %1651 = vmatpush.bf16.msra.mxu0 %v1434
        %1652 = vmatmul.bf16.gmra.mxu0 %v1211
        %v1653 = vpop.f32.mrf.mxu0
        %v1654 = vadd.f32 %v1565, %v1653
        %v1655 = vpop.f32.mrf.mxu0
        %v1656 = vadd.f32 %v1567, %v1655
        %1657 = vmatmul.bf16.gmra.mxu0 %v1214
        %v1658 = vpop.f32.mrf.mxu0
        %v1659 = vadd.f32 %v1570, %v1658
        %v1660 = vpop.f32.mrf.mxu0
        %v1661 = vadd.f32 %v1572, %v1660
        %1662 = vmatmul.bf16.gmra.mxu0 %v1217
        %v1663 = vpop.f32.mrf.mxu0
        %v1664 = vadd.f32 %v1575, %v1663
        %v1665 = vpop.f32.mrf.mxu0
        %v1666 = vadd.f32 %v1577, %v1665
        %1667 = vmatmul.bf16.gmra.mxu0 %v1220
        %v1668 = vpop.f32.mrf.mxu0
        %v1669 = vadd.f32 %v1580, %v1668
        %v1670 = vpop.f32.mrf.mxu0
        %v1671 = vadd.f32 %v1582, %v1670
        %1672 = vmatmul.bf16.gmra.mxu0 %v1223
        %v1673 = vpop.f32.mrf.mxu0
        %v1674 = vadd.f32 %v1585, %v1673
        %v1675 = vpop.f32.mrf.mxu0
        %v1676 = vadd.f32 %v1587, %v1675
        %1677 = vmatmul.bf16.gmra.mxu0 %v1226
        %v1678 = vpop.f32.mrf.mxu0
        %v1679 = vadd.f32 %v1590, %v1678
        %v1680 = vpop.f32.mrf.mxu0
        %v1681 = vadd.f32 %v1592, %v1680
        %1682 = vmatmul.bf16.gmra.mxu0 %v1229
        %v1683 = vpop.f32.mrf.mxu0
        %v1684 = vadd.f32 %v1595, %v1683
        %v1685 = vpop.f32.mrf.mxu0
        %v1686 = vadd.f32 %v1597, %v1685
        %1687 = vmatmul.bf16.gmra.mxu0 %v1232
        %v1688 = vpop.f32.mrf.mxu0
        %v1689 = vadd.f32 %v1600, %v1688
        %v1690 = vpop.f32.mrf.mxu0
        %v1691 = vadd.f32 %v1602, %v1690
        %1692 = vmatmul.bf16.gmra.mxu0 %v1235
        %v1693 = vpop.f32.mrf.mxu0
        %v1694 = vadd.f32 %v1605, %v1693
        %v1695 = vpop.f32.mrf.mxu0
        %v1696 = vadd.f32 %v1607, %v1695
        %1697 = vmatmul.bf16.gmra.mxu0 %v1238
        %v1698 = vpop.f32.mrf.mxu0
        %v1699 = vadd.f32 %v1610, %v1698
        %v1700 = vpop.f32.mrf.mxu0
        %v1701 = vadd.f32 %v1612, %v1700
        %1702 = vmatmul.bf16.gmra.mxu0 %v1241
        %v1703 = vpop.f32.mrf.mxu0
        %v1704 = vadd.f32 %v1615, %v1703
        %v1705 = vpop.f32.mrf.mxu0
        %v1706 = vadd.f32 %v1617, %v1705
        %1707 = vmatmul.bf16.gmra.mxu0 %v1244
        %v1708 = vpop.f32.mrf.mxu0
        %v1709 = vadd.f32 %v1620, %v1708
        %v1710 = vpop.f32.mrf.mxu0
        %v1711 = vadd.f32 %v1622, %v1710
        %1712 = vmatmul.bf16.gmra.mxu0 %v1247
        %v1713 = vpop.f32.mrf.mxu0
        %v1714 = vadd.f32 %v1625, %v1713
        %v1715 = vpop.f32.mrf.mxu0
        %v1716 = vadd.f32 %v1627, %v1715
        %1717 = vmatmul.bf16.gmra.mxu0 %v1250
        %v1718 = vpop.f32.mrf.mxu0
        %v1719 = vadd.f32 %v1630, %v1718
        %v1720 = vpop.f32.mrf.mxu0
        %v1721 = vadd.f32 %v1632, %v1720
        %1722 = vmatmul.bf16.gmra.mxu0 %v1253
        %v1723 = vpop.f32.mrf.mxu0
        %v1724 = vadd.f32 %v1635, %v1723
        %v1725 = vpop.f32.mrf.mxu0
        %v1726 = vadd.f32 %v1637, %v1725
        %1727 = vmatmul.bf16.gmra.mxu0 %v1256
        %v1728 = vpop.f32.mrf.mxu0
        %v1729 = vadd.f32 %v1640, %v1728
        %v1730 = vpop.f32.mrf.mxu0
        %v1731 = vadd.f32 %v1642, %v1730
        %1732 = vdwg.mxu0
        %v1781 = vunpack.c.l.b16 %v760
        %v1782 = vunpack.c.l.b16 %v761
        %v1783 = vunpack.c.l.b16 %v762
        %v1784 = vunpack.c.l.b16 %v763
        %v1785 = vunpack.c.l.b16 %v764
        %v1786 = vunpack.c.l.b16 %v765
        %v1787 = vunpack.c.l.b16 %v766
        %v1788 = vunpack.c.l.b16 %v767
        %v1789 = vunpack.c.l.b16 %v768
        %v1790 = vunpack.c.l.b16 %v769
        %v1791 = vunpack.c.l.b16 %v770
        %v1792 = vunpack.c.l.b16 %v771
        %v1793 = vunpack.c.l.b16 %v772
        %v1794 = vunpack.c.l.b16 %v773
        %v1795 = vunpack.c.l.b16 %v774
        %v1796 = vunpack.c.l.b16 %v775
        %v1797 = vunpack.c.l.b16 %v776
        %v1798 = vunpack.c.l.b16 %v777
        %v1799 = vunpack.c.l.b16 %v778
        %v1800 = vunpack.c.l.b16 %v779
        %v1801 = vunpack.c.l.b16 %v780
        %v1802 = vunpack.c.l.b16 %v781
        %v1803 = vunpack.c.l.b16 %v782
        %v1804 = vunpack.c.l.b16 %v783
        %v1805 = vunpack.c.l.b16 %v784
        %v1806 = vunpack.c.l.b16 %v785
        %v1807 = vunpack.c.l.b16 %v786
        %v1808 = vunpack.c.l.b16 %v787
        %v1809 = vunpack.c.l.b16 %v788
        %v1810 = vunpack.c.l.b16 %v789
        %v1811 = vunpack.c.l.b16 %v790
        %v1812 = vunpack.c.l.b16 %v791
        %v1813 = vunpack.c.l.b16 %v792
        %v1814 = vunpack.c.l.b16 %v793
        %v1815 = vunpack.c.l.b16 %v794
        %v1816 = vunpack.c.l.b16 %v795
        %v1817 = vunpack.c.l.b16 %v796
        %v1818 = vunpack.c.l.b16 %v797
        %v1819 = vunpack.c.l.b16 %v798
        %v1820 = vunpack.c.l.b16 %v799
        %v1821 = vunpack.c.l.b16 %v800
        %v1822 = vunpack.c.l.b16 %v801
        %v1823 = vunpack.c.l.b16 %v802
        %v1824 = vunpack.c.l.b16 %v803
        %v1825 = vunpack.c.l.b16 %v804
        %v1826 = vunpack.c.l.b16 %v805
        %v1827 = vunpack.c.l.b16 %v806
        %v1828 = vunpack.c.l.b16 %v807
        %v1829 = vpack.c.b16 %v1782, %v1781
        %v1830 = vpack.c.b16 %v1784, %v1783
        %v1831 = vpack.c.b16 %v1786, %v1785
        %v1832 = vpack.c.b16 %v1788, %v1787
        %v1833 = vpack.c.b16 %v1790, %v1789
        %v1834 = vpack.c.b16 %v1792, %v1791
        %v1835 = vpack.c.b16 %v1794, %v1793
        %v1836 = vpack.c.b16 %v1796, %v1795
        %v1837 = vpack.c.b16 %v1798, %v1797
        %v1838 = vpack.c.b16 %v1800, %v1799
        %v1839 = vpack.c.b16 %v1802, %v1801
        %v1840 = vpack.c.b16 %v1804, %v1803
        %v1841 = vpack.c.b16 %v1806, %v1805
        %v1842 = vpack.c.b16 %v1808, %v1807
        %v1843 = vpack.c.b16 %v1810, %v1809
        %v1844 = vpack.c.b16 %v1812, %v1811
        %v1845 = vpack.c.b16 %v1814, %v1813
        %v1846 = vpack.c.b16 %v1816, %v1815
        %v1847 = vpack.c.b16 %v1818, %v1817
        %v1848 = vpack.c.b16 %v1820, %v1819
        %v1849 = vpack.c.b16 %v1822, %v1821
        %v1850 = vpack.c.b16 %v1824, %v1823
        %v1851 = vpack.c.b16 %v1826, %v1825
        %v1852 = vpack.c.b16 %v1828, %v1827
        %1877 = vmatpush.bf16.msra.mxu0 %v1836
        %1878 = vmatpush.bf16.msra.mxu0 %v1835
        %1879 = vmatpush.bf16.msra.mxu0 %v1834
        %1880 = vmatpush.bf16.msra.mxu0 %v1833
        %1881 = vmatpush.bf16.msra.mxu0 %v1832
        %1882 = vmatpush.bf16.msra.mxu0 %v1831
        %1883 = vmatpush.bf16.msra.mxu0 %v1830
        %1884 = vmatpush.bf16.msra.mxu0 %v1829
        %1885 = vmatmul.bf16.gmra.mxu0 %v406
        %v1886 = vpop.f32.mrf.mxu0
        %v1887 = vadd.f32 %v1654, %v1886
        %v1888 = vpop.f32.mrf.mxu0
        %v1889 = vadd.f32 %v1656, %v1888
        %1890 = vmatmul.bf16.gmra.mxu0 %v407
        %v1891 = vpop.f32.mrf.mxu0
        %v1892 = vadd.f32 %v1659, %v1891
        %v1893 = vpop.f32.mrf.mxu0
        %v1894 = vadd.f32 %v1661, %v1893
        %1895 = vmatmul.bf16.gmra.mxu0 %v408
        %v1896 = vpop.f32.mrf.mxu0
        %v1897 = vadd.f32 %v1664, %v1896
        %v1898 = vpop.f32.mrf.mxu0
        %v1899 = vadd.f32 %v1666, %v1898
        %1900 = vmatmul.bf16.gmra.mxu0 %v409
        %v1901 = vpop.f32.mrf.mxu0
        %v1902 = vadd.f32 %v1669, %v1901
        %v1903 = vpop.f32.mrf.mxu0
        %v1904 = vadd.f32 %v1671, %v1903
        %1905 = vmatmul.bf16.gmra.mxu0 %v410
        %v1906 = vpop.f32.mrf.mxu0
        %v1907 = vadd.f32 %v1674, %v1906
        %v1908 = vpop.f32.mrf.mxu0
        %v1909 = vadd.f32 %v1676, %v1908
        %1910 = vmatmul.bf16.gmra.mxu0 %v411
        %v1911 = vpop.f32.mrf.mxu0
        %v1912 = vadd.f32 %v1679, %v1911
        %v1913 = vpop.f32.mrf.mxu0
        %v1914 = vadd.f32 %v1681, %v1913
        %1915 = vmatmul.bf16.gmra.mxu0 %v412
        %v1916 = vpop.f32.mrf.mxu0
        %v1917 = vadd.f32 %v1684, %v1916
        %v1918 = vpop.f32.mrf.mxu0
        %v1919 = vadd.f32 %v1686, %v1918
        %1920 = vmatmul.bf16.gmra.mxu0 %v413
        %v1921 = vpop.f32.mrf.mxu0
        %v1922 = vadd.f32 %v1689, %v1921
        %v1923 = vpop.f32.mrf.mxu0
        %v1924 = vadd.f32 %v1691, %v1923
        %1925 = vmatmul.bf16.gmra.mxu0 %v414
        %v1926 = vpop.f32.mrf.mxu0
        %v1927 = vadd.f32 %v1694, %v1926
        %v1928 = vpop.f32.mrf.mxu0
        %v1929 = vadd.f32 %v1696, %v1928
        %1930 = vmatmul.bf16.gmra.mxu0 %v415
        %v1931 = vpop.f32.mrf.mxu0
        %v1932 = vadd.f32 %v1699, %v1931
        %v1933 = vpop.f32.mrf.mxu0
        %v1934 = vadd.f32 %v1701, %v1933
        %1935 = vmatmul.bf16.gmra.mxu0 %v416
        %v1936 = vpop.f32.mrf.mxu0
        %v1937 = vadd.f32 %v1704, %v1936
        %v1938 = vpop.f32.mrf.mxu0
        %v1939 = vadd.f32 %v1706, %v1938
        %1940 = vmatmul.bf16.gmra.mxu0 %v417
        %v1941 = vpop.f32.mrf.mxu0
        %v1942 = vadd.f32 %v1709, %v1941
        %v1943 = vpop.f32.mrf.mxu0
        %v1944 = vadd.f32 %v1711, %v1943
        %1945 = vmatmul.bf16.gmra.mxu0 %v418
        %v1946 = vpop.f32.mrf.mxu0
        %v1947 = vadd.f32 %v1714, %v1946
        %v1948 = vpop.f32.mrf.mxu0
        %v1949 = vadd.f32 %v1716, %v1948
        %1950 = vmatmul.bf16.gmra.mxu0 %v419
        %v1951 = vpop.f32.mrf.mxu0
        %v1952 = vadd.f32 %v1719, %v1951
        %v1953 = vpop.f32.mrf.mxu0
        %v1954 = vadd.f32 %v1721, %v1953
        %1955 = vmatmul.bf16.gmra.mxu0 %v420
        %v1956 = vpop.f32.mrf.mxu0
        %v1957 = vadd.f32 %v1724, %v1956
        %v1958 = vpop.f32.mrf.mxu0
        %v1959 = vadd.f32 %v1726, %v1958
        %1960 = vmatmul.bf16.gmra.mxu0 %v421
        %v1961 = vpop.f32.mrf.mxu0
        %v1962 = vadd.f32 %v1729, %v1961
        %v1963 = vpop.f32.mrf.mxu0
        %v1964 = vadd.f32 %v1731, %v1963
        %1965 = vdwg.mxu0
        %1966 = vmatpush.bf16.msra.mxu0 %v1844
        %1967 = vmatpush.bf16.msra.mxu0 %v1843
        %1968 = vmatpush.bf16.msra.mxu0 %v1842
        %1969 = vmatpush.bf16.msra.mxu0 %v1841
        %1970 = vmatpush.bf16.msra.mxu0 %v1840
        %1971 = vmatpush.bf16.msra.mxu0 %v1839
        %1972 = vmatpush.bf16.msra.mxu0 %v1838
        %1973 = vmatpush.bf16.msra.mxu0 %v1837
        %1974 = vmatmul.bf16.gmra.mxu0 %v498
        %v1975 = vpop.f32.mrf.mxu0
        %v1976 = vadd.f32 %v1887, %v1975
        %v1977 = vpop.f32.mrf.mxu0
        %v1978 = vadd.f32 %v1889, %v1977
        %1979 = vmatmul.bf16.gmra.mxu0 %v510
        %v1980 = vpop.f32.mrf.mxu0
        %v1981 = vadd.f32 %v1892, %v1980
        %v1982 = vpop.f32.mrf.mxu0
        %v1983 = vadd.f32 %v1894, %v1982
        %1984 = vmatmul.bf16.gmra.mxu0 %v522
        %v1985 = vpop.f32.mrf.mxu0
        %v1986 = vadd.f32 %v1897, %v1985
        %v1987 = vpop.f32.mrf.mxu0
        %v1988 = vadd.f32 %v1899, %v1987
        %1989 = vmatmul.bf16.gmra.mxu0 %v534
        %v1990 = vpop.f32.mrf.mxu0
        %v1991 = vadd.f32 %v1902, %v1990
        %v1992 = vpop.f32.mrf.mxu0
        %v1993 = vadd.f32 %v1904, %v1992
        %1994 = vmatmul.bf16.gmra.mxu0 %v546
        %v1995 = vpop.f32.mrf.mxu0
        %v1996 = vadd.f32 %v1907, %v1995
        %v1997 = vpop.f32.mrf.mxu0
        %v1998 = vadd.f32 %v1909, %v1997
        %1999 = vmatmul.bf16.gmra.mxu0 %v558
        %v2000 = vpop.f32.mrf.mxu0
        %v2001 = vadd.f32 %v1912, %v2000
        %v2002 = vpop.f32.mrf.mxu0
        %v2003 = vadd.f32 %v1914, %v2002
        %2004 = vmatmul.bf16.gmra.mxu0 %v570
        %v2005 = vpop.f32.mrf.mxu0
        %v2006 = vadd.f32 %v1917, %v2005
        %v2007 = vpop.f32.mrf.mxu0
        %v2008 = vadd.f32 %v1919, %v2007
        %2009 = vmatmul.bf16.gmra.mxu0 %v582
        %v2010 = vpop.f32.mrf.mxu0
        %v2011 = vadd.f32 %v1922, %v2010
        %v2012 = vpop.f32.mrf.mxu0
        %v2013 = vadd.f32 %v1924, %v2012
        %2014 = vmatmul.bf16.gmra.mxu0 %v594
        %v2015 = vpop.f32.mrf.mxu0
        %v2016 = vadd.f32 %v1927, %v2015
        %v2017 = vpop.f32.mrf.mxu0
        %v2018 = vadd.f32 %v1929, %v2017
        %2019 = vmatmul.bf16.gmra.mxu0 %v606
        %v2020 = vpop.f32.mrf.mxu0
        %v2021 = vadd.f32 %v1932, %v2020
        %v2022 = vpop.f32.mrf.mxu0
        %v2023 = vadd.f32 %v1934, %v2022
        %2024 = vmatmul.bf16.gmra.mxu0 %v618
        %v2025 = vpop.f32.mrf.mxu0
        %v2026 = vadd.f32 %v1937, %v2025
        %v2027 = vpop.f32.mrf.mxu0
        %v2028 = vadd.f32 %v1939, %v2027
        %2029 = vmatmul.bf16.gmra.mxu0 %v630
        %v2030 = vpop.f32.mrf.mxu0
        %v2031 = vadd.f32 %v1942, %v2030
        %v2032 = vpop.f32.mrf.mxu0
        %v2033 = vadd.f32 %v1944, %v2032
        %2034 = vmatmul.bf16.gmra.mxu0 %v642
        %v2035 = vpop.f32.mrf.mxu0
        %v2036 = vadd.f32 %v1947, %v2035
        %v2037 = vpop.f32.mrf.mxu0
        %v2038 = vadd.f32 %v1949, %v2037
        %2039 = vmatmul.bf16.gmra.mxu0 %v654
        %v2040 = vpop.f32.mrf.mxu0
        %v2041 = vadd.f32 %v1952, %v2040
        %v2042 = vpop.f32.mrf.mxu0
        %v2043 = vadd.f32 %v1954, %v2042
        %2044 = vmatmul.bf16.gmra.mxu0 %v666
        %v2045 = vpop.f32.mrf.mxu0
        %v2046 = vadd.f32 %v1957, %v2045
        %v2047 = vpop.f32.mrf.mxu0
        %v2048 = vadd.f32 %v1959, %v2047
        %2049 = vmatmul.bf16.gmra.mxu0 %v678
        %v2050 = vpop.f32.mrf.mxu0
        %v2051 = vadd.f32 %v1962, %v2050
        %v2052 = vpop.f32.mrf.mxu0
        %v2053 = vadd.f32 %v1964, %v2052
        %2054 = vdwg.mxu0
        %2055 = vmatpush.bf16.msra.mxu0 %v1852
        %2056 = vmatpush.bf16.msra.mxu0 %v1851
        %2057 = vmatpush.bf16.msra.mxu0 %v1850
        %2058 = vmatpush.bf16.msra.mxu0 %v1849
        %2059 = vmatpush.bf16.msra.mxu0 %v1848
        %2060 = vmatpush.bf16.msra.mxu0 %v1847
        %2061 = vmatpush.bf16.msra.mxu0 %v1846
        %2062 = vmatpush.bf16.msra.mxu0 %v1845
        %2063 = vmatmul.bf16.gmra.mxu0 %v698
        %v2064 = vpop.f32.mrf.mxu0
        %v2065 = vadd.f32 %v1976, %v2064
        %v2066 = vpop.f32.mrf.mxu0
        %v2067 = vadd.f32 %v1978, %v2066
        %2068 = vmatmul.bf16.gmra.mxu0 %v701
        %v2069 = vpop.f32.mrf.mxu0
        %v2070 = vadd.f32 %v1981, %v2069
        %v2071 = vpop.f32.mrf.mxu0
        %v2072 = vadd.f32 %v1983, %v2071
        %2073 = vmatmul.bf16.gmra.mxu0 %v704
        %v2074 = vpop.f32.mrf.mxu0
        %v2075 = vadd.f32 %v1986, %v2074
        %v2076 = vpop.f32.mrf.mxu0
        %v2077 = vadd.f32 %v1988, %v2076
        %2078 = vmatmul.bf16.gmra.mxu0 %v707
        %v2079 = vpop.f32.mrf.mxu0
        %v2080 = vadd.f32 %v1991, %v2079
        %v2081 = vpop.f32.mrf.mxu0
        %v2082 = vadd.f32 %v1993, %v2081
        %2083 = vmatmul.bf16.gmra.mxu0 %v710
        %v2084 = vpop.f32.mrf.mxu0
        %v2085 = vadd.f32 %v1996, %v2084
        %v2086 = vpop.f32.mrf.mxu0
        %v2087 = vadd.f32 %v1998, %v2086
        %2088 = vmatmul.bf16.gmra.mxu0 %v713
        %v2089 = vpop.f32.mrf.mxu0
        %v2090 = vadd.f32 %v2001, %v2089
        %v2091 = vpop.f32.mrf.mxu0
        %v2092 = vadd.f32 %v2003, %v2091
        %2093 = vmatmul.bf16.gmra.mxu0 %v716
        %v2094 = vpop.f32.mrf.mxu0
        %v2095 = vadd.f32 %v2006, %v2094
        %v2096 = vpop.f32.mrf.mxu0
        %v2097 = vadd.f32 %v2008, %v2096
        %2098 = vmatmul.bf16.gmra.mxu0 %v719
        %v2099 = vpop.f32.mrf.mxu0
        %v2100 = vadd.f32 %v2011, %v2099
        %v2101 = vpop.f32.mrf.mxu0
        %v2102 = vadd.f32 %v2013, %v2101
        %2103 = vmatmul.bf16.gmra.mxu0 %v722
        %v2104 = vpop.f32.mrf.mxu0
        %v2105 = vadd.f32 %v2016, %v2104
        %v2106 = vpop.f32.mrf.mxu0
        %v2107 = vadd.f32 %v2018, %v2106
        %2108 = vmatmul.bf16.gmra.mxu0 %v725
        %v2109 = vpop.f32.mrf.mxu0
        %v2110 = vadd.f32 %v2021, %v2109
        %v2111 = vpop.f32.mrf.mxu0
        %v2112 = vadd.f32 %v2023, %v2111
        %2113 = vmatmul.bf16.gmra.mxu0 %v728
        %v2114 = vpop.f32.mrf.mxu0
        %v2115 = vadd.f32 %v2026, %v2114
        %v2116 = vpop.f32.mrf.mxu0
        %v2117 = vadd.f32 %v2028, %v2116
        %2118 = vmatmul.bf16.gmra.mxu0 %v731
        %v2119 = vpop.f32.mrf.mxu0
        %v2120 = vadd.f32 %v2031, %v2119
        %v2121 = vpop.f32.mrf.mxu0
        %v2122 = vadd.f32 %v2033, %v2121
        %2123 = vmatmul.bf16.gmra.mxu0 %v734
        %v2124 = vpop.f32.mrf.mxu0
        %v2125 = vadd.f32 %v2036, %v2124
        %v2126 = vpop.f32.mrf.mxu0
        %v2127 = vadd.f32 %v2038, %v2126
        %2128 = vmatmul.bf16.gmra.mxu0 %v737
        %v2129 = vpop.f32.mrf.mxu0
        %v2130 = vadd.f32 %v2041, %v2129
        %v2131 = vpop.f32.mrf.mxu0
        %v2132 = vadd.f32 %v2043, %v2131
        %2133 = vmatmul.bf16.gmra.mxu0 %v740
        %v2134 = vpop.f32.mrf.mxu0
        %v2135 = vadd.f32 %v2046, %v2134
        %v2136 = vpop.f32.mrf.mxu0
        %v2137 = vadd.f32 %v2048, %v2136
        %2138 = vmatmul.bf16.gmra.mxu0 %v743
        %v2139 = vpop.f32.mrf.mxu0
        %v2140 = vadd.f32 %v2051, %v2139
        %v2141 = vpop.f32.mrf.mxu0
        %v2142 = vadd.f32 %v2053, %v2141
        %2143 = vdwg.mxu0
        %s2144 = scalar_lea.vmem %s293, 24
        %v2145 = vld [vmem:[%s2144] sm:$0xf]
        %v2146 = vld [vmem:[%s2144 + $0x4] sm:$0xf]
        %v2147 = vld [vmem:[%s2144 + $0x8] sm:$0x1]
        %v2148 = vld [vmem:[%s2144 + $0xc] sm:$0xf]
        %v2149 = vld [vmem:[%s2144 + $0x10] sm:$0xf]
        %v2150 = vld [vmem:[%s2144 + $0x14] sm:$0x1]
        %v2151 = vld [vmem:[%s2144 + $0x18] sm:$0xf]
        %v2152 = vld [vmem:[%s2144 + $0x1c] sm:$0xf]
        %v2153 = vld [vmem:[%s2144 + $0x20] sm:$0x1]
        %v2154 = vld [vmem:[%s2144 + $0x24] sm:$0xf]
        %v2155 = vld [vmem:[%s2144 + $0x28] sm:$0xf]
        %v2156 = vld [vmem:[%s2144 + $0x2c] sm:$0x1]
        %v2157 = vld [vmem:[%s2144 + $0x30] sm:$0xf]
        %v2158 = vld [vmem:[%s2144 + $0x34] sm:$0xf]
        %v2159 = vld [vmem:[%s2144 + $0x38] sm:$0x1]
        %v2160 = vld [vmem:[%s2144 + $0x3c] sm:$0xf]
        %v2161 = vld [vmem:[%s2144 + $0x40] sm:$0xf]
        %v2162 = vld [vmem:[%s2144 + $0x44] sm:$0x1]
        %v2163 = vld [vmem:[%s2144 + $0x48] sm:$0xf]
        %v2164 = vld [vmem:[%s2144 + $0x4c] sm:$0xf]
        %v2165 = vld [vmem:[%s2144 + $0x50] sm:$0x1]
        %v2166 = vld [vmem:[%s2144 + $0x54] sm:$0xf]
        %v2167 = vld [vmem:[%s2144 + $0x58] sm:$0xf]
        %v2168 = vld [vmem:[%s2144 + $0x5c] sm:$0x1]
        %v2169 = vld [vmem:[%s2144 + $0x60] sm:$0xf]
        %v2170 = vld [vmem:[%s2144 + $0x64] sm:$0xf]
        %v2171 = vld [vmem:[%s2144 + $0x68] sm:$0x1]
        %v2172 = vld [vmem:[%s2144 + $0x6c] sm:$0xf]
        %v2173 = vld [vmem:[%s2144 + $0x70] sm:$0xf]
        %v2174 = vld [vmem:[%s2144 + $0x74] sm:$0x1]
        %v2175 = vld [vmem:[%s2144 + $0x78] sm:$0xf]
        %v2176 = vld [vmem:[%s2144 + $0x7c] sm:$0xf]
        %v2177 = vld [vmem:[%s2144 + $0x80] sm:$0x1]
        %v2178 = vld [vmem:[%s2144 + $0x84] sm:$0xf]
        %v2179 = vld [vmem:[%s2144 + $0x88] sm:$0xf]
        %v2180 = vld [vmem:[%s2144 + $0x8c] sm:$0x1]
        %v2181 = vld [vmem:[%s2144 + $0x90] sm:$0xf]
        %v2182 = vld [vmem:[%s2144 + $0x94] sm:$0xf]
        %v2183 = vld [vmem:[%s2144 + $0x98] sm:$0x1]
        %v2184 = vld [vmem:[%s2144 + $0x9c] sm:$0xf]
        %v2185 = vld [vmem:[%s2144 + $0xa0] sm:$0xf]
        %v2186 = vld [vmem:[%s2144 + $0xa4] sm:$0x1]
        %v2187 = vld [vmem:[%s2144 + $0xa8] sm:$0xf]
        %v2188 = vld [vmem:[%s2144 + $0xac] sm:$0xf]
        %v2189 = vld [vmem:[%s2144 + $0xb0] sm:$0x1]
        %v2190 = vld [vmem:[%s2144 + $0xb4] sm:$0xf]
        %v2191 = vld [vmem:[%s2144 + $0xb8] sm:$0xf]
        %v2192 = vld [vmem:[%s2144 + $0xbc] sm:$0x1]
        %v2225 = vunpack.c.l.b16 %v2145
        %v2226 = vunpack.c.l.b16 %v2146
        %v2227 = vunpack.c.l.b16 %v2148
        %v2228 = vunpack.c.l.b16 %v2149
        %v2229 = vunpack.c.l.b16 %v2151
        %v2230 = vunpack.c.l.b16 %v2152
        %v2231 = vunpack.c.l.b16 %v2154
        %v2232 = vunpack.c.l.b16 %v2155
        %v2233 = vunpack.c.l.b16 %v2157
        %v2234 = vunpack.c.l.b16 %v2158
        %v2235 = vunpack.c.l.b16 %v2160
        %v2236 = vunpack.c.l.b16 %v2161
        %v2237 = vunpack.c.l.b16 %v2163
        %v2238 = vunpack.c.l.b16 %v2164
        %v2239 = vunpack.c.l.b16 %v2166
        %v2240 = vunpack.c.l.b16 %v2167
        %v2241 = vunpack.c.l.b16 %v2169
        %v2242 = vunpack.c.l.b16 %v2170
        %v2243 = vunpack.c.l.b16 %v2172
        %v2244 = vunpack.c.l.b16 %v2173
        %v2245 = vunpack.c.l.b16 %v2175
        %v2246 = vunpack.c.l.b16 %v2176
        %v2247 = vunpack.c.l.b16 %v2178
        %v2248 = vunpack.c.l.b16 %v2179
        %v2249 = vunpack.c.l.b16 %v2181
        %v2250 = vunpack.c.l.b16 %v2182
        %v2251 = vunpack.c.l.b16 %v2184
        %v2252 = vunpack.c.l.b16 %v2185
        %v2253 = vunpack.c.l.b16 %v2187
        %v2254 = vunpack.c.l.b16 %v2188
        %v2255 = vunpack.c.l.b16 %v2190
        %v2256 = vunpack.c.l.b16 %v2191
        %v2257 = vpack.c.b16 %v2226, %v2225
        %v2258 = vpack.c.b16 %v2228, %v2227
        %v2259 = vpack.c.b16 %v2230, %v2229
        %v2260 = vpack.c.b16 %v2232, %v2231
        %v2261 = vpack.c.b16 %v2234, %v2233
        %v2262 = vpack.c.b16 %v2236, %v2235
        %v2263 = vpack.c.b16 %v2238, %v2237
        %v2264 = vpack.c.b16 %v2240, %v2239
        %v2265 = vpack.c.b16 %v2242, %v2241
        %v2266 = vpack.c.b16 %v2244, %v2243
        %v2267 = vpack.c.b16 %v2246, %v2245
        %v2268 = vpack.c.b16 %v2248, %v2247
        %v2269 = vpack.c.b16 %v2250, %v2249
        %v2270 = vpack.c.b16 %v2252, %v2251
        %v2271 = vpack.c.b16 %v2254, %v2253
        %v2272 = vpack.c.b16 %v2256, %v2255
        %v2305 = vunpack.c.l.b16 %v2147
        %v2306 = vunpack.c.l.b16 %v2150
        %v2307 = vunpack.c.l.b16 %v2153
        %v2308 = vunpack.c.l.b16 %v2156
        %v2309 = vunpack.c.l.b16 %v2159
        %v2310 = vunpack.c.l.b16 %v2162
        %v2311 = vunpack.c.l.b16 %v2165
        %v2312 = vunpack.c.l.b16 %v2168
        %v2313 = vunpack.c.l.b16 %v2171
        %v2314 = vunpack.c.l.b16 %v2174
        %v2315 = vunpack.c.l.b16 %v2177
        %v2316 = vunpack.c.l.b16 %v2180
        %v2317 = vunpack.c.l.b16 %v2183
        %v2318 = vunpack.c.l.b16 %v2186
        %v2319 = vunpack.c.l.b16 %v2189
        %v2320 = vunpack.c.l.b16 %v2192
        %v2321 = vpack.c.b16 %v2305, %v2305
        %v2322 = vpack.c.b16 %v2306, %v2306
        %v2323 = vpack.c.b16 %v2307, %v2307
        %v2324 = vpack.c.b16 %v2308, %v2308
        %v2325 = vpack.c.b16 %v2309, %v2309
        %v2326 = vpack.c.b16 %v2310, %v2310
        %v2327 = vpack.c.b16 %v2311, %v2311
        %v2328 = vpack.c.b16 %v2312, %v2312
        %v2329 = vpack.c.b16 %v2313, %v2313
        %v2330 = vpack.c.b16 %v2314, %v2314
        %v2331 = vpack.c.b16 %v2315, %v2315
        %v2332 = vpack.c.b16 %v2316, %v2316
        %v2333 = vpack.c.b16 %v2317, %v2317
        %v2334 = vpack.c.b16 %v2318, %v2318
        %v2335 = vpack.c.b16 %v2319, %v2319
        %v2336 = vpack.c.b16 %v2320, %v2320
        %v2338 = vshrl.u32 %v2257, 16
        %v2340 = vshll.u32 %v2257, 16
        %v2342 = vrot.slane %v2340, 1
        %v2343 = vor.u32 %v2338, %v2342
        %v2345 = vshll.u32 %v2321, 16
        %v2347 = vrot.slane %v2345, 1
        %v2348 = vsel %vm486, %v2343, %v2347
        %v2350 = vshrl.u32 %v2258, 16
        %v2352 = vshll.u32 %v2258, 16
        %v2354 = vrot.slane %v2352, 1
        %v2355 = vor.u32 %v2350, %v2354
        %v2357 = vshll.u32 %v2322, 16
        %v2359 = vrot.slane %v2357, 1
        %v2360 = vsel %vm486, %v2355, %v2359
        %v2362 = vshrl.u32 %v2259, 16
        %v2364 = vshll.u32 %v2259, 16
        %v2366 = vrot.slane %v2364, 1
        %v2367 = vor.u32 %v2362, %v2366
        %v2369 = vshll.u32 %v2323, 16
        %v2371 = vrot.slane %v2369, 1
        %v2372 = vsel %vm486, %v2367, %v2371
        %v2374 = vshrl.u32 %v2260, 16
        %v2376 = vshll.u32 %v2260, 16
        %v2378 = vrot.slane %v2376, 1
        %v2379 = vor.u32 %v2374, %v2378
        %v2381 = vshll.u32 %v2324, 16
        %v2383 = vrot.slane %v2381, 1
        %v2384 = vsel %vm486, %v2379, %v2383
        %v2386 = vshrl.u32 %v2261, 16
        %v2388 = vshll.u32 %v2261, 16
        %v2390 = vrot.slane %v2388, 1
        %v2391 = vor.u32 %v2386, %v2390
        %v2393 = vshll.u32 %v2325, 16
        %v2395 = vrot.slane %v2393, 1
        %v2396 = vsel %vm486, %v2391, %v2395
        %v2398 = vshrl.u32 %v2262, 16
        %v2400 = vshll.u32 %v2262, 16
        %v2402 = vrot.slane %v2400, 1
        %v2403 = vor.u32 %v2398, %v2402
        %v2405 = vshll.u32 %v2326, 16
        %v2407 = vrot.slane %v2405, 1
        %v2408 = vsel %vm486, %v2403, %v2407
        %v2410 = vshrl.u32 %v2263, 16
        %v2412 = vshll.u32 %v2263, 16
        %v2414 = vrot.slane %v2412, 1
        %v2415 = vor.u32 %v2410, %v2414
        %v2417 = vshll.u32 %v2327, 16
        %v2419 = vrot.slane %v2417, 1
        %v2420 = vsel %vm486, %v2415, %v2419
        %v2422 = vshrl.u32 %v2264, 16
        %v2424 = vshll.u32 %v2264, 16
        %v2426 = vrot.slane %v2424, 1
        %v2427 = vor.u32 %v2422, %v2426
        %v2429 = vshll.u32 %v2328, 16
        %v2431 = vrot.slane %v2429, 1
        %v2432 = vsel %vm486, %v2427, %v2431
        %v2434 = vshrl.u32 %v2265, 16
        %v2436 = vshll.u32 %v2265, 16
        %v2438 = vrot.slane %v2436, 1
        %v2439 = vor.u32 %v2434, %v2438
        %v2441 = vshll.u32 %v2329, 16
        %v2443 = vrot.slane %v2441, 1
        %v2444 = vsel %vm486, %v2439, %v2443
        %v2446 = vshrl.u32 %v2266, 16
        %v2448 = vshll.u32 %v2266, 16
        %v2450 = vrot.slane %v2448, 1
        %v2451 = vor.u32 %v2446, %v2450
        %v2453 = vshll.u32 %v2330, 16
        %v2455 = vrot.slane %v2453, 1
        %v2456 = vsel %vm486, %v2451, %v2455
        %v2458 = vshrl.u32 %v2267, 16
        %v2460 = vshll.u32 %v2267, 16
        %v2462 = vrot.slane %v2460, 1
        %v2463 = vor.u32 %v2458, %v2462
        %v2465 = vshll.u32 %v2331, 16
        %v2467 = vrot.slane %v2465, 1
        %v2468 = vsel %vm486, %v2463, %v2467
        %v2470 = vshrl.u32 %v2268, 16
        %v2472 = vshll.u32 %v2268, 16
        %v2474 = vrot.slane %v2472, 1
        %v2475 = vor.u32 %v2470, %v2474
        %v2477 = vshll.u32 %v2332, 16
        %v2479 = vrot.slane %v2477, 1
        %v2480 = vsel %vm486, %v2475, %v2479
        %v2482 = vshrl.u32 %v2269, 16
        %v2484 = vshll.u32 %v2269, 16
        %v2486 = vrot.slane %v2484, 1
        %v2487 = vor.u32 %v2482, %v2486
        %v2489 = vshll.u32 %v2333, 16
        %v2491 = vrot.slane %v2489, 1
        %v2492 = vsel %vm486, %v2487, %v2491
        %v2494 = vshrl.u32 %v2270, 16
        %v2496 = vshll.u32 %v2270, 16
        %v2498 = vrot.slane %v2496, 1
        %v2499 = vor.u32 %v2494, %v2498
        %v2501 = vshll.u32 %v2334, 16
        %v2503 = vrot.slane %v2501, 1
        %v2504 = vsel %vm486, %v2499, %v2503
        %v2506 = vshrl.u32 %v2271, 16
        %v2508 = vshll.u32 %v2271, 16
        %v2510 = vrot.slane %v2508, 1
        %v2511 = vor.u32 %v2506, %v2510
        %v2513 = vshll.u32 %v2335, 16
        %v2515 = vrot.slane %v2513, 1
        %v2516 = vsel %vm486, %v2511, %v2515
        %v2518 = vshrl.u32 %v2272, 16
        %v2520 = vshll.u32 %v2272, 16
        %v2522 = vrot.slane %v2520, 1
        %v2523 = vor.u32 %v2518, %v2522
        %v2525 = vshll.u32 %v2336, 16
        %v2527 = vrot.slane %v2525, 1
        %v2528 = vsel %vm486, %v2523, %v2527
        %v2545 = vrot.slane %v2257, 1
        %v2546 = vrot.slane %v2321, 1
        %v2547 = vsel %vm695, %v2545, %v2546
        %v2548 = vrot.slane %v2258, 1
        %v2549 = vrot.slane %v2322, 1
        %v2550 = vsel %vm695, %v2548, %v2549
        %v2551 = vrot.slane %v2259, 1
        %v2552 = vrot.slane %v2323, 1
        %v2553 = vsel %vm695, %v2551, %v2552
        %v2554 = vrot.slane %v2260, 1
        %v2555 = vrot.slane %v2324, 1
        %v2556 = vsel %vm695, %v2554, %v2555
        %v2557 = vrot.slane %v2261, 1
        %v2558 = vrot.slane %v2325, 1
        %v2559 = vsel %vm695, %v2557, %v2558
        %v2560 = vrot.slane %v2262, 1
        %v2561 = vrot.slane %v2326, 1
        %v2562 = vsel %vm695, %v2560, %v2561
        %v2563 = vrot.slane %v2263, 1
        %v2564 = vrot.slane %v2327, 1
        %v2565 = vsel %vm695, %v2563, %v2564
        %v2566 = vrot.slane %v2264, 1
        %v2567 = vrot.slane %v2328, 1
        %v2568 = vsel %vm695, %v2566, %v2567
        %v2569 = vrot.slane %v2265, 1
        %v2570 = vrot.slane %v2329, 1
        %v2571 = vsel %vm695, %v2569, %v2570
        %v2572 = vrot.slane %v2266, 1
        %v2573 = vrot.slane %v2330, 1
        %v2574 = vsel %vm695, %v2572, %v2573
        %v2575 = vrot.slane %v2267, 1
        %v2576 = vrot.slane %v2331, 1
        %v2577 = vsel %vm695, %v2575, %v2576
        %v2578 = vrot.slane %v2268, 1
        %v2579 = vrot.slane %v2332, 1
        %v2580 = vsel %vm695, %v2578, %v2579
        %v2581 = vrot.slane %v2269, 1
        %v2582 = vrot.slane %v2333, 1
        %v2583 = vsel %vm695, %v2581, %v2582
        %v2584 = vrot.slane %v2270, 1
        %v2585 = vrot.slane %v2334, 1
        %v2586 = vsel %vm695, %v2584, %v2585
        %v2587 = vrot.slane %v2271, 1
        %v2588 = vrot.slane %v2335, 1
        %v2589 = vsel %vm695, %v2587, %v2588
        %v2590 = vrot.slane %v2272, 1
        %v2591 = vrot.slane %v2336, 1
        %v2592 = vsel %vm695, %v2590, %v2591
        %s2609 = scalar_lea.vmem %s1, 384
        %v2610 = vld [vmem:[%s2609] sm:$0xf]
        %v2611 = vld [vmem:[%s2609 + $0x4] sm:$0xf]
        %v2612 = vld [vmem:[%s2609 + $0x8] sm:$0xf]
        %v2613 = vld [vmem:[%s2609 + $0xc] sm:$0xf]
        %v2614 = vld [vmem:[%s2609 + $0x10] sm:$0xf]
        %v2615 = vld [vmem:[%s2609 + $0x14] sm:$0xf]
        %v2616 = vld [vmem:[%s2609 + $0x18] sm:$0xf]
        %v2617 = vld [vmem:[%s2609 + $0x1c] sm:$0xf]
        %v2618 = vld [vmem:[%s2609 + $0x20] sm:$0xf]
        %v2619 = vld [vmem:[%s2609 + $0x24] sm:$0xf]
        %v2620 = vld [vmem:[%s2609 + $0x28] sm:$0xf]
        %v2621 = vld [vmem:[%s2609 + $0x2c] sm:$0xf]
        %v2622 = vld [vmem:[%s2609 + $0x30] sm:$0xf]
        %v2623 = vld [vmem:[%s2609 + $0x34] sm:$0xf]
        %v2624 = vld [vmem:[%s2609 + $0x38] sm:$0xf]
        %v2625 = vld [vmem:[%s2609 + $0x3c] sm:$0xf]
        %v2626 = vld [vmem:[%s2609 + $0x40] sm:$0xf]
        %v2627 = vld [vmem:[%s2609 + $0x44] sm:$0xf]
        %v2628 = vld [vmem:[%s2609 + $0x48] sm:$0xf]
        %v2629 = vld [vmem:[%s2609 + $0x4c] sm:$0xf]
        %v2630 = vld [vmem:[%s2609 + $0x50] sm:$0xf]
        %v2631 = vld [vmem:[%s2609 + $0x54] sm:$0xf]
        %v2632 = vld [vmem:[%s2609 + $0x58] sm:$0xf]
        %v2633 = vld [vmem:[%s2609 + $0x5c] sm:$0xf]
        %v2634 = vld [vmem:[%s2609 + $0x60] sm:$0xf]
        %v2635 = vld [vmem:[%s2609 + $0x64] sm:$0xf]
        %v2636 = vld [vmem:[%s2609 + $0x68] sm:$0xf]
        %v2637 = vld [vmem:[%s2609 + $0x6c] sm:$0xf]
        %v2638 = vld [vmem:[%s2609 + $0x70] sm:$0xf]
        %v2639 = vld [vmem:[%s2609 + $0x74] sm:$0xf]
        %v2640 = vld [vmem:[%s2609 + $0x78] sm:$0xf]
        %v2641 = vld [vmem:[%s2609 + $0x7c] sm:$0xf]
        %v2642 = vld [vmem:[%s2609 + $0x80] sm:$0xf]
        %v2643 = vld [vmem:[%s2609 + $0x84] sm:$0xf]
        %v2644 = vld [vmem:[%s2609 + $0x88] sm:$0xf]
        %v2645 = vld [vmem:[%s2609 + $0x8c] sm:$0xf]
        %v2646 = vld [vmem:[%s2609 + $0x90] sm:$0xf]
        %v2647 = vld [vmem:[%s2609 + $0x94] sm:$0xf]
        %v2648 = vld [vmem:[%s2609 + $0x98] sm:$0xf]
        %v2649 = vld [vmem:[%s2609 + $0x9c] sm:$0xf]
        %v2650 = vld [vmem:[%s2609 + $0xa0] sm:$0xf]
        %v2651 = vld [vmem:[%s2609 + $0xa4] sm:$0xf]
        %v2652 = vld [vmem:[%s2609 + $0xa8] sm:$0xf]
        %v2653 = vld [vmem:[%s2609 + $0xac] sm:$0xf]
        %v2654 = vld [vmem:[%s2609 + $0xb0] sm:$0xf]
        %v2655 = vld [vmem:[%s2609 + $0xb4] sm:$0xf]
        %v2656 = vld [vmem:[%s2609 + $0xb8] sm:$0xf]
        %v2657 = vld [vmem:[%s2609 + $0xbc] sm:$0xf]
        %v2706 = vunpack.c.l.b16 %v2610
        %v2707 = vunpack.c.l.b16 %v2611
        %v2708 = vunpack.c.l.b16 %v2612
        %v2709 = vunpack.c.l.b16 %v2613
        %v2710 = vunpack.c.l.b16 %v2614
        %v2711 = vunpack.c.l.b16 %v2615
        %v2712 = vunpack.c.l.b16 %v2616
        %v2713 = vunpack.c.l.b16 %v2617
        %v2714 = vunpack.c.l.b16 %v2618
        %v2715 = vunpack.c.l.b16 %v2619
        %v2716 = vunpack.c.l.b16 %v2620
        %v2717 = vunpack.c.l.b16 %v2621
        %v2718 = vunpack.c.l.b16 %v2622
        %v2719 = vunpack.c.l.b16 %v2623
        %v2720 = vunpack.c.l.b16 %v2624
        %v2721 = vunpack.c.l.b16 %v2625
        %v2722 = vunpack.c.l.b16 %v2626
        %v2723 = vunpack.c.l.b16 %v2627
        %v2724 = vunpack.c.l.b16 %v2628
        %v2725 = vunpack.c.l.b16 %v2629
        %v2726 = vunpack.c.l.b16 %v2630
        %v2727 = vunpack.c.l.b16 %v2631
        %v2728 = vunpack.c.l.b16 %v2632
        %v2729 = vunpack.c.l.b16 %v2633
        %v2730 = vunpack.c.l.b16 %v2634
        %v2731 = vunpack.c.l.b16 %v2635
        %v2732 = vunpack.c.l.b16 %v2636
        %v2733 = vunpack.c.l.b16 %v2637
        %v2734 = vunpack.c.l.b16 %v2638
        %v2735 = vunpack.c.l.b16 %v2639
        %v2736 = vunpack.c.l.b16 %v2640
        %v2737 = vunpack.c.l.b16 %v2641
        %v2738 = vunpack.c.l.b16 %v2642
        %v2739 = vunpack.c.l.b16 %v2643
        %v2740 = vunpack.c.l.b16 %v2644
        %v2741 = vunpack.c.l.b16 %v2645
        %v2742 = vunpack.c.l.b16 %v2646
        %v2743 = vunpack.c.l.b16 %v2647
        %v2744 = vunpack.c.l.b16 %v2648
        %v2745 = vunpack.c.l.b16 %v2649
        %v2746 = vunpack.c.l.b16 %v2650
        %v2747 = vunpack.c.l.b16 %v2651
        %v2748 = vunpack.c.l.b16 %v2652
        %v2749 = vunpack.c.l.b16 %v2653
        %v2750 = vunpack.c.l.b16 %v2654
        %v2751 = vunpack.c.l.b16 %v2655
        %v2752 = vunpack.c.l.b16 %v2656
        %v2753 = vunpack.c.l.b16 %v2657
        %v2754 = vpack.c.b16 %v2707, %v2706
        %v2755 = vpack.c.b16 %v2709, %v2708
        %v2756 = vpack.c.b16 %v2711, %v2710
        %v2757 = vpack.c.b16 %v2713, %v2712
        %v2758 = vpack.c.b16 %v2715, %v2714
        %v2759 = vpack.c.b16 %v2717, %v2716
        %v2760 = vpack.c.b16 %v2719, %v2718
        %v2761 = vpack.c.b16 %v2721, %v2720
        %v2762 = vpack.c.b16 %v2723, %v2722
        %v2763 = vpack.c.b16 %v2725, %v2724
        %v2764 = vpack.c.b16 %v2727, %v2726
        %v2765 = vpack.c.b16 %v2729, %v2728
        %v2766 = vpack.c.b16 %v2731, %v2730
        %v2767 = vpack.c.b16 %v2733, %v2732
        %v2768 = vpack.c.b16 %v2735, %v2734
        %v2769 = vpack.c.b16 %v2737, %v2736
        %v2770 = vpack.c.b16 %v2739, %v2738
        %v2771 = vpack.c.b16 %v2741, %v2740
        %v2772 = vpack.c.b16 %v2743, %v2742
        %v2773 = vpack.c.b16 %v2745, %v2744
        %v2774 = vpack.c.b16 %v2747, %v2746
        %v2775 = vpack.c.b16 %v2749, %v2748
        %v2776 = vpack.c.b16 %v2751, %v2750
        %v2777 = vpack.c.b16 %v2753, %v2752
        %2802 = vmatpush.bf16.msra.mxu0 %v2761
        %2803 = vmatpush.bf16.msra.mxu0 %v2760
        %2804 = vmatpush.bf16.msra.mxu0 %v2759
        %2805 = vmatpush.bf16.msra.mxu0 %v2758
        %2806 = vmatpush.bf16.msra.mxu0 %v2757
        %2807 = vmatpush.bf16.msra.mxu0 %v2756
        %2808 = vmatpush.bf16.msra.mxu0 %v2755
        %2809 = vmatpush.bf16.msra.mxu0 %v2754
        %2810 = vmatmul.bf16.gmra.mxu0 %v2257
        %v2811 = vpop.f32.mrf.mxu0
        %v2812 = vadd.f32 0.0, %v2811
        %v2813 = vpop.f32.mrf.mxu0
        %v2814 = vadd.f32 0.0, %v2813
        %2815 = vmatmul.bf16.gmra.mxu0 %v2258
        %v2816 = vpop.f32.mrf.mxu0
        %v2817 = vadd.f32 0.0, %v2816
        %v2818 = vpop.f32.mrf.mxu0
        %v2819 = vadd.f32 0.0, %v2818
        %2820 = vmatmul.bf16.gmra.mxu0 %v2259
        %v2821 = vpop.f32.mrf.mxu0
        %v2822 = vadd.f32 0.0, %v2821
        %v2823 = vpop.f32.mrf.mxu0
        %v2824 = vadd.f32 0.0, %v2823
        %2825 = vmatmul.bf16.gmra.mxu0 %v2260
        %v2826 = vpop.f32.mrf.mxu0
        %v2827 = vadd.f32 0.0, %v2826
        %v2828 = vpop.f32.mrf.mxu0
        %v2829 = vadd.f32 0.0, %v2828
        %2830 = vmatmul.bf16.gmra.mxu0 %v2261
        %v2831 = vpop.f32.mrf.mxu0
        %v2832 = vadd.f32 0.0, %v2831
        %v2833 = vpop.f32.mrf.mxu0
        %v2834 = vadd.f32 0.0, %v2833
        %2835 = vmatmul.bf16.gmra.mxu0 %v2262
        %v2836 = vpop.f32.mrf.mxu0
        %v2837 = vadd.f32 0.0, %v2836
        %v2838 = vpop.f32.mrf.mxu0
        %v2839 = vadd.f32 0.0, %v2838
        %2840 = vmatmul.bf16.gmra.mxu0 %v2263
        %v2841 = vpop.f32.mrf.mxu0
        %v2842 = vadd.f32 0.0, %v2841
        %v2843 = vpop.f32.mrf.mxu0
        %v2844 = vadd.f32 0.0, %v2843
        %2845 = vmatmul.bf16.gmra.mxu0 %v2264
        %v2846 = vpop.f32.mrf.mxu0
        %v2847 = vadd.f32 0.0, %v2846
        %v2848 = vpop.f32.mrf.mxu0
        %v2849 = vadd.f32 0.0, %v2848
        %2850 = vmatmul.bf16.gmra.mxu0 %v2265
        %v2851 = vpop.f32.mrf.mxu0
        %v2852 = vadd.f32 0.0, %v2851
        %v2853 = vpop.f32.mrf.mxu0
        %v2854 = vadd.f32 0.0, %v2853
        %2855 = vmatmul.bf16.gmra.mxu0 %v2266
        %v2856 = vpop.f32.mrf.mxu0
        %v2857 = vadd.f32 0.0, %v2856
        %v2858 = vpop.f32.mrf.mxu0
        %v2859 = vadd.f32 0.0, %v2858
        %2860 = vmatmul.bf16.gmra.mxu0 %v2267
        %v2861 = vpop.f32.mrf.mxu0
        %v2862 = vadd.f32 0.0, %v2861
        %v2863 = vpop.f32.mrf.mxu0
        %v2864 = vadd.f32 0.0, %v2863
        %2865 = vmatmul.bf16.gmra.mxu0 %v2268
        %v2866 = vpop.f32.mrf.mxu0
        %v2867 = vadd.f32 0.0, %v2866
        %v2868 = vpop.f32.mrf.mxu0
        %v2869 = vadd.f32 0.0, %v2868
        %2870 = vmatmul.bf16.gmra.mxu0 %v2269
        %v2871 = vpop.f32.mrf.mxu0
        %v2872 = vadd.f32 0.0, %v2871
        %v2873 = vpop.f32.mrf.mxu0
        %v2874 = vadd.f32 0.0, %v2873
        %2875 = vmatmul.bf16.gmra.mxu0 %v2270
        %v2876 = vpop.f32.mrf.mxu0
        %v2877 = vadd.f32 0.0, %v2876
        %v2878 = vpop.f32.mrf.mxu0
        %v2879 = vadd.f32 0.0, %v2878
        %2880 = vmatmul.bf16.gmra.mxu0 %v2271
        %v2881 = vpop.f32.mrf.mxu0
        %v2882 = vadd.f32 0.0, %v2881
        %v2883 = vpop.f32.mrf.mxu0
        %v2884 = vadd.f32 0.0, %v2883
        %2885 = vmatmul.bf16.gmra.mxu0 %v2272
        %v2886 = vpop.f32.mrf.mxu0
        %v2887 = vadd.f32 0.0, %v2886
        %v2888 = vpop.f32.mrf.mxu0
        %v2889 = vadd.f32 0.0, %v2888
        %2890 = vdwg.mxu0
        %2891 = vmatpush.bf16.msra.mxu0 %v2769
        %2892 = vmatpush.bf16.msra.mxu0 %v2768
        %2893 = vmatpush.bf16.msra.mxu0 %v2767
        %2894 = vmatpush.bf16.msra.mxu0 %v2766
        %2895 = vmatpush.bf16.msra.mxu0 %v2765
        %2896 = vmatpush.bf16.msra.mxu0 %v2764
        %2897 = vmatpush.bf16.msra.mxu0 %v2763
        %2898 = vmatpush.bf16.msra.mxu0 %v2762
        %2899 = vmatmul.bf16.gmra.mxu0 %v2348
        %v2900 = vpop.f32.mrf.mxu0
        %v2901 = vadd.f32 %v2812, %v2900
        %v2902 = vpop.f32.mrf.mxu0
        %v2903 = vadd.f32 %v2814, %v2902
        %2904 = vmatmul.bf16.gmra.mxu0 %v2360
        %v2905 = vpop.f32.mrf.mxu0
        %v2906 = vadd.f32 %v2817, %v2905
        %v2907 = vpop.f32.mrf.mxu0
        %v2908 = vadd.f32 %v2819, %v2907
        %2909 = vmatmul.bf16.gmra.mxu0 %v2372
        %v2910 = vpop.f32.mrf.mxu0
        %v2911 = vadd.f32 %v2822, %v2910
        %v2912 = vpop.f32.mrf.mxu0
        %v2913 = vadd.f32 %v2824, %v2912
        %2914 = vmatmul.bf16.gmra.mxu0 %v2384
        %v2915 = vpop.f32.mrf.mxu0
        %v2916 = vadd.f32 %v2827, %v2915
        %v2917 = vpop.f32.mrf.mxu0
        %v2918 = vadd.f32 %v2829, %v2917
        %2919 = vmatmul.bf16.gmra.mxu0 %v2396
        %v2920 = vpop.f32.mrf.mxu0
        %v2921 = vadd.f32 %v2832, %v2920
        %v2922 = vpop.f32.mrf.mxu0
        %v2923 = vadd.f32 %v2834, %v2922
        %2924 = vmatmul.bf16.gmra.mxu0 %v2408
        %v2925 = vpop.f32.mrf.mxu0
        %v2926 = vadd.f32 %v2837, %v2925
        %v2927 = vpop.f32.mrf.mxu0
        %v2928 = vadd.f32 %v2839, %v2927
        %2929 = vmatmul.bf16.gmra.mxu0 %v2420
        %v2930 = vpop.f32.mrf.mxu0
        %v2931 = vadd.f32 %v2842, %v2930
        %v2932 = vpop.f32.mrf.mxu0
        %v2933 = vadd.f32 %v2844, %v2932
        %2934 = vmatmul.bf16.gmra.mxu0 %v2432
        %v2935 = vpop.f32.mrf.mxu0
        %v2936 = vadd.f32 %v2847, %v2935
        %v2937 = vpop.f32.mrf.mxu0
        %v2938 = vadd.f32 %v2849, %v2937
        %2939 = vmatmul.bf16.gmra.mxu0 %v2444
        %v2940 = vpop.f32.mrf.mxu0
        %v2941 = vadd.f32 %v2852, %v2940
        %v2942 = vpop.f32.mrf.mxu0
        %v2943 = vadd.f32 %v2854, %v2942
        %2944 = vmatmul.bf16.gmra.mxu0 %v2456
        %v2945 = vpop.f32.mrf.mxu0
        %v2946 = vadd.f32 %v2857, %v2945
        %v2947 = vpop.f32.mrf.mxu0
        %v2948 = vadd.f32 %v2859, %v2947
        %2949 = vmatmul.bf16.gmra.mxu0 %v2468
        %v2950 = vpop.f32.mrf.mxu0
        %v2951 = vadd.f32 %v2862, %v2950
        %v2952 = vpop.f32.mrf.mxu0
        %v2953 = vadd.f32 %v2864, %v2952
        %2954 = vmatmul.bf16.gmra.mxu0 %v2480
        %v2955 = vpop.f32.mrf.mxu0
        %v2956 = vadd.f32 %v2867, %v2955
        %v2957 = vpop.f32.mrf.mxu0
        %v2958 = vadd.f32 %v2869, %v2957
        %2959 = vmatmul.bf16.gmra.mxu0 %v2492
        %v2960 = vpop.f32.mrf.mxu0
        %v2961 = vadd.f32 %v2872, %v2960
        %v2962 = vpop.f32.mrf.mxu0
        %v2963 = vadd.f32 %v2874, %v2962
        %2964 = vmatmul.bf16.gmra.mxu0 %v2504
        %v2965 = vpop.f32.mrf.mxu0
        %v2966 = vadd.f32 %v2877, %v2965
        %v2967 = vpop.f32.mrf.mxu0
        %v2968 = vadd.f32 %v2879, %v2967
        %2969 = vmatmul.bf16.gmra.mxu0 %v2516
        %v2970 = vpop.f32.mrf.mxu0
        %v2971 = vadd.f32 %v2882, %v2970
        %v2972 = vpop.f32.mrf.mxu0
        %v2973 = vadd.f32 %v2884, %v2972
        %2974 = vmatmul.bf16.gmra.mxu0 %v2528
        %v2975 = vpop.f32.mrf.mxu0
        %v2976 = vadd.f32 %v2887, %v2975
        %v2977 = vpop.f32.mrf.mxu0
        %v2978 = vadd.f32 %v2889, %v2977
        %2979 = vdwg.mxu0
        %2980 = vmatpush.bf16.msra.mxu0 %v2777
        %2981 = vmatpush.bf16.msra.mxu0 %v2776
        %2982 = vmatpush.bf16.msra.mxu0 %v2775
        %2983 = vmatpush.bf16.msra.mxu0 %v2774
        %2984 = vmatpush.bf16.msra.mxu0 %v2773
        %2985 = vmatpush.bf16.msra.mxu0 %v2772
        %2986 = vmatpush.bf16.msra.mxu0 %v2771
        %2987 = vmatpush.bf16.msra.mxu0 %v2770
        %2988 = vmatmul.bf16.gmra.mxu0 %v2547
        %v2989 = vpop.f32.mrf.mxu0
        %v2990 = vadd.f32 %v2901, %v2989
        %v2991 = vpop.f32.mrf.mxu0
        %v2992 = vadd.f32 %v2903, %v2991
        %2993 = vmatmul.bf16.gmra.mxu0 %v2550
        %v2994 = vpop.f32.mrf.mxu0
        %v2995 = vadd.f32 %v2906, %v2994
        %v2996 = vpop.f32.mrf.mxu0
        %v2997 = vadd.f32 %v2908, %v2996
        %2998 = vmatmul.bf16.gmra.mxu0 %v2553
        %v2999 = vpop.f32.mrf.mxu0
        %v3000 = vadd.f32 %v2911, %v2999
        %v3001 = vpop.f32.mrf.mxu0
        %v3002 = vadd.f32 %v2913, %v3001
        %3003 = vmatmul.bf16.gmra.mxu0 %v2556
        %v3004 = vpop.f32.mrf.mxu0
        %v3005 = vadd.f32 %v2916, %v3004
        %v3006 = vpop.f32.mrf.mxu0
        %v3007 = vadd.f32 %v2918, %v3006
        %3008 = vmatmul.bf16.gmra.mxu0 %v2559
        %v3009 = vpop.f32.mrf.mxu0
        %v3010 = vadd.f32 %v2921, %v3009
        %v3011 = vpop.f32.mrf.mxu0
        %v3012 = vadd.f32 %v2923, %v3011
        %3013 = vmatmul.bf16.gmra.mxu0 %v2562
        %v3014 = vpop.f32.mrf.mxu0
        %v3015 = vadd.f32 %v2926, %v3014
        %v3016 = vpop.f32.mrf.mxu0
        %v3017 = vadd.f32 %v2928, %v3016
        %3018 = vmatmul.bf16.gmra.mxu0 %v2565
        %v3019 = vpop.f32.mrf.mxu0
        %v3020 = vadd.f32 %v2931, %v3019
        %v3021 = vpop.f32.mrf.mxu0
        %v3022 = vadd.f32 %v2933, %v3021
        %3023 = vmatmul.bf16.gmra.mxu0 %v2568
        %v3024 = vpop.f32.mrf.mxu0
        %v3025 = vadd.f32 %v2936, %v3024
        %v3026 = vpop.f32.mrf.mxu0
        %v3027 = vadd.f32 %v2938, %v3026
        %3028 = vmatmul.bf16.gmra.mxu0 %v2571
        %v3029 = vpop.f32.mrf.mxu0
        %v3030 = vadd.f32 %v2941, %v3029
        %v3031 = vpop.f32.mrf.mxu0
        %v3032 = vadd.f32 %v2943, %v3031
        %3033 = vmatmul.bf16.gmra.mxu0 %v2574
        %v3034 = vpop.f32.mrf.mxu0
        %v3035 = vadd.f32 %v2946, %v3034
        %v3036 = vpop.f32.mrf.mxu0
        %v3037 = vadd.f32 %v2948, %v3036
        %3038 = vmatmul.bf16.gmra.mxu0 %v2577
        %v3039 = vpop.f32.mrf.mxu0
        %v3040 = vadd.f32 %v2951, %v3039
        %v3041 = vpop.f32.mrf.mxu0
        %v3042 = vadd.f32 %v2953, %v3041
        %3043 = vmatmul.bf16.gmra.mxu0 %v2580
        %v3044 = vpop.f32.mrf.mxu0
        %v3045 = vadd.f32 %v2956, %v3044
        %v3046 = vpop.f32.mrf.mxu0
        %v3047 = vadd.f32 %v2958, %v3046
        %3048 = vmatmul.bf16.gmra.mxu0 %v2583
        %v3049 = vpop.f32.mrf.mxu0
        %v3050 = vadd.f32 %v2961, %v3049
        %v3051 = vpop.f32.mrf.mxu0
        %v3052 = vadd.f32 %v2963, %v3051
        %3053 = vmatmul.bf16.gmra.mxu0 %v2586
        %v3054 = vpop.f32.mrf.mxu0
        %v3055 = vadd.f32 %v2966, %v3054
        %v3056 = vpop.f32.mrf.mxu0
        %v3057 = vadd.f32 %v2968, %v3056
        %3058 = vmatmul.bf16.gmra.mxu0 %v2589
        %v3059 = vpop.f32.mrf.mxu0
        %v3060 = vadd.f32 %v2971, %v3059
        %v3061 = vpop.f32.mrf.mxu0
        %v3062 = vadd.f32 %v2973, %v3061
        %3063 = vmatmul.bf16.gmra.mxu0 %v2592
        %v3064 = vpop.f32.mrf.mxu0
        %v3065 = vadd.f32 %v2976, %v3064
        %v3066 = vpop.f32.mrf.mxu0
        %v3067 = vadd.f32 %v2978, %v3066
        %3068 = vdwg.mxu0
        %v3069 = vadd.f32 %v2065, %v2990
        %v3070 = vadd.f32 %v2067, %v2992
        %v3071 = vadd.f32 %v2070, %v2995
        %v3072 = vadd.f32 %v2072, %v2997
        %v3073 = vadd.f32 %v2075, %v3000
        %v3074 = vadd.f32 %v2077, %v3002
        %v3075 = vadd.f32 %v2080, %v3005
        %v3076 = vadd.f32 %v2082, %v3007
        %v3077 = vadd.f32 %v2085, %v3010
        %v3078 = vadd.f32 %v2087, %v3012
        %v3079 = vadd.f32 %v2090, %v3015
        %v3080 = vadd.f32 %v2092, %v3017
        %v3081 = vadd.f32 %v2095, %v3020
        %v3082 = vadd.f32 %v2097, %v3022
        %v3083 = vadd.f32 %v2100, %v3025
        %v3084 = vadd.f32 %v2102, %v3027
        %v3085 = vadd.f32 %v2105, %v3030
        %v3086 = vadd.f32 %v2107, %v3032
        %v3087 = vadd.f32 %v2110, %v3035
        %v3088 = vadd.f32 %v2112, %v3037
        %v3089 = vadd.f32 %v2115, %v3040
        %v3090 = vadd.f32 %v2117, %v3042
        %v3091 = vadd.f32 %v2120, %v3045
        %v3092 = vadd.f32 %v2122, %v3047
        %v3093 = vadd.f32 %v2125, %v3050
        %v3094 = vadd.f32 %v2127, %v3052
        %v3095 = vadd.f32 %v2130, %v3055
        %v3096 = vadd.f32 %v2132, %v3057
        %v3097 = vadd.f32 %v2135, %v3060
        %v3098 = vadd.f32 %v2137, %v3062
        %v3099 = vadd.f32 %v2140, %v3065
        %v3100 = vadd.f32 %v2142, %v3067
        %v3101 = vld [vmem:[%s3] sm:$0x1]
        %v3103 = vperm.slane %v3101, 0
        %v3105 = vmul.f32 %v3069, %v3103
        %v3106 = vmul.f32 %v3070, %v3103
        %v3107 = vmul.f32 %v3071, %v3103
        %v3108 = vmul.f32 %v3072, %v3103
        %v3109 = vmul.f32 %v3073, %v3103
        %v3110 = vmul.f32 %v3074, %v3103
        %v3111 = vmul.f32 %v3075, %v3103
        %v3112 = vmul.f32 %v3076, %v3103
        %v3113 = vmul.f32 %v3077, %v3103
        %v3114 = vmul.f32 %v3078, %v3103
        %v3115 = vmul.f32 %v3079, %v3103
        %v3116 = vmul.f32 %v3080, %v3103
        %v3117 = vmul.f32 %v3081, %v3103
        %v3118 = vmul.f32 %v3082, %v3103
        %v3119 = vmul.f32 %v3083, %v3103
        %v3120 = vmul.f32 %v3084, %v3103
        %v3121 = vmul.f32 %v3085, %v3103
        %v3122 = vmul.f32 %v3086, %v3103
        %v3123 = vmul.f32 %v3087, %v3103
        %v3124 = vmul.f32 %v3088, %v3103
        %v3125 = vmul.f32 %v3089, %v3103
        %v3126 = vmul.f32 %v3090, %v3103
        %v3127 = vmul.f32 %v3091, %v3103
        %v3128 = vmul.f32 %v3092, %v3103
        %v3129 = vmul.f32 %v3093, %v3103
        %v3130 = vmul.f32 %v3094, %v3103
        %v3131 = vmul.f32 %v3095, %v3103
        %v3132 = vmul.f32 %v3096, %v3103
        %v3133 = vmul.f32 %v3097, %v3103
        %v3134 = vmul.f32 %v3098, %v3103
        %v3135 = vmul.f32 %v3099, %v3103
        %v3136 = vmul.f32 %v3100, %v3103
        %v3137 = vld [vmem:[%s4] sm:$0x1]
        %v3139 = vperm.slane %v3137, 0
        %v3141 = vadd.f32 %v3105, %v3139
        %v3142 = vadd.f32 %v3106, %v3139
        %v3143 = vadd.f32 %v3107, %v3139
        %v3144 = vadd.f32 %v3108, %v3139
        %v3145 = vadd.f32 %v3109, %v3139
        %v3146 = vadd.f32 %v3110, %v3139
        %v3147 = vadd.f32 %v3111, %v3139
        %v3148 = vadd.f32 %v3112, %v3139
        %v3149 = vadd.f32 %v3113, %v3139
        %v3150 = vadd.f32 %v3114, %v3139
        %v3151 = vadd.f32 %v3115, %v3139
        %v3152 = vadd.f32 %v3116, %v3139
        %v3153 = vadd.f32 %v3117, %v3139
        %v3154 = vadd.f32 %v3118, %v3139
        %v3155 = vadd.f32 %v3119, %v3139
        %v3156 = vadd.f32 %v3120, %v3139
        %v3157 = vadd.f32 %v3121, %v3139
        %v3158 = vadd.f32 %v3122, %v3139
        %v3159 = vadd.f32 %v3123, %v3139
        %v3160 = vadd.f32 %v3124, %v3139
        %v3161 = vadd.f32 %v3125, %v3139
        %v3162 = vadd.f32 %v3126, %v3139
        %v3163 = vadd.f32 %v3127, %v3139
        %v3164 = vadd.f32 %v3128, %v3139
        %v3165 = vadd.f32 %v3129, %v3139
        %v3166 = vadd.f32 %v3130, %v3139
        %v3167 = vadd.f32 %v3131, %v3139
        %v3168 = vadd.f32 %v3132, %v3139
        %v3169 = vadd.f32 %v3133, %v3139
        %v3170 = vadd.f32 %v3134, %v3139
        %v3171 = vadd.f32 %v3135, %v3139
        %v3172 = vadd.f32 %v3136, %v3139
        %v3173 = vmax.f32 %v3141, 0.0
        %v3174 = vmax.f32 %v3142, 0.0
        %v3175 = vmax.f32 %v3143, 0.0
        %v3176 = vmax.f32 %v3144, 0.0
        %v3177 = vmax.f32 %v3145, 0.0
        %v3178 = vmax.f32 %v3146, 0.0
        %v3179 = vmax.f32 %v3147, 0.0
        %v3180 = vmax.f32 %v3148, 0.0
        %v3181 = vmax.f32 %v3149, 0.0
        %v3182 = vmax.f32 %v3150, 0.0
        %v3183 = vmax.f32 %v3151, 0.0
        %v3184 = vmax.f32 %v3152, 0.0
        %v3185 = vmax.f32 %v3153, 0.0
        %v3186 = vmax.f32 %v3154, 0.0
        %v3187 = vmax.f32 %v3155, 0.0
        %v3188 = vmax.f32 %v3156, 0.0
        %v3189 = vmax.f32 %v3157, 0.0
        %v3190 = vmax.f32 %v3158, 0.0
        %v3191 = vmax.f32 %v3159, 0.0
        %v3192 = vmax.f32 %v3160, 0.0
        %v3193 = vmax.f32 %v3161, 0.0
        %v3194 = vmax.f32 %v3162, 0.0
        %v3195 = vmax.f32 %v3163, 0.0
        %v3196 = vmax.f32 %v3164, 0.0
        %v3197 = vmax.f32 %v3165, 0.0
        %v3198 = vmax.f32 %v3166, 0.0
        %v3199 = vmax.f32 %v3167, 0.0
        %v3200 = vmax.f32 %v3168, 0.0
        %v3201 = vmax.f32 %v3169, 0.0
        %v3202 = vmax.f32 %v3170, 0.0
        %v3203 = vmax.f32 %v3171, 0.0
        %v3204 = vmax.f32 %v3172, 0.0
        %3205 = vst [vmem:[#allocation2] sm:$0xff] 0.0
        %3206 = vst [vmem:[#allocation2 + $0x8] sm:$0xff] 0.0
        %3207 = vst [vmem:[#allocation2 + $0x10] sm:$0x3] 0.0
        %s3208 = scalar_lea.vmem [#allocation2], 408
        %3209 = vst [vmem:[%s3208] sm:$0xff] 0.0
        %3210 = vst [vmem:[%s3208 + $0x8] sm:$0xff] 0.0
        %3211 = vst [vmem:[%s3208 + $0x10] sm:$0x3] 0.0
        %3212 = vst [vmem:[#allocation2] sm:$0x1] 0.0
        %3213 = vst [vmem:[#allocation2 + $0x18] sm:$0x1] 0.0
        %3214 = vst [vmem:[#allocation2 + $0x30] sm:$0x1] 0.0
        %3215 = vst [vmem:[#allocation2 + $0x48] sm:$0x1] 0.0
        %3216 = vst [vmem:[#allocation2 + $0x60] sm:$0x1] 0.0
        %3217 = vst [vmem:[#allocation2 + $0x78] sm:$0x1] 0.0
        %3218 = vst [vmem:[#allocation2 + $0x90] sm:$0x1] 0.0
        %3219 = vst [vmem:[#allocation2 + $0xa8] sm:$0x1] 0.0
        %3220 = vst [vmem:[#allocation2 + $0xc0] sm:$0x1] 0.0
        %3221 = vst [vmem:[#allocation2 + $0xd8] sm:$0x1] 0.0
        %3222 = vst [vmem:[#allocation2 + $0xf0] sm:$0x1] 0.0
        %3223 = vst [vmem:[#allocation2 + $0x108] sm:$0x1] 0.0
        %3224 = vst [vmem:[#allocation2 + $0x120] sm:$0x1] 0.0
        %3225 = vst [vmem:[#allocation2 + $0x138] sm:$0x1] 0.0
        %3226 = vst [vmem:[#allocation2 + $0x150] sm:$0x1] 0.0
        %3227 = vst [vmem:[#allocation2 + $0x168] sm:$0x1] 0.0
        %3228 = vst [vmem:[#allocation2 + $0x180] sm:$0x1] 0.0
        %3229 = vst [vmem:[#allocation2 + $0x198] sm:$0x1] 0.0
        %3230 = vst [vmem:[#allocation2 + $0x11] sm:$0x1] 0.0
        %3231 = vst [vmem:[#allocation2 + $0x29] sm:$0x1] 0.0
        %3232 = vst [vmem:[#allocation2 + $0x41] sm:$0x1] 0.0
        %3233 = vst [vmem:[#allocation2 + $0x59] sm:$0x1] 0.0
        %3234 = vst [vmem:[#allocation2 + $0x71] sm:$0x1] 0.0
        %3235 = vst [vmem:[#allocation2 + $0x89] sm:$0x1] 0.0
        %3236 = vst [vmem:[#allocation2 + $0xa1] sm:$0x1] 0.0
        %3237 = vst [vmem:[#allocation2 + $0xb9] sm:$0x1] 0.0
        %3238 = vst [vmem:[#allocation2 + $0xd1] sm:$0x1] 0.0
        %3239 = vst [vmem:[#allocation2 + $0xe9] sm:$0x1] 0.0
        %3240 = vst [vmem:[#allocation2 + $0x101] sm:$0x1] 0.0
        %3241 = vst [vmem:[#allocation2 + $0x119] sm:$0x1] 0.0
        %3242 = vst [vmem:[#allocation2 + $0x131] sm:$0x1] 0.0
        %3243 = vst [vmem:[#allocation2 + $0x149] sm:$0x1] 0.0
        %3244 = vst [vmem:[#allocation2 + $0x161] sm:$0x1] 0.0
        %3245 = vst [vmem:[#allocation2 + $0x179] sm:$0x1] 0.0
        %3246 = vst [vmem:[#allocation2 + $0x191] sm:$0x1] 0.0
        %3247 = vst [vmem:[#allocation2 + $0x1a9] sm:$0x1] 0.0
        %s3248 = scalar_lea.vmem [#allocation2], 24
        %3249 = vst [vmem:[%s3248 + $0x1] sm:$0xff] %v3173
        %3250 = vst [vmem:[%s3248 + $0x9] sm:$0xff] %v3174
        %3251 = vst [vmem:[%s3248 + $0x19] sm:$0xff] %v3175
        %3252 = vst [vmem:[%s3248 + $0x21] sm:$0xff] %v3176
        %3253 = vst [vmem:[%s3248 + $0x31] sm:$0xff] %v3177
        %3254 = vst [vmem:[%s3248 + $0x39] sm:$0xff] %v3178
        %3255 = vst [vmem:[%s3248 + $0x49] sm:$0xff] %v3179
        %3256 = vst [vmem:[%s3248 + $0x51] sm:$0xff] %v3180
        %3257 = vst [vmem:[%s3248 + $0x61] sm:$0xff] %v3181
        %3258 = vst [vmem:[%s3248 + $0x69] sm:$0xff] %v3182
        %3259 = vst [vmem:[%s3248 + $0x79] sm:$0xff] %v3183
        %3260 = vst [vmem:[%s3248 + $0x81] sm:$0xff] %v3184
        %3261 = vst [vmem:[%s3248 + $0x91] sm:$0xff] %v3185
        %3262 = vst [vmem:[%s3248 + $0x99] sm:$0xff] %v3186
        %3263 = vst [vmem:[%s3248 + $0xa9] sm:$0xff] %v3187
        %3264 = vst [vmem:[%s3248 + $0xb1] sm:$0xff] %v3188
        %3265 = vst [vmem:[%s3248 + $0xc1] sm:$0xff] %v3189
        %3266 = vst [vmem:[%s3248 + $0xc9] sm:$0xff] %v3190
        %3267 = vst [vmem:[%s3248 + $0xd9] sm:$0xff] %v3191
        %3268 = vst [vmem:[%s3248 + $0xe1] sm:$0xff] %v3192
        %3269 = vst [vmem:[%s3248 + $0xf1] sm:$0xff] %v3193
        %3270 = vst [vmem:[%s3248 + $0xf9] sm:$0xff] %v3194
        %3271 = vst [vmem:[%s3248 + $0x109] sm:$0xff] %v3195
        %3272 = vst [vmem:[%s3248 + $0x111] sm:$0xff] %v3196
        %3273 = vst [vmem:[%s3248 + $0x121] sm:$0xff] %v3197
        %3274 = vst [vmem:[%s3248 + $0x129] sm:$0xff] %v3198
        %3275 = vst [vmem:[%s3248 + $0x139] sm:$0xff] %v3199
        %3276 = vst [vmem:[%s3248 + $0x141] sm:$0xff] %v3200
        %3277 = vst [vmem:[%s3248 + $0x151] sm:$0xff] %v3201
        %3278 = vst [vmem:[%s3248 + $0x159] sm:$0xff] %v3202
        %3279 = vst [vmem:[%s3248 + $0x169] sm:$0xff] %v3203
        %3280 = vst [vmem:[%s3248 + $0x171] sm:$0xff] %v3204
        %v3281 = vld [vmem:[#allocation2] sm:$0xff]
        %v3282 = vld [vmem:[#allocation2 + $0x8] sm:$0xff]
        %v3283 = vld [vmem:[#allocation2 + $0x10] sm:$0x3]
        %v3284 = vld [vmem:[#allocation2 + $0x18] sm:$0xff]
        %v3285 = vld [vmem:[#allocation2 + $0x20] sm:$0xff]
        %v3286 = vld [vmem:[#allocation2 + $0x28] sm:$0x3]
        %v3287 = vld [vmem:[#allocation2 + $0x30] sm:$0xff]
        %v3288 = vld [vmem:[#allocation2 + $0x38] sm:$0xff]
        %v3289 = vld [vmem:[#allocation2 + $0x40] sm:$0x3]
        %v3290 = vld [vmem:[#allocation2 + $0x48] sm:$0xff]
        %v3291 = vld [vmem:[#allocation2 + $0x50] sm:$0xff]
        %v3292 = vld [vmem:[#allocation2 + $0x58] sm:$0x3]
        %v3293 = vld [vmem:[#allocation2 + $0x60] sm:$0xff]
        %v3294 = vld [vmem:[#allocation2 + $0x68] sm:$0xff]
        %v3295 = vld [vmem:[#allocation2 + $0x70] sm:$0x3]
        %v3296 = vld [vmem:[#allocation2 + $0x78] sm:$0xff]
        %v3297 = vld [vmem:[#allocation2 + $0x80] sm:$0xff]
        %v3298 = vld [vmem:[#allocation2 + $0x88] sm:$0x3]
        %v3299 = vld [vmem:[#allocation2 + $0x90] sm:$0xff]
        %v3300 = vld [vmem:[#allocation2 + $0x98] sm:$0xff]
        %v3301 = vld [vmem:[#allocation2 + $0xa0] sm:$0x3]
        %v3302 = vld [vmem:[#allocation2 + $0xa8] sm:$0xff]
        %v3303 = vld [vmem:[#allocation2 + $0xb0] sm:$0xff]
        %v3304 = vld [vmem:[#allocation2 + $0xb8] sm:$0x3]
        %v3305 = vld [vmem:[#allocation2 + $0xc0] sm:$0xff]
        %v3306 = vld [vmem:[#allocation2 + $0xc8] sm:$0xff]
        %v3307 = vld [vmem:[#allocation2 + $0xd0] sm:$0x3]
        %v3308 = vld [vmem:[#allocation2 + $0xd8] sm:$0xff]
        %v3309 = vld [vmem:[#allocation2 + $0xe0] sm:$0xff]
        %v3310 = vld [vmem:[#allocation2 + $0xe8] sm:$0x3]
        %v3311 = vld [vmem:[#allocation2 + $0xf0] sm:$0xff]
        %v3312 = vld [vmem:[#allocation2 + $0xf8] sm:$0xff]
        %v3313 = vld [vmem:[#allocation2 + $0x100] sm:$0x3]
        %v3314 = vld [vmem:[#allocation2 + $0x108] sm:$0xff]
        %v3315 = vld [vmem:[#allocation2 + $0x110] sm:$0xff]
        %v3316 = vld [vmem:[#allocation2 + $0x118] sm:$0x3]
        %v3317 = vld [vmem:[#allocation2 + $0x120] sm:$0xff]
        %v3318 = vld [vmem:[#allocation2 + $0x128] sm:$0xff]
        %v3319 = vld [vmem:[#allocation2 + $0x130] sm:$0x3]
        %v3320 = vld [vmem:[#allocation2 + $0x138] sm:$0xff]
        %v3321 = vld [vmem:[#allocation2 + $0x140] sm:$0xff]
        %v3322 = vld [vmem:[#allocation2 + $0x148] sm:$0x3]
        %v3323 = vld [vmem:[#allocation2 + $0x150] sm:$0xff]
        %v3324 = vld [vmem:[#allocation2 + $0x158] sm:$0xff]
        %v3325 = vld [vmem:[#allocation2 + $0x160] sm:$0x3]
        %v3326 = vld [vmem:[#allocation2 + $0x168] sm:$0xff]
        %v3327 = vld [vmem:[#allocation2 + $0x170] sm:$0xff]
        %v3328 = vld [vmem:[#allocation2 + $0x178] sm:$0x3]
        %v3329 = vpack.c.bf16 %v3281, %v3281
        %v3330 = vpack.c.bf16 %v3282, %v3282
        %v3331 = vpack.c.bf16 %v3283, %v3283
        %v3332 = vpack.c.bf16 %v3284, %v3284
        %v3333 = vpack.c.bf16 %v3285, %v3285
        %v3334 = vpack.c.bf16 %v3286, %v3286
        %v3335 = vpack.c.bf16 %v3287, %v3287
        %v3336 = vpack.c.bf16 %v3288, %v3288
        %v3337 = vpack.c.bf16 %v3289, %v3289
        %v3338 = vpack.c.bf16 %v3290, %v3290
        %v3339 = vpack.c.bf16 %v3291, %v3291
        %v3340 = vpack.c.bf16 %v3292, %v3292
        %v3341 = vpack.c.bf16 %v3293, %v3293
        %v3342 = vpack.c.bf16 %v3294, %v3294
        %v3343 = vpack.c.bf16 %v3295, %v3295
        %v3344 = vpack.c.bf16 %v3296, %v3296
        %v3345 = vpack.c.bf16 %v3297, %v3297
        %v3346 = vpack.c.bf16 %v3298, %v3298
        %v3347 = vpack.c.bf16 %v3299, %v3299
        %v3348 = vpack.c.bf16 %v3300, %v3300
        %v3349 = vpack.c.bf16 %v3301, %v3301
        %v3350 = vpack.c.bf16 %v3302, %v3302
        %v3351 = vpack.c.bf16 %v3303, %v3303
        %v3352 = vpack.c.bf16 %v3304, %v3304
        %v3353 = vpack.c.bf16 %v3305, %v3305
        %v3354 = vpack.c.bf16 %v3306, %v3306
        %v3355 = vpack.c.bf16 %v3307, %v3307
        %v3356 = vpack.c.bf16 %v3308, %v3308
        %v3357 = vpack.c.bf16 %v3309, %v3309
        %v3358 = vpack.c.bf16 %v3310, %v3310
        %v3359 = vpack.c.bf16 %v3311, %v3311
        %v3360 = vpack.c.bf16 %v3312, %v3312
        %v3361 = vpack.c.bf16 %v3313, %v3313
        %v3362 = vpack.c.bf16 %v3314, %v3314
        %v3363 = vpack.c.bf16 %v3315, %v3315
        %v3364 = vpack.c.bf16 %v3316, %v3316
        %v3365 = vpack.c.bf16 %v3317, %v3317
        %v3366 = vpack.c.bf16 %v3318, %v3318
        %v3367 = vpack.c.bf16 %v3319, %v3319
        %v3368 = vpack.c.bf16 %v3320, %v3320
        %v3369 = vpack.c.bf16 %v3321, %v3321
        %v3370 = vpack.c.bf16 %v3322, %v3322
        %v3371 = vpack.c.bf16 %v3323, %v3323
        %v3372 = vpack.c.bf16 %v3324, %v3324
        %v3373 = vpack.c.bf16 %v3325, %v3325
        %v3374 = vpack.c.bf16 %v3326, %v3326
        %v3375 = vpack.c.bf16 %v3327, %v3327
        %v3376 = vpack.c.bf16 %v3328, %v3328
        %v3409 = vunpack.c.l.b16 %v3329
        %v3410 = vunpack.c.l.b16 %v3330
        %v3411 = vunpack.c.l.b16 %v3332
        %v3412 = vunpack.c.l.b16 %v3333
        %v3413 = vunpack.c.l.b16 %v3335
        %v3414 = vunpack.c.l.b16 %v3336
        %v3415 = vunpack.c.l.b16 %v3338
        %v3416 = vunpack.c.l.b16 %v3339
        %v3417 = vunpack.c.l.b16 %v3341
        %v3418 = vunpack.c.l.b16 %v3342
        %v3419 = vunpack.c.l.b16 %v3344
        %v3420 = vunpack.c.l.b16 %v3345
        %v3421 = vunpack.c.l.b16 %v3347
        %v3422 = vunpack.c.l.b16 %v3348
        %v3423 = vunpack.c.l.b16 %v3350
        %v3424 = vunpack.c.l.b16 %v3351
        %v3425 = vunpack.c.l.b16 %v3353
        %v3426 = vunpack.c.l.b16 %v3354
        %v3427 = vunpack.c.l.b16 %v3356
        %v3428 = vunpack.c.l.b16 %v3357
        %v3429 = vunpack.c.l.b16 %v3359
        %v3430 = vunpack.c.l.b16 %v3360
        %v3431 = vunpack.c.l.b16 %v3362
        %v3432 = vunpack.c.l.b16 %v3363
        %v3433 = vunpack.c.l.b16 %v3365
        %v3434 = vunpack.c.l.b16 %v3366
        %v3435 = vunpack.c.l.b16 %v3368
        %v3436 = vunpack.c.l.b16 %v3369
        %v3437 = vunpack.c.l.b16 %v3371
        %v3438 = vunpack.c.l.b16 %v3372
        %v3439 = vunpack.c.l.b16 %v3374
        %v3440 = vunpack.c.l.b16 %v3375
        %v3441 = vpack.c.b16 %v3410, %v3409
        %v3442 = vpack.c.b16 %v3412, %v3411
        %v3443 = vpack.c.b16 %v3414, %v3413
        %v3444 = vpack.c.b16 %v3416, %v3415
        %v3445 = vpack.c.b16 %v3418, %v3417
        %v3446 = vpack.c.b16 %v3420, %v3419
        %v3447 = vpack.c.b16 %v3422, %v3421
        %v3448 = vpack.c.b16 %v3424, %v3423
        %v3449 = vpack.c.b16 %v3426, %v3425
        %v3450 = vpack.c.b16 %v3428, %v3427
        %v3451 = vpack.c.b16 %v3430, %v3429
        %v3452 = vpack.c.b16 %v3432, %v3431
        %v3453 = vpack.c.b16 %v3434, %v3433
        %v3454 = vpack.c.b16 %v3436, %v3435
        %v3455 = vpack.c.b16 %v3438, %v3437
        %v3456 = vpack.c.b16 %v3440, %v3439
        %v3489 = vunpack.c.l.b16 %v3331
        %v3490 = vunpack.c.l.b16 %v3334
        %v3491 = vunpack.c.l.b16 %v3337
        %v3492 = vunpack.c.l.b16 %v3340
        %v3493 = vunpack.c.l.b16 %v3343
        %v3494 = vunpack.c.l.b16 %v3346
        %v3495 = vunpack.c.l.b16 %v3349
        %v3496 = vunpack.c.l.b16 %v3352
        %v3497 = vunpack.c.l.b16 %v3355
        %v3498 = vunpack.c.l.b16 %v3358
        %v3499 = vunpack.c.l.b16 %v3361
        %v3500 = vunpack.c.l.b16 %v3364
        %v3501 = vunpack.c.l.b16 %v3367
        %v3502 = vunpack.c.l.b16 %v3370
        %v3503 = vunpack.c.l.b16 %v3373
        %v3504 = vunpack.c.l.b16 %v3376
        %v3505 = vpack.c.b16 %v3489, %v3489
        %v3506 = vpack.c.b16 %v3490, %v3490
        %v3507 = vpack.c.b16 %v3491, %v3491
        %v3508 = vpack.c.b16 %v3492, %v3492
        %v3509 = vpack.c.b16 %v3493, %v3493
        %v3510 = vpack.c.b16 %v3494, %v3494
        %v3511 = vpack.c.b16 %v3495, %v3495
        %v3512 = vpack.c.b16 %v3496, %v3496
        %v3513 = vpack.c.b16 %v3497, %v3497
        %v3514 = vpack.c.b16 %v3498, %v3498
        %v3515 = vpack.c.b16 %v3499, %v3499
        %v3516 = vpack.c.b16 %v3500, %v3500
        %v3517 = vpack.c.b16 %v3501, %v3501
        %v3518 = vpack.c.b16 %v3502, %v3502
        %v3519 = vpack.c.b16 %v3503, %v3503
        %v3520 = vpack.c.b16 %v3504, %v3504
        %v3522 = vshrl.u32 %v3441, 16
        %v3524 = vshll.u32 %v3441, 16
        %v3526 = vrot.slane %v3524, 1
        %v3527 = vor.u32 %v3522, %v3526
        %v3529 = vshll.u32 %v3505, 16
        %v3531 = vrot.slane %v3529, 1
        %v3532 = vsel %vm486, %v3527, %v3531
        %v3534 = vshrl.u32 %v3442, 16
        %v3536 = vshll.u32 %v3442, 16
        %v3538 = vrot.slane %v3536, 1
        %v3539 = vor.u32 %v3534, %v3538
        %v3541 = vshll.u32 %v3506, 16
        %v3543 = vrot.slane %v3541, 1
        %v3544 = vsel %vm486, %v3539, %v3543
        %v3546 = vshrl.u32 %v3443, 16
        %v3548 = vshll.u32 %v3443, 16
        %v3550 = vrot.slane %v3548, 1
        %v3551 = vor.u32 %v3546, %v3550
        %v3553 = vshll.u32 %v3507, 16
        %v3555 = vrot.slane %v3553, 1
        %v3556 = vsel %vm486, %v3551, %v3555
        %v3558 = vshrl.u32 %v3444, 16
        %v3560 = vshll.u32 %v3444, 16
        %v3562 = vrot.slane %v3560, 1
        %v3563 = vor.u32 %v3558, %v3562
        %v3565 = vshll.u32 %v3508, 16
        %v3567 = vrot.slane %v3565, 1
        %v3568 = vsel %vm486, %v3563, %v3567
        %v3570 = vshrl.u32 %v3445, 16
        %v3572 = vshll.u32 %v3445, 16
        %v3574 = vrot.slane %v3572, 1
        %v3575 = vor.u32 %v3570, %v3574
        %v3577 = vshll.u32 %v3509, 16
        %v3579 = vrot.slane %v3577, 1
        %v3580 = vsel %vm486, %v3575, %v3579
        %v3582 = vshrl.u32 %v3446, 16
        %v3584 = vshll.u32 %v3446, 16
        %v3586 = vrot.slane %v3584, 1
        %v3587 = vor.u32 %v3582, %v3586
        %v3589 = vshll.u32 %v3510, 16
        %v3591 = vrot.slane %v3589, 1
        %v3592 = vsel %vm486, %v3587, %v3591
        %v3594 = vshrl.u32 %v3447, 16
        %v3596 = vshll.u32 %v3447, 16
        %v3598 = vrot.slane %v3596, 1
        %v3599 = vor.u32 %v3594, %v3598
        %v3601 = vshll.u32 %v3511, 16
        %v3603 = vrot.slane %v3601, 1
        %v3604 = vsel %vm486, %v3599, %v3603
        %v3606 = vshrl.u32 %v3448, 16
        %v3608 = vshll.u32 %v3448, 16
        %v3610 = vrot.slane %v3608, 1
        %v3611 = vor.u32 %v3606, %v3610
        %v3613 = vshll.u32 %v3512, 16
        %v3615 = vrot.slane %v3613, 1
        %v3616 = vsel %vm486, %v3611, %v3615
        %v3618 = vshrl.u32 %v3449, 16
        %v3620 = vshll.u32 %v3449, 16
        %v3622 = vrot.slane %v3620, 1
        %v3623 = vor.u32 %v3618, %v3622
        %v3625 = vshll.u32 %v3513, 16
        %v3627 = vrot.slane %v3625, 1
        %v3628 = vsel %vm486, %v3623, %v3627
        %v3630 = vshrl.u32 %v3450, 16
        %v3632 = vshll.u32 %v3450, 16
        %v3634 = vrot.slane %v3632, 1
        %v3635 = vor.u32 %v3630, %v3634
        %v3637 = vshll.u32 %v3514, 16
        %v3639 = vrot.slane %v3637, 1
        %v3640 = vsel %vm486, %v3635, %v3639
        %v3642 = vshrl.u32 %v3451, 16
        %v3644 = vshll.u32 %v3451, 16
        %v3646 = vrot.slane %v3644, 1
        %v3647 = vor.u32 %v3642, %v3646
        %v3649 = vshll.u32 %v3515, 16
        %v3651 = vrot.slane %v3649, 1
        %v3652 = vsel %vm486, %v3647, %v3651
        %v3654 = vshrl.u32 %v3452, 16
        %v3656 = vshll.u32 %v3452, 16
        %v3658 = vrot.slane %v3656, 1
        %v3659 = vor.u32 %v3654, %v3658
        %v3661 = vshll.u32 %v3516, 16
        %v3663 = vrot.slane %v3661, 1
        %v3664 = vsel %vm486, %v3659, %v3663
        %v3666 = vshrl.u32 %v3453, 16
        %v3668 = vshll.u32 %v3453, 16
        %v3670 = vrot.slane %v3668, 1
        %v3671 = vor.u32 %v3666, %v3670
        %v3673 = vshll.u32 %v3517, 16
        %v3675 = vrot.slane %v3673, 1
        %v3676 = vsel %vm486, %v3671, %v3675
        %v3678 = vshrl.u32 %v3454, 16
        %v3680 = vshll.u32 %v3454, 16
        %v3682 = vrot.slane %v3680, 1
        %v3683 = vor.u32 %v3678, %v3682
        %v3685 = vshll.u32 %v3518, 16
        %v3687 = vrot.slane %v3685, 1
        %v3688 = vsel %vm486, %v3683, %v3687
        %v3690 = vshrl.u32 %v3455, 16
        %v3692 = vshll.u32 %v3455, 16
        %v3694 = vrot.slane %v3692, 1
        %v3695 = vor.u32 %v3690, %v3694
        %v3697 = vshll.u32 %v3519, 16
        %v3699 = vrot.slane %v3697, 1
        %v3700 = vsel %vm486, %v3695, %v3699
        %v3702 = vshrl.u32 %v3456, 16
        %v3704 = vshll.u32 %v3456, 16
        %v3706 = vrot.slane %v3704, 1
        %v3707 = vor.u32 %v3702, %v3706
        %v3709 = vshll.u32 %v3520, 16
        %v3711 = vrot.slane %v3709, 1
        %v3712 = vsel %vm486, %v3707, %v3711
        %v3729 = vrot.slane %v3441, 1
        %v3730 = vrot.slane %v3505, 1
        %v3731 = vsel %vm695, %v3729, %v3730
        %v3732 = vrot.slane %v3442, 1
        %v3733 = vrot.slane %v3506, 1
        %v3734 = vsel %vm695, %v3732, %v3733
        %v3735 = vrot.slane %v3443, 1
        %v3736 = vrot.slane %v3507, 1
        %v3737 = vsel %vm695, %v3735, %v3736
        %v3738 = vrot.slane %v3444, 1
        %v3739 = vrot.slane %v3508, 1
        %v3740 = vsel %vm695, %v3738, %v3739
        %v3741 = vrot.slane %v3445, 1
        %v3742 = vrot.slane %v3509, 1
        %v3743 = vsel %vm695, %v3741, %v3742
        %v3744 = vrot.slane %v3446, 1
        %v3745 = vrot.slane %v3510, 1
        %v3746 = vsel %vm695, %v3744, %v3745
        %v3747 = vrot.slane %v3447, 1
        %v3748 = vrot.slane %v3511, 1
        %v3749 = vsel %vm695, %v3747, %v3748
        %v3750 = vrot.slane %v3448, 1
        %v3751 = vrot.slane %v3512, 1
        %v3752 = vsel %vm695, %v3750, %v3751
        %v3753 = vrot.slane %v3449, 1
        %v3754 = vrot.slane %v3513, 1
        %v3755 = vsel %vm695, %v3753, %v3754
        %v3756 = vrot.slane %v3450, 1
        %v3757 = vrot.slane %v3514, 1
        %v3758 = vsel %vm695, %v3756, %v3757
        %v3759 = vrot.slane %v3451, 1
        %v3760 = vrot.slane %v3515, 1
        %v3761 = vsel %vm695, %v3759, %v3760
        %v3762 = vrot.slane %v3452, 1
        %v3763 = vrot.slane %v3516, 1
        %v3764 = vsel %vm695, %v3762, %v3763
        %v3765 = vrot.slane %v3453, 1
        %v3766 = vrot.slane %v3517, 1
        %v3767 = vsel %vm695, %v3765, %v3766
        %v3768 = vrot.slane %v3454, 1
        %v3769 = vrot.slane %v3518, 1
        %v3770 = vsel %vm695, %v3768, %v3769
        %v3771 = vrot.slane %v3455, 1
        %v3772 = vrot.slane %v3519, 1
        %v3773 = vsel %vm695, %v3771, %v3772
        %v3774 = vrot.slane %v3456, 1
        %v3775 = vrot.slane %v3520, 1
        %v3776 = vsel %vm695, %v3774, %v3775
        %v3793 = vld [vmem:[#allocation3] sm:$0xf]
        %v3794 = vld [vmem:[#allocation3 + $0x4] sm:$0xf]
        %v3795 = vld [vmem:[#allocation3 + $0x8] sm:$0xf]
        %v3796 = vld [vmem:[#allocation3 + $0xc] sm:$0xf]
        %v3797 = vld [vmem:[#allocation3 + $0x10] sm:$0xf]
        %v3798 = vld [vmem:[#allocation3 + $0x14] sm:$0xf]
        %v3799 = vld [vmem:[#allocation3 + $0x18] sm:$0xf]
        %v3800 = vld [vmem:[#allocation3 + $0x1c] sm:$0xf]
        %v3801 = vld [vmem:[#allocation3 + $0x20] sm:$0xf]
        %v3802 = vld [vmem:[#allocation3 + $0x24] sm:$0xf]
        %v3803 = vld [vmem:[#allocation3 + $0x28] sm:$0xf]
        %v3804 = vld [vmem:[#allocation3 + $0x2c] sm:$0xf]
        %v3805 = vld [vmem:[#allocation3 + $0x30] sm:$0xf]
        %v3806 = vld [vmem:[#allocation3 + $0x34] sm:$0xf]
        %v3807 = vld [vmem:[#allocation3 + $0x38] sm:$0xf]
        %v3808 = vld [vmem:[#allocation3 + $0x3c] sm:$0xf]
        %v3809 = vld [vmem:[#allocation3 + $0x40] sm:$0xf]
        %v3810 = vld [vmem:[#allocation3 + $0x44] sm:$0xf]
        %v3811 = vld [vmem:[#allocation3 + $0x48] sm:$0xf]
        %v3812 = vld [vmem:[#allocation3 + $0x4c] sm:$0xf]
        %v3813 = vld [vmem:[#allocation3 + $0x50] sm:$0xf]
        %v3814 = vld [vmem:[#allocation3 + $0x54] sm:$0xf]
        %v3815 = vld [vmem:[#allocation3 + $0x58] sm:$0xf]
        %v3816 = vld [vmem:[#allocation3 + $0x5c] sm:$0xf]
        %v3817 = vld [vmem:[#allocation3 + $0x60] sm:$0xf]
        %v3818 = vld [vmem:[#allocation3 + $0x64] sm:$0xf]
        %v3819 = vld [vmem:[#allocation3 + $0x68] sm:$0xf]
        %v3820 = vld [vmem:[#allocation3 + $0x6c] sm:$0xf]
        %v3821 = vld [vmem:[#allocation3 + $0x70] sm:$0xf]
        %v3822 = vld [vmem:[#allocation3 + $0x74] sm:$0xf]
        %v3823 = vld [vmem:[#allocation3 + $0x78] sm:$0xf]
        %v3824 = vld [vmem:[#allocation3 + $0x7c] sm:$0xf]
        %v3825 = vld [vmem:[#allocation3 + $0x80] sm:$0xf]
        %v3826 = vld [vmem:[#allocation3 + $0x84] sm:$0xf]
        %v3827 = vld [vmem:[#allocation3 + $0x88] sm:$0xf]
        %v3828 = vld [vmem:[#allocation3 + $0x8c] sm:$0xf]
        %v3829 = vld [vmem:[#allocation3 + $0x90] sm:$0xf]
        %v3830 = vld [vmem:[#allocation3 + $0x94] sm:$0xf]
        %v3831 = vld [vmem:[#allocation3 + $0x98] sm:$0xf]
        %v3832 = vld [vmem:[#allocation3 + $0x9c] sm:$0xf]
        %v3833 = vld [vmem:[#allocation3 + $0xa0] sm:$0xf]
        %v3834 = vld [vmem:[#allocation3 + $0xa4] sm:$0xf]
        %v3835 = vld [vmem:[#allocation3 + $0xa8] sm:$0xf]
        %v3836 = vld [vmem:[#allocation3 + $0xac] sm:$0xf]
        %v3837 = vld [vmem:[#allocation3 + $0xb0] sm:$0xf]
        %v3838 = vld [vmem:[#allocation3 + $0xb4] sm:$0xf]
        %v3839 = vld [vmem:[#allocation3 + $0xb8] sm:$0xf]
        %v3840 = vld [vmem:[#allocation3 + $0xbc] sm:$0xf]
        %v3841 = vld [vmem:[%s3248] sm:$0xff]
        %v3842 = vld [vmem:[%s3248 + $0x8] sm:$0xff]
        %v3843 = vld [vmem:[%s3248 + $0x10] sm:$0x3]
        %v3844 = vld [vmem:[%s3248 + $0x18] sm:$0xff]
        %v3845 = vld [vmem:[%s3248 + $0x20] sm:$0xff]
        %v3846 = vld [vmem:[%s3248 + $0x28] sm:$0x3]
        %v3847 = vld [vmem:[%s3248 + $0x30] sm:$0xff]
        %v3848 = vld [vmem:[%s3248 + $0x38] sm:$0xff]
        %v3849 = vld [vmem:[%s3248 + $0x40] sm:$0x3]
        %v3850 = vld [vmem:[%s3248 + $0x48] sm:$0xff]
        %v3851 = vld [vmem:[%s3248 + $0x50] sm:$0xff]
        %v3852 = vld [vmem:[%s3248 + $0x58] sm:$0x3]
        %v3853 = vld [vmem:[%s3248 + $0x60] sm:$0xff]
        %v3854 = vld [vmem:[%s3248 + $0x68] sm:$0xff]
        %v3855 = vld [vmem:[%s3248 + $0x70] sm:$0x3]
        %v3856 = vld [vmem:[%s3248 + $0x78] sm:$0xff]
        %v3857 = vld [vmem:[%s3248 + $0x80] sm:$0xff]
        %v3858 = vld [vmem:[%s3248 + $0x88] sm:$0x3]
        %v3859 = vld [vmem:[%s3248 + $0x90] sm:$0xff]
        %v3860 = vld [vmem:[%s3248 + $0x98] sm:$0xff]
        %v3861 = vld [vmem:[%s3248 + $0xa0] sm:$0x3]
        %v3862 = vld [vmem:[%s3248 + $0xa8] sm:$0xff]
        %v3863 = vld [vmem:[%s3248 + $0xb0] sm:$0xff]
        %v3864 = vld [vmem:[%s3248 + $0xb8] sm:$0x3]
        %v3865 = vld [vmem:[%s3248 + $0xc0] sm:$0xff]
        %v3866 = vld [vmem:[%s3248 + $0xc8] sm:$0xff]
        %v3867 = vld [vmem:[%s3248 + $0xd0] sm:$0x3]
        %v3868 = vld [vmem:[%s3248 + $0xd8] sm:$0xff]
        %v3869 = vld [vmem:[%s3248 + $0xe0] sm:$0xff]
        %v3870 = vld [vmem:[%s3248 + $0xe8] sm:$0x3]
        %v3871 = vld [vmem:[%s3248 + $0xf0] sm:$0xff]
        %v3872 = vld [vmem:[%s3248 + $0xf8] sm:$0xff]
        %v3873 = vld [vmem:[%s3248 + $0x100] sm:$0x3]
        %v3874 = vld [vmem:[%s3248 + $0x108] sm:$0xff]
        %v3875 = vld [vmem:[%s3248 + $0x110] sm:$0xff]
        %v3876 = vld [vmem:[%s3248 + $0x118] sm:$0x3]
        %v3877 = vld [vmem:[%s3248 + $0x120] sm:$0xff]
        %v3878 = vld [vmem:[%s3248 + $0x128] sm:$0xff]
        %v3879 = vld [vmem:[%s3248 + $0x130] sm:$0x3]
        %v3880 = vld [vmem:[%s3248 + $0x138] sm:$0xff]
        %v3881 = vld [vmem:[%s3248 + $0x140] sm:$0xff]
        %v3882 = vld [vmem:[%s3248 + $0x148] sm:$0x3]
        %v3883 = vld [vmem:[%s3248 + $0x150] sm:$0xff]
        %v3884 = vld [vmem:[%s3248 + $0x158] sm:$0xff]
        %v3885 = vld [vmem:[%s3248 + $0x160] sm:$0x3]
        %v3886 = vld [vmem:[%s3248 + $0x168] sm:$0xff]
        %v3887 = vld [vmem:[%s3248 + $0x170] sm:$0xff]
        %v3888 = vld [vmem:[%s3248 + $0x178] sm:$0x3]
        %v3889 = vpack.c.bf16 %v3841, %v3841
        %v3890 = vpack.c.bf16 %v3842, %v3842
        %v3891 = vpack.c.bf16 %v3843, %v3843
        %v3892 = vpack.c.bf16 %v3844, %v3844
        %v3893 = vpack.c.bf16 %v3845, %v3845
        %v3894 = vpack.c.bf16 %v3846, %v3846
        %v3895 = vpack.c.bf16 %v3847, %v3847
        %v3896 = vpack.c.bf16 %v3848, %v3848
        %v3897 = vpack.c.bf16 %v3849, %v3849
        %v3898 = vpack.c.bf16 %v3850, %v3850
        %v3899 = vpack.c.bf16 %v3851, %v3851
        %v3900 = vpack.c.bf16 %v3852, %v3852
        %v3901 = vpack.c.bf16 %v3853, %v3853
        %v3902 = vpack.c.bf16 %v3854, %v3854
        %v3903 = vpack.c.bf16 %v3855, %v3855
        %v3904 = vpack.c.bf16 %v3856, %v3856
        %v3905 = vpack.c.bf16 %v3857, %v3857
        %v3906 = vpack.c.bf16 %v3858, %v3858
        %v3907 = vpack.c.bf16 %v3859, %v3859
        %v3908 = vpack.c.bf16 %v3860, %v3860
        %v3909 = vpack.c.bf16 %v3861, %v3861
        %v3910 = vpack.c.bf16 %v3862, %v3862
        %v3911 = vpack.c.bf16 %v3863, %v3863
        %v3912 = vpack.c.bf16 %v3864, %v3864
        %v3913 = vpack.c.bf16 %v3865, %v3865
        %v3914 = vpack.c.bf16 %v3866, %v3866
        %v3915 = vpack.c.bf16 %v3867, %v3867
        %v3916 = vpack.c.bf16 %v3868, %v3868
        %v3917 = vpack.c.bf16 %v3869, %v3869
        %v3918 = vpack.c.bf16 %v3870, %v3870
        %v3919 = vpack.c.bf16 %v3871, %v3871
        %v3920 = vpack.c.bf16 %v3872, %v3872
        %v3921 = vpack.c.bf16 %v3873, %v3873
        %v3922 = vpack.c.bf16 %v3874, %v3874
        %v3923 = vpack.c.bf16 %v3875, %v3875
        %v3924 = vpack.c.bf16 %v3876, %v3876
        %v3925 = vpack.c.bf16 %v3877, %v3877
        %v3926 = vpack.c.bf16 %v3878, %v3878
        %v3927 = vpack.c.bf16 %v3879, %v3879
        %v3928 = vpack.c.bf16 %v3880, %v3880
        %v3929 = vpack.c.bf16 %v3881, %v3881
        %v3930 = vpack.c.bf16 %v3882, %v3882
        %v3931 = vpack.c.bf16 %v3883, %v3883
        %v3932 = vpack.c.bf16 %v3884, %v3884
        %v3933 = vpack.c.bf16 %v3885, %v3885
        %v3934 = vpack.c.bf16 %v3886, %v3886
        %v3935 = vpack.c.bf16 %v3887, %v3887
        %v3936 = vpack.c.bf16 %v3888, %v3888
        %v3969 = vunpack.c.l.b16 %v3889
        %v3970 = vunpack.c.l.b16 %v3890
        %v3971 = vunpack.c.l.b16 %v3892
        %v3972 = vunpack.c.l.b16 %v3893
        %v3973 = vunpack.c.l.b16 %v3895
        %v3974 = vunpack.c.l.b16 %v3896
        %v3975 = vunpack.c.l.b16 %v3898
        %v3976 = vunpack.c.l.b16 %v3899
        %v3977 = vunpack.c.l.b16 %v3901
        %v3978 = vunpack.c.l.b16 %v3902
        %v3979 = vunpack.c.l.b16 %v3904
        %v3980 = vunpack.c.l.b16 %v3905
        %v3981 = vunpack.c.l.b16 %v3907
        %v3982 = vunpack.c.l.b16 %v3908
        %v3983 = vunpack.c.l.b16 %v3910
        %v3984 = vunpack.c.l.b16 %v3911
        %v3985 = vunpack.c.l.b16 %v3913
        %v3986 = vunpack.c.l.b16 %v3914
        %v3987 = vunpack.c.l.b16 %v3916
        %v3988 = vunpack.c.l.b16 %v3917
        %v3989 = vunpack.c.l.b16 %v3919
        %v3990 = vunpack.c.l.b16 %v3920
        %v3991 = vunpack.c.l.b16 %v3922
        %v3992 = vunpack.c.l.b16 %v3923
        %v3993 = vunpack.c.l.b16 %v3925
        %v3994 = vunpack.c.l.b16 %v3926
        %v3995 = vunpack.c.l.b16 %v3928
        %v3996 = vunpack.c.l.b16 %v3929
        %v3997 = vunpack.c.l.b16 %v3931
        %v3998 = vunpack.c.l.b16 %v3932
        %v3999 = vunpack.c.l.b16 %v3934
        %v4000 = vunpack.c.l.b16 %v3935
        %v4001 = vpack.c.b16 %v3970, %v3969
        %v4002 = vpack.c.b16 %v3972, %v3971
        %v4003 = vpack.c.b16 %v3974, %v3973
        %v4004 = vpack.c.b16 %v3976, %v3975
        %v4005 = vpack.c.b16 %v3978, %v3977
        %v4006 = vpack.c.b16 %v3980, %v3979
        %v4007 = vpack.c.b16 %v3982, %v3981
        %v4008 = vpack.c.b16 %v3984, %v3983
        %v4009 = vpack.c.b16 %v3986, %v3985
        %v4010 = vpack.c.b16 %v3988, %v3987
        %v4011 = vpack.c.b16 %v3990, %v3989
        %v4012 = vpack.c.b16 %v3992, %v3991
        %v4013 = vpack.c.b16 %v3994, %v3993
        %v4014 = vpack.c.b16 %v3996, %v3995
        %v4015 = vpack.c.b16 %v3998, %v3997
        %v4016 = vpack.c.b16 %v4000, %v3999
        %v4049 = vunpack.c.l.b16 %v3891
        %v4050 = vunpack.c.l.b16 %v3894
        %v4051 = vunpack.c.l.b16 %v3897
        %v4052 = vunpack.c.l.b16 %v3900
        %v4053 = vunpack.c.l.b16 %v3903
        %v4054 = vunpack.c.l.b16 %v3906
        %v4055 = vunpack.c.l.b16 %v3909
        %v4056 = vunpack.c.l.b16 %v3912
        %v4057 = vunpack.c.l.b16 %v3915
        %v4058 = vunpack.c.l.b16 %v3918
        %v4059 = vunpack.c.l.b16 %v3921
        %v4060 = vunpack.c.l.b16 %v3924
        %v4061 = vunpack.c.l.b16 %v3927
        %v4062 = vunpack.c.l.b16 %v3930
        %v4063 = vunpack.c.l.b16 %v3933
        %v4064 = vunpack.c.l.b16 %v3936
        %v4065 = vpack.c.b16 %v4049, %v4049
        %v4066 = vpack.c.b16 %v4050, %v4050
        %v4067 = vpack.c.b16 %v4051, %v4051
        %v4068 = vpack.c.b16 %v4052, %v4052
        %v4069 = vpack.c.b16 %v4053, %v4053
        %v4070 = vpack.c.b16 %v4054, %v4054
        %v4071 = vpack.c.b16 %v4055, %v4055
        %v4072 = vpack.c.b16 %v4056, %v4056
        %v4073 = vpack.c.b16 %v4057, %v4057
        %v4074 = vpack.c.b16 %v4058, %v4058
        %v4075 = vpack.c.b16 %v4059, %v4059
        %v4076 = vpack.c.b16 %v4060, %v4060
        %v4077 = vpack.c.b16 %v4061, %v4061
        %v4078 = vpack.c.b16 %v4062, %v4062
        %v4079 = vpack.c.b16 %v4063, %v4063
        %v4080 = vpack.c.b16 %v4064, %v4064
        %v4082 = vshrl.u32 %v4001, 16
        %v4084 = vshll.u32 %v4001, 16
        %v4086 = vrot.slane %v4084, 1
        %v4087 = vor.u32 %v4082, %v4086
        %v4089 = vshll.u32 %v4065, 16
        %v4091 = vrot.slane %v4089, 1
        %v4092 = vsel %vm486, %v4087, %v4091
        %v4094 = vshrl.u32 %v4002, 16
        %v4096 = vshll.u32 %v4002, 16
        %v4098 = vrot.slane %v4096, 1
        %v4099 = vor.u32 %v4094, %v4098
        %v4101 = vshll.u32 %v4066, 16
        %v4103 = vrot.slane %v4101, 1
        %v4104 = vsel %vm486, %v4099, %v4103
        %v4106 = vshrl.u32 %v4003, 16
        %v4108 = vshll.u32 %v4003, 16
        %v4110 = vrot.slane %v4108, 1
        %v4111 = vor.u32 %v4106, %v4110
        %v4113 = vshll.u32 %v4067, 16
        %v4115 = vrot.slane %v4113, 1
        %v4116 = vsel %vm486, %v4111, %v4115
        %v4118 = vshrl.u32 %v4004, 16
        %v4120 = vshll.u32 %v4004, 16
        %v4122 = vrot.slane %v4120, 1
        %v4123 = vor.u32 %v4118, %v4122
        %v4125 = vshll.u32 %v4068, 16
        %v4127 = vrot.slane %v4125, 1
        %v4128 = vsel %vm486, %v4123, %v4127
        %v4130 = vshrl.u32 %v4005, 16
        %v4132 = vshll.u32 %v4005, 16
        %v4134 = vrot.slane %v4132, 1
        %v4135 = vor.u32 %v4130, %v4134
        %v4137 = vshll.u32 %v4069, 16
        %v4139 = vrot.slane %v4137, 1
        %v4140 = vsel %vm486, %v4135, %v4139
        %v4142 = vshrl.u32 %v4006, 16
        %v4144 = vshll.u32 %v4006, 16
        %v4146 = vrot.slane %v4144, 1
        %v4147 = vor.u32 %v4142, %v4146
        %v4149 = vshll.u32 %v4070, 16
        %v4151 = vrot.slane %v4149, 1
        %v4152 = vsel %vm486, %v4147, %v4151
        %v4154 = vshrl.u32 %v4007, 16
        %v4156 = vshll.u32 %v4007, 16
        %v4158 = vrot.slane %v4156, 1
        %v4159 = vor.u32 %v4154, %v4158
        %v4161 = vshll.u32 %v4071, 16
        %v4163 = vrot.slane %v4161, 1
        %v4164 = vsel %vm486, %v4159, %v4163
        %v4166 = vshrl.u32 %v4008, 16
        %v4168 = vshll.u32 %v4008, 16
        %v4170 = vrot.slane %v4168, 1
        %v4171 = vor.u32 %v4166, %v4170
        %v4173 = vshll.u32 %v4072, 16
        %v4175 = vrot.slane %v4173, 1
        %v4176 = vsel %vm486, %v4171, %v4175
        %v4178 = vshrl.u32 %v4009, 16
        %v4180 = vshll.u32 %v4009, 16
        %v4182 = vrot.slane %v4180, 1
        %v4183 = vor.u32 %v4178, %v4182
        %v4185 = vshll.u32 %v4073, 16
        %v4187 = vrot.slane %v4185, 1
        %v4188 = vsel %vm486, %v4183, %v4187
        %v4190 = vshrl.u32 %v4010, 16
        %v4192 = vshll.u32 %v4010, 16
        %v4194 = vrot.slane %v4192, 1
        %v4195 = vor.u32 %v4190, %v4194
        %v4197 = vshll.u32 %v4074, 16
        %v4199 = vrot.slane %v4197, 1
        %v4200 = vsel %vm486, %v4195, %v4199
        %v4202 = vshrl.u32 %v4011, 16
        %v4204 = vshll.u32 %v4011, 16
        %v4206 = vrot.slane %v4204, 1
        %v4207 = vor.u32 %v4202, %v4206
        %v4209 = vshll.u32 %v4075, 16
        %v4211 = vrot.slane %v4209, 1
        %v4212 = vsel %vm486, %v4207, %v4211
        %v4214 = vshrl.u32 %v4012, 16
        %v4216 = vshll.u32 %v4012, 16
        %v4218 = vrot.slane %v4216, 1
        %v4219 = vor.u32 %v4214, %v4218
        %v4221 = vshll.u32 %v4076, 16
        %v4223 = vrot.slane %v4221, 1
        %v4224 = vsel %vm486, %v4219, %v4223
        %v4226 = vshrl.u32 %v4013, 16
        %v4228 = vshll.u32 %v4013, 16
        %v4230 = vrot.slane %v4228, 1
        %v4231 = vor.u32 %v4226, %v4230
        %v4233 = vshll.u32 %v4077, 16
        %v4235 = vrot.slane %v4233, 1
        %v4236 = vsel %vm486, %v4231, %v4235
        %v4238 = vshrl.u32 %v4014, 16
        %v4240 = vshll.u32 %v4014, 16
        %v4242 = vrot.slane %v4240, 1
        %v4243 = vor.u32 %v4238, %v4242
        %v4245 = vshll.u32 %v4078, 16
        %v4247 = vrot.slane %v4245, 1
        %v4248 = vsel %vm486, %v4243, %v4247
        %v4250 = vshrl.u32 %v4015, 16
        %v4252 = vshll.u32 %v4015, 16
        %v4254 = vrot.slane %v4252, 1
        %v4255 = vor.u32 %v4250, %v4254
        %v4257 = vshll.u32 %v4079, 16
        %v4259 = vrot.slane %v4257, 1
        %v4260 = vsel %vm486, %v4255, %v4259
        %v4262 = vshrl.u32 %v4016, 16
        %v4264 = vshll.u32 %v4016, 16
        %v4266 = vrot.slane %v4264, 1
        %v4267 = vor.u32 %v4262, %v4266
        %v4269 = vshll.u32 %v4080, 16
        %v4271 = vrot.slane %v4269, 1
        %v4272 = vsel %vm486, %v4267, %v4271
        %v4289 = vrot.slane %v4001, 1
        %v4290 = vrot.slane %v4065, 1
        %v4291 = vsel %vm695, %v4289, %v4290
        %v4292 = vrot.slane %v4002, 1
        %v4293 = vrot.slane %v4066, 1
        %v4294 = vsel %vm695, %v4292, %v4293
        %v4295 = vrot.slane %v4003, 1
        %v4296 = vrot.slane %v4067, 1
        %v4297 = vsel %vm695, %v4295, %v4296
        %v4298 = vrot.slane %v4004, 1
        %v4299 = vrot.slane %v4068, 1
        %v4300 = vsel %vm695, %v4298, %v4299
        %v4301 = vrot.slane %v4005, 1
        %v4302 = vrot.slane %v4069, 1
        %v4303 = vsel %vm695, %v4301, %v4302
        %v4304 = vrot.slane %v4006, 1
        %v4305 = vrot.slane %v4070, 1
        %v4306 = vsel %vm695, %v4304, %v4305
        %v4307 = vrot.slane %v4007, 1
        %v4308 = vrot.slane %v4071, 1
        %v4309 = vsel %vm695, %v4307, %v4308
        %v4310 = vrot.slane %v4008, 1
        %v4311 = vrot.slane %v4072, 1
        %v4312 = vsel %vm695, %v4310, %v4311
        %v4313 = vrot.slane %v4009, 1
        %v4314 = vrot.slane %v4073, 1
        %v4315 = vsel %vm695, %v4313, %v4314
        %v4316 = vrot.slane %v4010, 1
        %v4317 = vrot.slane %v4074, 1
        %v4318 = vsel %vm695, %v4316, %v4317
        %v4319 = vrot.slane %v4011, 1
        %v4320 = vrot.slane %v4075, 1
        %v4321 = vsel %vm695, %v4319, %v4320
        %v4322 = vrot.slane %v4012, 1
        %v4323 = vrot.slane %v4076, 1
        %v4324 = vsel %vm695, %v4322, %v4323
        %v4325 = vrot.slane %v4013, 1
        %v4326 = vrot.slane %v4077, 1
        %v4327 = vsel %vm695, %v4325, %v4326
        %v4328 = vrot.slane %v4014, 1
        %v4329 = vrot.slane %v4078, 1
        %v4330 = vsel %vm695, %v4328, %v4329
        %v4331 = vrot.slane %v4015, 1
        %v4332 = vrot.slane %v4079, 1
        %v4333 = vsel %vm695, %v4331, %v4332
        %v4334 = vrot.slane %v4016, 1
        %v4335 = vrot.slane %v4080, 1
        %v4336 = vsel %vm695, %v4334, %v4335
        %s4353 = scalar_lea.vmem [#allocation3], 192
        %v4354 = vld [vmem:[%s4353] sm:$0xf]
        %v4355 = vld [vmem:[%s4353 + $0x4] sm:$0xf]
        %v4356 = vld [vmem:[%s4353 + $0x8] sm:$0xf]
        %v4357 = vld [vmem:[%s4353 + $0xc] sm:$0xf]
        %v4358 = vld [vmem:[%s4353 + $0x10] sm:$0xf]
        %v4359 = vld [vmem:[%s4353 + $0x14] sm:$0xf]
        %v4360 = vld [vmem:[%s4353 + $0x18] sm:$0xf]
        %v4361 = vld [vmem:[%s4353 + $0x1c] sm:$0xf]
        %v4362 = vld [vmem:[%s4353 + $0x20] sm:$0xf]
        %v4363 = vld [vmem:[%s4353 + $0x24] sm:$0xf]
        %v4364 = vld [vmem:[%s4353 + $0x28] sm:$0xf]
        %v4365 = vld [vmem:[%s4353 + $0x2c] sm:$0xf]
        %v4366 = vld [vmem:[%s4353 + $0x30] sm:$0xf]
        %v4367 = vld [vmem:[%s4353 + $0x34] sm:$0xf]
        %v4368 = vld [vmem:[%s4353 + $0x38] sm:$0xf]
        %v4369 = vld [vmem:[%s4353 + $0x3c] sm:$0xf]
        %v4370 = vld [vmem:[%s4353 + $0x40] sm:$0xf]
        %v4371 = vld [vmem:[%s4353 + $0x44] sm:$0xf]
        %v4372 = vld [vmem:[%s4353 + $0x48] sm:$0xf]
        %v4373 = vld [vmem:[%s4353 + $0x4c] sm:$0xf]
        %v4374 = vld [vmem:[%s4353 + $0x50] sm:$0xf]
        %v4375 = vld [vmem:[%s4353 + $0x54] sm:$0xf]
        %v4376 = vld [vmem:[%s4353 + $0x58] sm:$0xf]
        %v4377 = vld [vmem:[%s4353 + $0x5c] sm:$0xf]
        %v4378 = vld [vmem:[%s4353 + $0x60] sm:$0xf]
        %v4379 = vld [vmem:[%s4353 + $0x64] sm:$0xf]
        %v4380 = vld [vmem:[%s4353 + $0x68] sm:$0xf]
        %v4381 = vld [vmem:[%s4353 + $0x6c] sm:$0xf]
        %v4382 = vld [vmem:[%s4353 + $0x70] sm:$0xf]
        %v4383 = vld [vmem:[%s4353 + $0x74] sm:$0xf]
        %v4384 = vld [vmem:[%s4353 + $0x78] sm:$0xf]
        %v4385 = vld [vmem:[%s4353 + $0x7c] sm:$0xf]
        %v4386 = vld [vmem:[%s4353 + $0x80] sm:$0xf]
        %v4387 = vld [vmem:[%s4353 + $0x84] sm:$0xf]
        %v4388 = vld [vmem:[%s4353 + $0x88] sm:$0xf]
        %v4389 = vld [vmem:[%s4353 + $0x8c] sm:$0xf]
        %v4390 = vld [vmem:[%s4353 + $0x90] sm:$0xf]
        %v4391 = vld [vmem:[%s4353 + $0x94] sm:$0xf]
        %v4392 = vld [vmem:[%s4353 + $0x98] sm:$0xf]
        %v4393 = vld [vmem:[%s4353 + $0x9c] sm:$0xf]
        %v4394 = vld [vmem:[%s4353 + $0xa0] sm:$0xf]
        %v4395 = vld [vmem:[%s4353 + $0xa4] sm:$0xf]
        %v4396 = vld [vmem:[%s4353 + $0xa8] sm:$0xf]
        %v4397 = vld [vmem:[%s4353 + $0xac] sm:$0xf]
        %v4398 = vld [vmem:[%s4353 + $0xb0] sm:$0xf]
        %v4399 = vld [vmem:[%s4353 + $0xb4] sm:$0xf]
        %v4400 = vld [vmem:[%s4353 + $0xb8] sm:$0xf]
        %v4401 = vld [vmem:[%s4353 + $0xbc] sm:$0xf]
        %v4450 = vunpack.c.l.b16 %v4354
        %v4451 = vunpack.c.l.b16 %v4355
        %v4452 = vunpack.c.l.b16 %v4356
        %v4453 = vunpack.c.l.b16 %v4357
        %v4454 = vunpack.c.l.b16 %v4358
        %v4455 = vunpack.c.l.b16 %v4359
        %v4456 = vunpack.c.l.b16 %v4360
        %v4457 = vunpack.c.l.b16 %v4361
        %v4458 = vunpack.c.l.b16 %v4362
        %v4459 = vunpack.c.l.b16 %v4363
        %v4460 = vunpack.c.l.b16 %v4364
        %v4461 = vunpack.c.l.b16 %v4365
        %v4462 = vunpack.c.l.b16 %v4366
        %v4463 = vunpack.c.l.b16 %v4367
        %v4464 = vunpack.c.l.b16 %v4368
        %v4465 = vunpack.c.l.b16 %v4369
        %v4466 = vunpack.c.l.b16 %v4370
        %v4467 = vunpack.c.l.b16 %v4371
        %v4468 = vunpack.c.l.b16 %v4372
        %v4469 = vunpack.c.l.b16 %v4373
        %v4470 = vunpack.c.l.b16 %v4374
        %v4471 = vunpack.c.l.b16 %v4375
        %v4472 = vunpack.c.l.b16 %v4376
        %v4473 = vunpack.c.l.b16 %v4377
        %v4474 = vunpack.c.l.b16 %v4378
        %v4475 = vunpack.c.l.b16 %v4379
        %v4476 = vunpack.c.l.b16 %v4380
        %v4477 = vunpack.c.l.b16 %v4381
        %v4478 = vunpack.c.l.b16 %v4382
        %v4479 = vunpack.c.l.b16 %v4383
        %v4480 = vunpack.c.l.b16 %v4384
        %v4481 = vunpack.c.l.b16 %v4385
        %v4482 = vunpack.c.l.b16 %v4386
        %v4483 = vunpack.c.l.b16 %v4387
        %v4484 = vunpack.c.l.b16 %v4388
        %v4485 = vunpack.c.l.b16 %v4389
        %v4486 = vunpack.c.l.b16 %v4390
        %v4487 = vunpack.c.l.b16 %v4391
        %v4488 = vunpack.c.l.b16 %v4392
        %v4489 = vunpack.c.l.b16 %v4393
        %v4490 = vunpack.c.l.b16 %v4394
        %v4491 = vunpack.c.l.b16 %v4395
        %v4492 = vunpack.c.l.b16 %v4396
        %v4493 = vunpack.c.l.b16 %v4397
        %v4494 = vunpack.c.l.b16 %v4398
        %v4495 = vunpack.c.l.b16 %v4399
        %v4496 = vunpack.c.l.b16 %v4400
        %v4497 = vunpack.c.l.b16 %v4401
        %v4498 = vpack.c.b16 %v4451, %v4450
        %v4499 = vpack.c.b16 %v4453, %v4452
        %v4500 = vpack.c.b16 %v4455, %v4454
        %v4501 = vpack.c.b16 %v4457, %v4456
        %v4502 = vpack.c.b16 %v4459, %v4458
        %v4503 = vpack.c.b16 %v4461, %v4460
        %v4504 = vpack.c.b16 %v4463, %v4462
        %v4505 = vpack.c.b16 %v4465, %v4464
        %v4506 = vpack.c.b16 %v4467, %v4466
        %v4507 = vpack.c.b16 %v4469, %v4468
        %v4508 = vpack.c.b16 %v4471, %v4470
        %v4509 = vpack.c.b16 %v4473, %v4472
        %v4510 = vpack.c.b16 %v4475, %v4474
        %v4511 = vpack.c.b16 %v4477, %v4476
        %v4512 = vpack.c.b16 %v4479, %v4478
        %v4513 = vpack.c.b16 %v4481, %v4480
        %v4514 = vpack.c.b16 %v4483, %v4482
        %v4515 = vpack.c.b16 %v4485, %v4484
        %v4516 = vpack.c.b16 %v4487, %v4486
        %v4517 = vpack.c.b16 %v4489, %v4488
        %v4518 = vpack.c.b16 %v4491, %v4490
        %v4519 = vpack.c.b16 %v4493, %v4492
        %v4520 = vpack.c.b16 %v4495, %v4494
        %v4521 = vpack.c.b16 %v4497, %v4496
        %4546 = vmatpush.bf16.msra.mxu0 %v4505
        %4547 = vmatpush.bf16.msra.mxu0 %v4504
        %4548 = vmatpush.bf16.msra.mxu0 %v4503
        %4549 = vmatpush.bf16.msra.mxu0 %v4502
        %4550 = vmatpush.bf16.msra.mxu0 %v4501
        %4551 = vmatpush.bf16.msra.mxu0 %v4500
        %4552 = vmatpush.bf16.msra.mxu0 %v4499
        %4553 = vmatpush.bf16.msra.mxu0 %v4498
        %4554 = vmatmul.bf16.gmra.mxu0 %v4001
        %v4555 = vpop.f32.mrf.mxu0
        %v4556 = vadd.f32 0.0, %v4555
        %v4557 = vpop.f32.mrf.mxu0
        %v4558 = vadd.f32 0.0, %v4557
        %4559 = vmatmul.bf16.gmra.mxu0 %v4002
        %v4560 = vpop.f32.mrf.mxu0
        %v4561 = vadd.f32 0.0, %v4560
        %v4562 = vpop.f32.mrf.mxu0
        %v4563 = vadd.f32 0.0, %v4562
        %4564 = vmatmul.bf16.gmra.mxu0 %v4003
        %v4565 = vpop.f32.mrf.mxu0
        %v4566 = vadd.f32 0.0, %v4565
        %v4567 = vpop.f32.mrf.mxu0
        %v4568 = vadd.f32 0.0, %v4567
        %4569 = vmatmul.bf16.gmra.mxu0 %v4004
        %v4570 = vpop.f32.mrf.mxu0
        %v4571 = vadd.f32 0.0, %v4570
        %v4572 = vpop.f32.mrf.mxu0
        %v4573 = vadd.f32 0.0, %v4572
        %4574 = vmatmul.bf16.gmra.mxu0 %v4005
        %v4575 = vpop.f32.mrf.mxu0
        %v4576 = vadd.f32 0.0, %v4575
        %v4577 = vpop.f32.mrf.mxu0
        %v4578 = vadd.f32 0.0, %v4577
        %4579 = vmatmul.bf16.gmra.mxu0 %v4006
        %v4580 = vpop.f32.mrf.mxu0
        %v4581 = vadd.f32 0.0, %v4580
        %v4582 = vpop.f32.mrf.mxu0
        %v4583 = vadd.f32 0.0, %v4582
        %4584 = vmatmul.bf16.gmra.mxu0 %v4007
        %v4585 = vpop.f32.mrf.mxu0
        %v4586 = vadd.f32 0.0, %v4585
        %v4587 = vpop.f32.mrf.mxu0
        %v4588 = vadd.f32 0.0, %v4587
        %4589 = vmatmul.bf16.gmra.mxu0 %v4008
        %v4590 = vpop.f32.mrf.mxu0
        %v4591 = vadd.f32 0.0, %v4590
        %v4592 = vpop.f32.mrf.mxu0
        %v4593 = vadd.f32 0.0, %v4592
        %4594 = vmatmul.bf16.gmra.mxu0 %v4009
        %v4595 = vpop.f32.mrf.mxu0
        %v4596 = vadd.f32 0.0, %v4595
        %v4597 = vpop.f32.mrf.mxu0
        %v4598 = vadd.f32 0.0, %v4597
        %4599 = vmatmul.bf16.gmra.mxu0 %v4010
        %v4600 = vpop.f32.mrf.mxu0
        %v4601 = vadd.f32 0.0, %v4600
        %v4602 = vpop.f32.mrf.mxu0
        %v4603 = vadd.f32 0.0, %v4602
        %4604 = vmatmul.bf16.gmra.mxu0 %v4011
        %v4605 = vpop.f32.mrf.mxu0
        %v4606 = vadd.f32 0.0, %v4605
        %v4607 = vpop.f32.mrf.mxu0
        %v4608 = vadd.f32 0.0, %v4607
        %4609 = vmatmul.bf16.gmra.mxu0 %v4012
        %v4610 = vpop.f32.mrf.mxu0
        %v4611 = vadd.f32 0.0, %v4610
        %v4612 = vpop.f32.mrf.mxu0
        %v4613 = vadd.f32 0.0, %v4612
        %4614 = vmatmul.bf16.gmra.mxu0 %v4013
        %v4615 = vpop.f32.mrf.mxu0
        %v4616 = vadd.f32 0.0, %v4615
        %v4617 = vpop.f32.mrf.mxu0
        %v4618 = vadd.f32 0.0, %v4617
        %4619 = vmatmul.bf16.gmra.mxu0 %v4014
        %v4620 = vpop.f32.mrf.mxu0
        %v4621 = vadd.f32 0.0, %v4620
        %v4622 = vpop.f32.mrf.mxu0
        %v4623 = vadd.f32 0.0, %v4622
        %4624 = vmatmul.bf16.gmra.mxu0 %v4015
        %v4625 = vpop.f32.mrf.mxu0
        %v4626 = vadd.f32 0.0, %v4625
        %v4627 = vpop.f32.mrf.mxu0
        %v4628 = vadd.f32 0.0, %v4627
        %4629 = vmatmul.bf16.gmra.mxu0 %v4016
        %v4630 = vpop.f32.mrf.mxu0
        %v4631 = vadd.f32 0.0, %v4630
        %v4632 = vpop.f32.mrf.mxu0
        %v4633 = vadd.f32 0.0, %v4632
        %4634 = vdwg.mxu0
        %4635 = vmatpush.bf16.msra.mxu0 %v4513
        %4636 = vmatpush.bf16.msra.mxu0 %v4512
        %4637 = vmatpush.bf16.msra.mxu0 %v4511
        %4638 = vmatpush.bf16.msra.mxu0 %v4510
        %4639 = vmatpush.bf16.msra.mxu0 %v4509
        %4640 = vmatpush.bf16.msra.mxu0 %v4508
        %4641 = vmatpush.bf16.msra.mxu0 %v4507
        %4642 = vmatpush.bf16.msra.mxu0 %v4506
        %4643 = vmatmul.bf16.gmra.mxu0 %v4092
        %v4644 = vpop.f32.mrf.mxu0
        %v4645 = vadd.f32 %v4556, %v4644
        %v4646 = vpop.f32.mrf.mxu0
        %v4647 = vadd.f32 %v4558, %v4646
        %4648 = vmatmul.bf16.gmra.mxu0 %v4104
        %v4649 = vpop.f32.mrf.mxu0
        %v4650 = vadd.f32 %v4561, %v4649
        %v4651 = vpop.f32.mrf.mxu0
        %v4652 = vadd.f32 %v4563, %v4651
        %4653 = vmatmul.bf16.gmra.mxu0 %v4116
        %v4654 = vpop.f32.mrf.mxu0
        %v4655 = vadd.f32 %v4566, %v4654
        %v4656 = vpop.f32.mrf.mxu0
        %v4657 = vadd.f32 %v4568, %v4656
        %4658 = vmatmul.bf16.gmra.mxu0 %v4128
        %v4659 = vpop.f32.mrf.mxu0
        %v4660 = vadd.f32 %v4571, %v4659
        %v4661 = vpop.f32.mrf.mxu0
        %v4662 = vadd.f32 %v4573, %v4661
        %4663 = vmatmul.bf16.gmra.mxu0 %v4140
        %v4664 = vpop.f32.mrf.mxu0
        %v4665 = vadd.f32 %v4576, %v4664
        %v4666 = vpop.f32.mrf.mxu0
        %v4667 = vadd.f32 %v4578, %v4666
        %4668 = vmatmul.bf16.gmra.mxu0 %v4152
        %v4669 = vpop.f32.mrf.mxu0
        %v4670 = vadd.f32 %v4581, %v4669
        %v4671 = vpop.f32.mrf.mxu0
        %v4672 = vadd.f32 %v4583, %v4671
        %4673 = vmatmul.bf16.gmra.mxu0 %v4164
        %v4674 = vpop.f32.mrf.mxu0
        %v4675 = vadd.f32 %v4586, %v4674
        %v4676 = vpop.f32.mrf.mxu0
        %v4677 = vadd.f32 %v4588, %v4676
        %4678 = vmatmul.bf16.gmra.mxu0 %v4176
        %v4679 = vpop.f32.mrf.mxu0
        %v4680 = vadd.f32 %v4591, %v4679
        %v4681 = vpop.f32.mrf.mxu0
        %v4682 = vadd.f32 %v4593, %v4681
        %4683 = vmatmul.bf16.gmra.mxu0 %v4188
        %v4684 = vpop.f32.mrf.mxu0
        %v4685 = vadd.f32 %v4596, %v4684
        %v4686 = vpop.f32.mrf.mxu0
        %v4687 = vadd.f32 %v4598, %v4686
        %4688 = vmatmul.bf16.gmra.mxu0 %v4200
        %v4689 = vpop.f32.mrf.mxu0
        %v4690 = vadd.f32 %v4601, %v4689
        %v4691 = vpop.f32.mrf.mxu0
        %v4692 = vadd.f32 %v4603, %v4691
        %4693 = vmatmul.bf16.gmra.mxu0 %v4212
        %v4694 = vpop.f32.mrf.mxu0
        %v4695 = vadd.f32 %v4606, %v4694
        %v4696 = vpop.f32.mrf.mxu0
        %v4697 = vadd.f32 %v4608, %v4696
        %4698 = vmatmul.bf16.gmra.mxu0 %v4224
        %v4699 = vpop.f32.mrf.mxu0
        %v4700 = vadd.f32 %v4611, %v4699
        %v4701 = vpop.f32.mrf.mxu0
        %v4702 = vadd.f32 %v4613, %v4701
        %4703 = vmatmul.bf16.gmra.mxu0 %v4236
        %v4704 = vpop.f32.mrf.mxu0
        %v4705 = vadd.f32 %v4616, %v4704
        %v4706 = vpop.f32.mrf.mxu0
        %v4707 = vadd.f32 %v4618, %v4706
        %4708 = vmatmul.bf16.gmra.mxu0 %v4248
        %v4709 = vpop.f32.mrf.mxu0
        %v4710 = vadd.f32 %v4621, %v4709
        %v4711 = vpop.f32.mrf.mxu0
        %v4712 = vadd.f32 %v4623, %v4711
        %4713 = vmatmul.bf16.gmra.mxu0 %v4260
        %v4714 = vpop.f32.mrf.mxu0
        %v4715 = vadd.f32 %v4626, %v4714
        %v4716 = vpop.f32.mrf.mxu0
        %v4717 = vadd.f32 %v4628, %v4716
        %4718 = vmatmul.bf16.gmra.mxu0 %v4272
        %v4719 = vpop.f32.mrf.mxu0
        %v4720 = vadd.f32 %v4631, %v4719
        %v4721 = vpop.f32.mrf.mxu0
        %v4722 = vadd.f32 %v4633, %v4721
        %4723 = vdwg.mxu0
        %4724 = vmatpush.bf16.msra.mxu0 %v4521
        %4725 = vmatpush.bf16.msra.mxu0 %v4520
        %4726 = vmatpush.bf16.msra.mxu0 %v4519
        %4727 = vmatpush.bf16.msra.mxu0 %v4518
        %4728 = vmatpush.bf16.msra.mxu0 %v4517
        %4729 = vmatpush.bf16.msra.mxu0 %v4516
        %4730 = vmatpush.bf16.msra.mxu0 %v4515
        %4731 = vmatpush.bf16.msra.mxu0 %v4514
        %4732 = vmatmul.bf16.gmra.mxu0 %v4291
        %v4733 = vpop.f32.mrf.mxu0
        %v4734 = vadd.f32 %v4645, %v4733
        %v4735 = vpop.f32.mrf.mxu0
        %v4736 = vadd.f32 %v4647, %v4735
        %4737 = vmatmul.bf16.gmra.mxu0 %v4294
        %v4738 = vpop.f32.mrf.mxu0
        %v4739 = vadd.f32 %v4650, %v4738
        %v4740 = vpop.f32.mrf.mxu0
        %v4741 = vadd.f32 %v4652, %v4740
        %4742 = vmatmul.bf16.gmra.mxu0 %v4297
        %v4743 = vpop.f32.mrf.mxu0
        %v4744 = vadd.f32 %v4655, %v4743
        %v4745 = vpop.f32.mrf.mxu0
        %v4746 = vadd.f32 %v4657, %v4745
        %4747 = vmatmul.bf16.gmra.mxu0 %v4300
        %v4748 = vpop.f32.mrf.mxu0
        %v4749 = vadd.f32 %v4660, %v4748
        %v4750 = vpop.f32.mrf.mxu0
        %v4751 = vadd.f32 %v4662, %v4750
        %4752 = vmatmul.bf16.gmra.mxu0 %v4303
        %v4753 = vpop.f32.mrf.mxu0
        %v4754 = vadd.f32 %v4665, %v4753
        %v4755 = vpop.f32.mrf.mxu0
        %v4756 = vadd.f32 %v4667, %v4755
        %4757 = vmatmul.bf16.gmra.mxu0 %v4306
        %v4758 = vpop.f32.mrf.mxu0
        %v4759 = vadd.f32 %v4670, %v4758
        %v4760 = vpop.f32.mrf.mxu0
        %v4761 = vadd.f32 %v4672, %v4760
        %4762 = vmatmul.bf16.gmra.mxu0 %v4309
        %v4763 = vpop.f32.mrf.mxu0
        %v4764 = vadd.f32 %v4675, %v4763
        %v4765 = vpop.f32.mrf.mxu0
        %v4766 = vadd.f32 %v4677, %v4765
        %4767 = vmatmul.bf16.gmra.mxu0 %v4312
        %v4768 = vpop.f32.mrf.mxu0
        %v4769 = vadd.f32 %v4680, %v4768
        %v4770 = vpop.f32.mrf.mxu0
        %v4771 = vadd.f32 %v4682, %v4770
        %4772 = vmatmul.bf16.gmra.mxu0 %v4315
        %v4773 = vpop.f32.mrf.mxu0
        %v4774 = vadd.f32 %v4685, %v4773
        %v4775 = vpop.f32.mrf.mxu0
        %v4776 = vadd.f32 %v4687, %v4775
        %4777 = vmatmul.bf16.gmra.mxu0 %v4318
        %v4778 = vpop.f32.mrf.mxu0
        %v4779 = vadd.f32 %v4690, %v4778
        %v4780 = vpop.f32.mrf.mxu0
        %v4781 = vadd.f32 %v4692, %v4780
        %4782 = vmatmul.bf16.gmra.mxu0 %v4321
        %v4783 = vpop.f32.mrf.mxu0
        %v4784 = vadd.f32 %v4695, %v4783
        %v4785 = vpop.f32.mrf.mxu0
        %v4786 = vadd.f32 %v4697, %v4785
        %4787 = vmatmul.bf16.gmra.mxu0 %v4324
        %v4788 = vpop.f32.mrf.mxu0
        %v4789 = vadd.f32 %v4700, %v4788
        %v4790 = vpop.f32.mrf.mxu0
        %v4791 = vadd.f32 %v4702, %v4790
        %4792 = vmatmul.bf16.gmra.mxu0 %v4327
        %v4793 = vpop.f32.mrf.mxu0
        %v4794 = vadd.f32 %v4705, %v4793
        %v4795 = vpop.f32.mrf.mxu0
        %v4796 = vadd.f32 %v4707, %v4795
        %4797 = vmatmul.bf16.gmra.mxu0 %v4330
        %v4798 = vpop.f32.mrf.mxu0
        %v4799 = vadd.f32 %v4710, %v4798
        %v4800 = vpop.f32.mrf.mxu0
        %v4801 = vadd.f32 %v4712, %v4800
        %4802 = vmatmul.bf16.gmra.mxu0 %v4333
        %v4803 = vpop.f32.mrf.mxu0
        %v4804 = vadd.f32 %v4715, %v4803
        %v4805 = vpop.f32.mrf.mxu0
        %v4806 = vadd.f32 %v4717, %v4805
        %4807 = vmatmul.bf16.gmra.mxu0 %v4336
        %v4808 = vpop.f32.mrf.mxu0
        %v4809 = vadd.f32 %v4720, %v4808
        %v4810 = vpop.f32.mrf.mxu0
        %v4811 = vadd.f32 %v4722, %v4810
        %4812 = vdwg.mxu0
        %v4861 = vunpack.c.l.b16 %v3793
        %v4862 = vunpack.c.l.b16 %v3794
        %v4863 = vunpack.c.l.b16 %v3795
        %v4864 = vunpack.c.l.b16 %v3796
        %v4865 = vunpack.c.l.b16 %v3797
        %v4866 = vunpack.c.l.b16 %v3798
        %v4867 = vunpack.c.l.b16 %v3799
        %v4868 = vunpack.c.l.b16 %v3800
        %v4869 = vunpack.c.l.b16 %v3801
        %v4870 = vunpack.c.l.b16 %v3802
        %v4871 = vunpack.c.l.b16 %v3803
        %v4872 = vunpack.c.l.b16 %v3804
        %v4873 = vunpack.c.l.b16 %v3805
        %v4874 = vunpack.c.l.b16 %v3806
        %v4875 = vunpack.c.l.b16 %v3807
        %v4876 = vunpack.c.l.b16 %v3808
        %v4877 = vunpack.c.l.b16 %v3809
        %v4878 = vunpack.c.l.b16 %v3810
        %v4879 = vunpack.c.l.b16 %v3811
        %v4880 = vunpack.c.l.b16 %v3812
        %v4881 = vunpack.c.l.b16 %v3813
        %v4882 = vunpack.c.l.b16 %v3814
        %v4883 = vunpack.c.l.b16 %v3815
        %v4884 = vunpack.c.l.b16 %v3816
        %v4885 = vunpack.c.l.b16 %v3817
        %v4886 = vunpack.c.l.b16 %v3818
        %v4887 = vunpack.c.l.b16 %v3819
        %v4888 = vunpack.c.l.b16 %v3820
        %v4889 = vunpack.c.l.b16 %v3821
        %v4890 = vunpack.c.l.b16 %v3822
        %v4891 = vunpack.c.l.b16 %v3823
        %v4892 = vunpack.c.l.b16 %v3824
        %v4893 = vunpack.c.l.b16 %v3825
        %v4894 = vunpack.c.l.b16 %v3826
        %v4895 = vunpack.c.l.b16 %v3827
        %v4896 = vunpack.c.l.b16 %v3828
        %v4897 = vunpack.c.l.b16 %v3829
        %v4898 = vunpack.c.l.b16 %v3830
        %v4899 = vunpack.c.l.b16 %v3831
        %v4900 = vunpack.c.l.b16 %v3832
        %v4901 = vunpack.c.l.b16 %v3833
        %v4902 = vunpack.c.l.b16 %v3834
        %v4903 = vunpack.c.l.b16 %v3835
        %v4904 = vunpack.c.l.b16 %v3836
        %v4905 = vunpack.c.l.b16 %v3837
        %v4906 = vunpack.c.l.b16 %v3838
        %v4907 = vunpack.c.l.b16 %v3839
        %v4908 = vunpack.c.l.b16 %v3840
        %v4909 = vpack.c.b16 %v4862, %v4861
        %v4910 = vpack.c.b16 %v4864, %v4863
        %v4911 = vpack.c.b16 %v4866, %v4865
        %v4912 = vpack.c.b16 %v4868, %v4867
        %v4913 = vpack.c.b16 %v4870, %v4869
        %v4914 = vpack.c.b16 %v4872, %v4871
        %v4915 = vpack.c.b16 %v4874, %v4873
        %v4916 = vpack.c.b16 %v4876, %v4875
        %v4917 = vpack.c.b16 %v4878, %v4877
        %v4918 = vpack.c.b16 %v4880, %v4879
        %v4919 = vpack.c.b16 %v4882, %v4881
        %v4920 = vpack.c.b16 %v4884, %v4883
        %v4921 = vpack.c.b16 %v4886, %v4885
        %v4922 = vpack.c.b16 %v4888, %v4887
        %v4923 = vpack.c.b16 %v4890, %v4889
        %v4924 = vpack.c.b16 %v4892, %v4891
        %v4925 = vpack.c.b16 %v4894, %v4893
        %v4926 = vpack.c.b16 %v4896, %v4895
        %v4927 = vpack.c.b16 %v4898, %v4897
        %v4928 = vpack.c.b16 %v4900, %v4899
        %v4929 = vpack.c.b16 %v4902, %v4901
        %v4930 = vpack.c.b16 %v4904, %v4903
        %v4931 = vpack.c.b16 %v4906, %v4905
        %v4932 = vpack.c.b16 %v4908, %v4907
        %4957 = vmatpush.bf16.msra.mxu0 %v4916
        %4958 = vmatpush.bf16.msra.mxu0 %v4915
        %4959 = vmatpush.bf16.msra.mxu0 %v4914
        %4960 = vmatpush.bf16.msra.mxu0 %v4913
        %4961 = vmatpush.bf16.msra.mxu0 %v4912
        %4962 = vmatpush.bf16.msra.mxu0 %v4911
        %4963 = vmatpush.bf16.msra.mxu0 %v4910
        %4964 = vmatpush.bf16.msra.mxu0 %v4909
        %4965 = vmatmul.bf16.gmra.mxu0 %v3441
        %v4966 = vpop.f32.mrf.mxu0
        %v4967 = vadd.f32 %v4734, %v4966
        %v4968 = vpop.f32.mrf.mxu0
        %v4969 = vadd.f32 %v4736, %v4968
        %4970 = vmatmul.bf16.gmra.mxu0 %v3442
        %v4971 = vpop.f32.mrf.mxu0
        %v4972 = vadd.f32 %v4739, %v4971
        %v4973 = vpop.f32.mrf.mxu0
        %v4974 = vadd.f32 %v4741, %v4973
        %4975 = vmatmul.bf16.gmra.mxu0 %v3443
        %v4976 = vpop.f32.mrf.mxu0
        %v4977 = vadd.f32 %v4744, %v4976
        %v4978 = vpop.f32.mrf.mxu0
        %v4979 = vadd.f32 %v4746, %v4978
        %4980 = vmatmul.bf16.gmra.mxu0 %v3444
        %v4981 = vpop.f32.mrf.mxu0
        %v4982 = vadd.f32 %v4749, %v4981
        %v4983 = vpop.f32.mrf.mxu0
        %v4984 = vadd.f32 %v4751, %v4983
        %4985 = vmatmul.bf16.gmra.mxu0 %v3445
        %v4986 = vpop.f32.mrf.mxu0
        %v4987 = vadd.f32 %v4754, %v4986
        %v4988 = vpop.f32.mrf.mxu0
        %v4989 = vadd.f32 %v4756, %v4988
        %4990 = vmatmul.bf16.gmra.mxu0 %v3446
        %v4991 = vpop.f32.mrf.mxu0
        %v4992 = vadd.f32 %v4759, %v4991
        %v4993 = vpop.f32.mrf.mxu0
        %v4994 = vadd.f32 %v4761, %v4993
        %4995 = vmatmul.bf16.gmra.mxu0 %v3447
        %v4996 = vpop.f32.mrf.mxu0
        %v4997 = vadd.f32 %v4764, %v4996
        %v4998 = vpop.f32.mrf.mxu0
        %v4999 = vadd.f32 %v4766, %v4998
        %5000 = vmatmul.bf16.gmra.mxu0 %v3448
        %v5001 = vpop.f32.mrf.mxu0
        %v5002 = vadd.f32 %v4769, %v5001
        %v5003 = vpop.f32.mrf.mxu0
        %v5004 = vadd.f32 %v4771, %v5003
        %5005 = vmatmul.bf16.gmra.mxu0 %v3449
        %v5006 = vpop.f32.mrf.mxu0
        %v5007 = vadd.f32 %v4774, %v5006
        %v5008 = vpop.f32.mrf.mxu0
        %v5009 = vadd.f32 %v4776, %v5008
        %5010 = vmatmul.bf16.gmra.mxu0 %v3450
        %v5011 = vpop.f32.mrf.mxu0
        %v5012 = vadd.f32 %v4779, %v5011
        %v5013 = vpop.f32.mrf.mxu0
        %v5014 = vadd.f32 %v4781, %v5013
        %5015 = vmatmul.bf16.gmra.mxu0 %v3451
        %v5016 = vpop.f32.mrf.mxu0
        %v5017 = vadd.f32 %v4784, %v5016
        %v5018 = vpop.f32.mrf.mxu0
        %v5019 = vadd.f32 %v4786, %v5018
        %5020 = vmatmul.bf16.gmra.mxu0 %v3452
        %v5021 = vpop.f32.mrf.mxu0
        %v5022 = vadd.f32 %v4789, %v5021
        %v5023 = vpop.f32.mrf.mxu0
        %v5024 = vadd.f32 %v4791, %v5023
        %5025 = vmatmul.bf16.gmra.mxu0 %v3453
        %v5026 = vpop.f32.mrf.mxu0
        %v5027 = vadd.f32 %v4794, %v5026
        %v5028 = vpop.f32.mrf.mxu0
        %v5029 = vadd.f32 %v4796, %v5028
        %5030 = vmatmul.bf16.gmra.mxu0 %v3454
        %v5031 = vpop.f32.mrf.mxu0
        %v5032 = vadd.f32 %v4799, %v5031
        %v5033 = vpop.f32.mrf.mxu0
        %v5034 = vadd.f32 %v4801, %v5033
        %5035 = vmatmul.bf16.gmra.mxu0 %v3455
        %v5036 = vpop.f32.mrf.mxu0
        %v5037 = vadd.f32 %v4804, %v5036
        %v5038 = vpop.f32.mrf.mxu0
        %v5039 = vadd.f32 %v4806, %v5038
        %5040 = vmatmul.bf16.gmra.mxu0 %v3456
        %v5041 = vpop.f32.mrf.mxu0
        %v5042 = vadd.f32 %v4809, %v5041
        %v5043 = vpop.f32.mrf.mxu0
        %v5044 = vadd.f32 %v4811, %v5043
        %5045 = vdwg.mxu0
        %5046 = vmatpush.bf16.msra.mxu0 %v4924
        %5047 = vmatpush.bf16.msra.mxu0 %v4923
        %5048 = vmatpush.bf16.msra.mxu0 %v4922
        %5049 = vmatpush.bf16.msra.mxu0 %v4921
        %5050 = vmatpush.bf16.msra.mxu0 %v4920
        %5051 = vmatpush.bf16.msra.mxu0 %v4919
        %5052 = vmatpush.bf16.msra.mxu0 %v4918
        %5053 = vmatpush.bf16.msra.mxu0 %v4917
        %5054 = vmatmul.bf16.gmra.mxu0 %v3532
        %v5055 = vpop.f32.mrf.mxu0
        %v5056 = vadd.f32 %v4967, %v5055
        %v5057 = vpop.f32.mrf.mxu0
        %v5058 = vadd.f32 %v4969, %v5057
        %5059 = vmatmul.bf16.gmra.mxu0 %v3544
        %v5060 = vpop.f32.mrf.mxu0
        %v5061 = vadd.f32 %v4972, %v5060
        %v5062 = vpop.f32.mrf.mxu0
        %v5063 = vadd.f32 %v4974, %v5062
        %5064 = vmatmul.bf16.gmra.mxu0 %v3556
        %v5065 = vpop.f32.mrf.mxu0
        %v5066 = vadd.f32 %v4977, %v5065
        %v5067 = vpop.f32.mrf.mxu0
        %v5068 = vadd.f32 %v4979, %v5067
        %5069 = vmatmul.bf16.gmra.mxu0 %v3568
        %v5070 = vpop.f32.mrf.mxu0
        %v5071 = vadd.f32 %v4982, %v5070
        %v5072 = vpop.f32.mrf.mxu0
        %v5073 = vadd.f32 %v4984, %v5072
        %5074 = vmatmul.bf16.gmra.mxu0 %v3580
        %v5075 = vpop.f32.mrf.mxu0
        %v5076 = vadd.f32 %v4987, %v5075
        %v5077 = vpop.f32.mrf.mxu0
        %v5078 = vadd.f32 %v4989, %v5077
        %5079 = vmatmul.bf16.gmra.mxu0 %v3592
        %v5080 = vpop.f32.mrf.mxu0
        %v5081 = vadd.f32 %v4992, %v5080
        %v5082 = vpop.f32.mrf.mxu0
        %v5083 = vadd.f32 %v4994, %v5082
        %5084 = vmatmul.bf16.gmra.mxu0 %v3604
        %v5085 = vpop.f32.mrf.mxu0
        %v5086 = vadd.f32 %v4997, %v5085
        %v5087 = vpop.f32.mrf.mxu0
        %v5088 = vadd.f32 %v4999, %v5087
        %5089 = vmatmul.bf16.gmra.mxu0 %v3616
        %v5090 = vpop.f32.mrf.mxu0
        %v5091 = vadd.f32 %v5002, %v5090
        %v5092 = vpop.f32.mrf.mxu0
        %v5093 = vadd.f32 %v5004, %v5092
        %5094 = vmatmul.bf16.gmra.mxu0 %v3628
        %v5095 = vpop.f32.mrf.mxu0
        %v5096 = vadd.f32 %v5007, %v5095
        %v5097 = vpop.f32.mrf.mxu0
        %v5098 = vadd.f32 %v5009, %v5097
        %5099 = vmatmul.bf16.gmra.mxu0 %v3640
        %v5100 = vpop.f32.mrf.mxu0
        %v5101 = vadd.f32 %v5012, %v5100
        %v5102 = vpop.f32.mrf.mxu0
        %v5103 = vadd.f32 %v5014, %v5102
        %5104 = vmatmul.bf16.gmra.mxu0 %v3652
        %v5105 = vpop.f32.mrf.mxu0
        %v5106 = vadd.f32 %v5017, %v5105
        %v5107 = vpop.f32.mrf.mxu0
        %v5108 = vadd.f32 %v5019, %v5107
        %5109 = vmatmul.bf16.gmra.mxu0 %v3664
        %v5110 = vpop.f32.mrf.mxu0
        %v5111 = vadd.f32 %v5022, %v5110
        %v5112 = vpop.f32.mrf.mxu0
        %v5113 = vadd.f32 %v5024, %v5112
        %5114 = vmatmul.bf16.gmra.mxu0 %v3676
        %v5115 = vpop.f32.mrf.mxu0
        %v5116 = vadd.f32 %v5027, %v5115
        %v5117 = vpop.f32.mrf.mxu0
        %v5118 = vadd.f32 %v5029, %v5117
        %5119 = vmatmul.bf16.gmra.mxu0 %v3688
        %v5120 = vpop.f32.mrf.mxu0
        %v5121 = vadd.f32 %v5032, %v5120
        %v5122 = vpop.f32.mrf.mxu0
        %v5123 = vadd.f32 %v5034, %v5122
        %5124 = vmatmul.bf16.gmra.mxu0 %v3700
        %v5125 = vpop.f32.mrf.mxu0
        %v5126 = vadd.f32 %v5037, %v5125
        %v5127 = vpop.f32.mrf.mxu0
        %v5128 = vadd.f32 %v5039, %v5127
        %5129 = vmatmul.bf16.gmra.mxu0 %v3712
        %v5130 = vpop.f32.mrf.mxu0
        %v5131 = vadd.f32 %v5042, %v5130
        %v5132 = vpop.f32.mrf.mxu0
        %v5133 = vadd.f32 %v5044, %v5132
        %5134 = vdwg.mxu0
        %5135 = vmatpush.bf16.msra.mxu0 %v4932
        %5136 = vmatpush.bf16.msra.mxu0 %v4931
        %5137 = vmatpush.bf16.msra.mxu0 %v4930
        %5138 = vmatpush.bf16.msra.mxu0 %v4929
        %5139 = vmatpush.bf16.msra.mxu0 %v4928
        %5140 = vmatpush.bf16.msra.mxu0 %v4927
        %5141 = vmatpush.bf16.msra.mxu0 %v4926
        %5142 = vmatpush.bf16.msra.mxu0 %v4925
        %5143 = vmatmul.bf16.gmra.mxu0 %v3731
        %v5144 = vpop.f32.mrf.mxu0
        %v5145 = vadd.f32 %v5056, %v5144
        %v5146 = vpop.f32.mrf.mxu0
        %v5147 = vadd.f32 %v5058, %v5146
        %5148 = vmatmul.bf16.gmra.mxu0 %v3734
        %v5149 = vpop.f32.mrf.mxu0
        %v5150 = vadd.f32 %v5061, %v5149
        %v5151 = vpop.f32.mrf.mxu0
        %v5152 = vadd.f32 %v5063, %v5151
        %5153 = vmatmul.bf16.gmra.mxu0 %v3737
        %v5154 = vpop.f32.mrf.mxu0
        %v5155 = vadd.f32 %v5066, %v5154
        %v5156 = vpop.f32.mrf.mxu0
        %v5157 = vadd.f32 %v5068, %v5156
        %5158 = vmatmul.bf16.gmra.mxu0 %v3740
        %v5159 = vpop.f32.mrf.mxu0
        %v5160 = vadd.f32 %v5071, %v5159
        %v5161 = vpop.f32.mrf.mxu0
        %v5162 = vadd.f32 %v5073, %v5161
        %5163 = vmatmul.bf16.gmra.mxu0 %v3743
        %v5164 = vpop.f32.mrf.mxu0
        %v5165 = vadd.f32 %v5076, %v5164
        %v5166 = vpop.f32.mrf.mxu0
        %v5167 = vadd.f32 %v5078, %v5166
        %5168 = vmatmul.bf16.gmra.mxu0 %v3746
        %v5169 = vpop.f32.mrf.mxu0
        %v5170 = vadd.f32 %v5081, %v5169
        %v5171 = vpop.f32.mrf.mxu0
        %v5172 = vadd.f32 %v5083, %v5171
        %5173 = vmatmul.bf16.gmra.mxu0 %v3749
        %v5174 = vpop.f32.mrf.mxu0
        %v5175 = vadd.f32 %v5086, %v5174
        %v5176 = vpop.f32.mrf.mxu0
        %v5177 = vadd.f32 %v5088, %v5176
        %5178 = vmatmul.bf16.gmra.mxu0 %v3752
        %v5179 = vpop.f32.mrf.mxu0
        %v5180 = vadd.f32 %v5091, %v5179
        %v5181 = vpop.f32.mrf.mxu0
        %v5182 = vadd.f32 %v5093, %v5181
        %5183 = vmatmul.bf16.gmra.mxu0 %v3755
        %v5184 = vpop.f32.mrf.mxu0
        %v5185 = vadd.f32 %v5096, %v5184
        %v5186 = vpop.f32.mrf.mxu0
        %v5187 = vadd.f32 %v5098, %v5186
        %5188 = vmatmul.bf16.gmra.mxu0 %v3758
        %v5189 = vpop.f32.mrf.mxu0
        %v5190 = vadd.f32 %v5101, %v5189
        %v5191 = vpop.f32.mrf.mxu0
        %v5192 = vadd.f32 %v5103, %v5191
        %5193 = vmatmul.bf16.gmra.mxu0 %v3761
        %v5194 = vpop.f32.mrf.mxu0
        %v5195 = vadd.f32 %v5106, %v5194
        %v5196 = vpop.f32.mrf.mxu0
        %v5197 = vadd.f32 %v5108, %v5196
        %5198 = vmatmul.bf16.gmra.mxu0 %v3764
        %v5199 = vpop.f32.mrf.mxu0
        %v5200 = vadd.f32 %v5111, %v5199
        %v5201 = vpop.f32.mrf.mxu0
        %v5202 = vadd.f32 %v5113, %v5201
        %5203 = vmatmul.bf16.gmra.mxu0 %v3767
        %v5204 = vpop.f32.mrf.mxu0
        %v5205 = vadd.f32 %v5116, %v5204
        %v5206 = vpop.f32.mrf.mxu0
        %v5207 = vadd.f32 %v5118, %v5206
        %5208 = vmatmul.bf16.gmra.mxu0 %v3770
        %v5209 = vpop.f32.mrf.mxu0
        %v5210 = vadd.f32 %v5121, %v5209
        %v5211 = vpop.f32.mrf.mxu0
        %v5212 = vadd.f32 %v5123, %v5211
        %5213 = vmatmul.bf16.gmra.mxu0 %v3773
        %v5214 = vpop.f32.mrf.mxu0
        %v5215 = vadd.f32 %v5126, %v5214
        %v5216 = vpop.f32.mrf.mxu0
        %v5217 = vadd.f32 %v5128, %v5216
        %5218 = vmatmul.bf16.gmra.mxu0 %v3776
        %v5219 = vpop.f32.mrf.mxu0
        %v5220 = vadd.f32 %v5131, %v5219
        %v5221 = vpop.f32.mrf.mxu0
        %v5222 = vadd.f32 %v5133, %v5221
        %5223 = vdwg.mxu0
        %s5224 = scalar_lea.vmem [#allocation2], 48
        %v5225 = vld [vmem:[%s5224] sm:$0xff]
        %v5226 = vld [vmem:[%s5224 + $0x8] sm:$0xff]
        %v5227 = vld [vmem:[%s5224 + $0x10] sm:$0x3]
        %v5228 = vld [vmem:[%s5224 + $0x18] sm:$0xff]
        %v5229 = vld [vmem:[%s5224 + $0x20] sm:$0xff]
        %v5230 = vld [vmem:[%s5224 + $0x28] sm:$0x3]
        %v5231 = vld [vmem:[%s5224 + $0x30] sm:$0xff]
        %v5232 = vld [vmem:[%s5224 + $0x38] sm:$0xff]
        %v5233 = vld [vmem:[%s5224 + $0x40] sm:$0x3]
        %v5234 = vld [vmem:[%s5224 + $0x48] sm:$0xff]
        %v5235 = vld [vmem:[%s5224 + $0x50] sm:$0xff]
        %v5236 = vld [vmem:[%s5224 + $0x58] sm:$0x3]
        %v5237 = vld [vmem:[%s5224 + $0x60] sm:$0xff]
        %v5238 = vld [vmem:[%s5224 + $0x68] sm:$0xff]
        %v5239 = vld [vmem:[%s5224 + $0x70] sm:$0x3]
        %v5240 = vld [vmem:[%s5224 + $0x78] sm:$0xff]
        %v5241 = vld [vmem:[%s5224 + $0x80] sm:$0xff]
        %v5242 = vld [vmem:[%s5224 + $0x88] sm:$0x3]
        %v5243 = vld [vmem:[%s5224 + $0x90] sm:$0xff]
        %v5244 = vld [vmem:[%s5224 + $0x98] sm:$0xff]
        %v5245 = vld [vmem:[%s5224 + $0xa0] sm:$0x3]
        %v5246 = vld [vmem:[%s5224 + $0xa8] sm:$0xff]
        %v5247 = vld [vmem:[%s5224 + $0xb0] sm:$0xff]
        %v5248 = vld [vmem:[%s5224 + $0xb8] sm:$0x3]
        %v5249 = vld [vmem:[%s5224 + $0xc0] sm:$0xff]
        %v5250 = vld [vmem:[%s5224 + $0xc8] sm:$0xff]
        %v5251 = vld [vmem:[%s5224 + $0xd0] sm:$0x3]
        %v5252 = vld [vmem:[%s5224 + $0xd8] sm:$0xff]
        %v5253 = vld [vmem:[%s5224 + $0xe0] sm:$0xff]
        %v5254 = vld [vmem:[%s5224 + $0xe8] sm:$0x3]
        %v5255 = vld [vmem:[%s5224 + $0xf0] sm:$0xff]
        %v5256 = vld [vmem:[%s5224 + $0xf8] sm:$0xff]
        %v5257 = vld [vmem:[%s5224 + $0x100] sm:$0x3]
        %v5258 = vld [vmem:[%s5224 + $0x108] sm:$0xff]
        %v5259 = vld [vmem:[%s5224 + $0x110] sm:$0xff]
        %v5260 = vld [vmem:[%s5224 + $0x118] sm:$0x3]
        %v5261 = vld [vmem:[%s5224 + $0x120] sm:$0xff]
        %v5262 = vld [vmem:[%s5224 + $0x128] sm:$0xff]
        %v5263 = vld [vmem:[%s5224 + $0x130] sm:$0x3]
        %v5264 = vld [vmem:[%s5224 + $0x138] sm:$0xff]
        %v5265 = vld [vmem:[%s5224 + $0x140] sm:$0xff]
        %v5266 = vld [vmem:[%s5224 + $0x148] sm:$0x3]
        %v5267 = vld [vmem:[%s5224 + $0x150] sm:$0xff]
        %v5268 = vld [vmem:[%s5224 + $0x158] sm:$0xff]
        %v5269 = vld [vmem:[%s5224 + $0x160] sm:$0x3]
        %v5270 = vld [vmem:[%s5224 + $0x168] sm:$0xff]
        %v5271 = vld [vmem:[%s5224 + $0x170] sm:$0xff]
        %v5272 = vld [vmem:[%s5224 + $0x178] sm:$0x3]
        %v5273 = vpack.c.bf16 %v5225, %v5225
        %v5274 = vpack.c.bf16 %v5226, %v5226
        %v5275 = vpack.c.bf16 %v5227, %v5227
        %v5276 = vpack.c.bf16 %v5228, %v5228
        %v5277 = vpack.c.bf16 %v5229, %v5229
        %v5278 = vpack.c.bf16 %v5230, %v5230
        %v5279 = vpack.c.bf16 %v5231, %v5231
        %v5280 = vpack.c.bf16 %v5232, %v5232
        %v5281 = vpack.c.bf16 %v5233, %v5233
        %v5282 = vpack.c.bf16 %v5234, %v5234
        %v5283 = vpack.c.bf16 %v5235, %v5235
        %v5284 = vpack.c.bf16 %v5236, %v5236
        %v5285 = vpack.c.bf16 %v5237, %v5237
        %v5286 = vpack.c.bf16 %v5238, %v5238
        %v5287 = vpack.c.bf16 %v5239, %v5239
        %v5288 = vpack.c.bf16 %v5240, %v5240
        %v5289 = vpack.c.bf16 %v5241, %v5241
        %v5290 = vpack.c.bf16 %v5242, %v5242
        %v5291 = vpack.c.bf16 %v5243, %v5243
        %v5292 = vpack.c.bf16 %v5244, %v5244
        %v5293 = vpack.c.bf16 %v5245, %v5245
        %v5294 = vpack.c.bf16 %v5246, %v5246
        %v5295 = vpack.c.bf16 %v5247, %v5247
        %v5296 = vpack.c.bf16 %v5248, %v5248
        %v5297 = vpack.c.bf16 %v5249, %v5249
        %v5298 = vpack.c.bf16 %v5250, %v5250
        %v5299 = vpack.c.bf16 %v5251, %v5251
        %v5300 = vpack.c.bf16 %v5252, %v5252
        %v5301 = vpack.c.bf16 %v5253, %v5253
        %v5302 = vpack.c.bf16 %v5254, %v5254
        %v5303 = vpack.c.bf16 %v5255, %v5255
        %v5304 = vpack.c.bf16 %v5256, %v5256
        %v5305 = vpack.c.bf16 %v5257, %v5257
        %v5306 = vpack.c.bf16 %v5258, %v5258
        %v5307 = vpack.c.bf16 %v5259, %v5259
        %v5308 = vpack.c.bf16 %v5260, %v5260
        %v5309 = vpack.c.bf16 %v5261, %v5261
        %v5310 = vpack.c.bf16 %v5262, %v5262
        %v5311 = vpack.c.bf16 %v5263, %v5263
        %v5312 = vpack.c.bf16 %v5264, %v5264
        %v5313 = vpack.c.bf16 %v5265, %v5265
        %v5314 = vpack.c.bf16 %v5266, %v5266
        %v5315 = vpack.c.bf16 %v5267, %v5267
        %v5316 = vpack.c.bf16 %v5268, %v5268
        %v5317 = vpack.c.bf16 %v5269, %v5269
        %v5318 = vpack.c.bf16 %v5270, %v5270
        %v5319 = vpack.c.bf16 %v5271, %v5271
        %v5320 = vpack.c.bf16 %v5272, %v5272
        %v5353 = vunpack.c.l.b16 %v5273
        %v5354 = vunpack.c.l.b16 %v5274
        %v5355 = vunpack.c.l.b16 %v5276
        %v5356 = vunpack.c.l.b16 %v5277
        %v5357 = vunpack.c.l.b16 %v5279
        %v5358 = vunpack.c.l.b16 %v5280
        %v5359 = vunpack.c.l.b16 %v5282
        %v5360 = vunpack.c.l.b16 %v5283
        %v5361 = vunpack.c.l.b16 %v5285
        %v5362 = vunpack.c.l.b16 %v5286
        %v5363 = vunpack.c.l.b16 %v5288
        %v5364 = vunpack.c.l.b16 %v5289
        %v5365 = vunpack.c.l.b16 %v5291
        %v5366 = vunpack.c.l.b16 %v5292
        %v5367 = vunpack.c.l.b16 %v5294
        %v5368 = vunpack.c.l.b16 %v5295
        %v5369 = vunpack.c.l.b16 %v5297
        %v5370 = vunpack.c.l.b16 %v5298
        %v5371 = vunpack.c.l.b16 %v5300
        %v5372 = vunpack.c.l.b16 %v5301
        %v5373 = vunpack.c.l.b16 %v5303
        %v5374 = vunpack.c.l.b16 %v5304
        %v5375 = vunpack.c.l.b16 %v5306
        %v5376 = vunpack.c.l.b16 %v5307
        %v5377 = vunpack.c.l.b16 %v5309
        %v5378 = vunpack.c.l.b16 %v5310
        %v5379 = vunpack.c.l.b16 %v5312
        %v5380 = vunpack.c.l.b16 %v5313
        %v5381 = vunpack.c.l.b16 %v5315
        %v5382 = vunpack.c.l.b16 %v5316
        %v5383 = vunpack.c.l.b16 %v5318
        %v5384 = vunpack.c.l.b16 %v5319
        %v5385 = vpack.c.b16 %v5354, %v5353
        %v5386 = vpack.c.b16 %v5356, %v5355
        %v5387 = vpack.c.b16 %v5358, %v5357
        %v5388 = vpack.c.b16 %v5360, %v5359
        %v5389 = vpack.c.b16 %v5362, %v5361
        %v5390 = vpack.c.b16 %v5364, %v5363
        %v5391 = vpack.c.b16 %v5366, %v5365
        %v5392 = vpack.c.b16 %v5368, %v5367
        %v5393 = vpack.c.b16 %v5370, %v5369
        %v5394 = vpack.c.b16 %v5372, %v5371
        %v5395 = vpack.c.b16 %v5374, %v5373
        %v5396 = vpack.c.b16 %v5376, %v5375
        %v5397 = vpack.c.b16 %v5378, %v5377
        %v5398 = vpack.c.b16 %v5380, %v5379
        %v5399 = vpack.c.b16 %v5382, %v5381
        %v5400 = vpack.c.b16 %v5384, %v5383
        %v5433 = vunpack.c.l.b16 %v5275
        %v5434 = vunpack.c.l.b16 %v5278
        %v5435 = vunpack.c.l.b16 %v5281
        %v5436 = vunpack.c.l.b16 %v5284
        %v5437 = vunpack.c.l.b16 %v5287
        %v5438 = vunpack.c.l.b16 %v5290
        %v5439 = vunpack.c.l.b16 %v5293
        %v5440 = vunpack.c.l.b16 %v5296
        %v5441 = vunpack.c.l.b16 %v5299
        %v5442 = vunpack.c.l.b16 %v5302
        %v5443 = vunpack.c.l.b16 %v5305
        %v5444 = vunpack.c.l.b16 %v5308
        %v5445 = vunpack.c.l.b16 %v5311
        %v5446 = vunpack.c.l.b16 %v5314
        %v5447 = vunpack.c.l.b16 %v5317
        %v5448 = vunpack.c.l.b16 %v5320
        %v5449 = vpack.c.b16 %v5433, %v5433
        %v5450 = vpack.c.b16 %v5434, %v5434
        %v5451 = vpack.c.b16 %v5435, %v5435
        %v5452 = vpack.c.b16 %v5436, %v5436
        %v5453 = vpack.c.b16 %v5437, %v5437
        %v5454 = vpack.c.b16 %v5438, %v5438
        %v5455 = vpack.c.b16 %v5439, %v5439
        %v5456 = vpack.c.b16 %v5440, %v5440
        %v5457 = vpack.c.b16 %v5441, %v5441
        %v5458 = vpack.c.b16 %v5442, %v5442
        %v5459 = vpack.c.b16 %v5443, %v5443
        %v5460 = vpack.c.b16 %v5444, %v5444
        %v5461 = vpack.c.b16 %v5445, %v5445
        %v5462 = vpack.c.b16 %v5446, %v5446
        %v5463 = vpack.c.b16 %v5447, %v5447
        %v5464 = vpack.c.b16 %v5448, %v5448
        %v5466 = vshrl.u32 %v5385, 16
        %v5468 = vshll.u32 %v5385, 16
        %v5470 = vrot.slane %v5468, 1
        %v5471 = vor.u32 %v5466, %v5470
        %v5473 = vshll.u32 %v5449, 16
        %v5475 = vrot.slane %v5473, 1
        %v5476 = vsel %vm486, %v5471, %v5475
        %v5478 = vshrl.u32 %v5386, 16
        %v5480 = vshll.u32 %v5386, 16
        %v5482 = vrot.slane %v5480, 1
        %v5483 = vor.u32 %v5478, %v5482
        %v5485 = vshll.u32 %v5450, 16
        %v5487 = vrot.slane %v5485, 1
        %v5488 = vsel %vm486, %v5483, %v5487
        %v5490 = vshrl.u32 %v5387, 16
        %v5492 = vshll.u32 %v5387, 16
        %v5494 = vrot.slane %v5492, 1
        %v5495 = vor.u32 %v5490, %v5494
        %v5497 = vshll.u32 %v5451, 16
        %v5499 = vrot.slane %v5497, 1
        %v5500 = vsel %vm486, %v5495, %v5499
        %v5502 = vshrl.u32 %v5388, 16
        %v5504 = vshll.u32 %v5388, 16
        %v5506 = vrot.slane %v5504, 1
        %v5507 = vor.u32 %v5502, %v5506
        %v5509 = vshll.u32 %v5452, 16
        %v5511 = vrot.slane %v5509, 1
        %v5512 = vsel %vm486, %v5507, %v5511
        %v5514 = vshrl.u32 %v5389, 16
        %v5516 = vshll.u32 %v5389, 16
        %v5518 = vrot.slane %v5516, 1
        %v5519 = vor.u32 %v5514, %v5518
        %v5521 = vshll.u32 %v5453, 16
        %v5523 = vrot.slane %v5521, 1
        %v5524 = vsel %vm486, %v5519, %v5523
        %v5526 = vshrl.u32 %v5390, 16
        %v5528 = vshll.u32 %v5390, 16
        %v5530 = vrot.slane %v5528, 1
        %v5531 = vor.u32 %v5526, %v5530
        %v5533 = vshll.u32 %v5454, 16
        %v5535 = vrot.slane %v5533, 1
        %v5536 = vsel %vm486, %v5531, %v5535
        %v5538 = vshrl.u32 %v5391, 16
        %v5540 = vshll.u32 %v5391, 16
        %v5542 = vrot.slane %v5540, 1
        %v5543 = vor.u32 %v5538, %v5542
        %v5545 = vshll.u32 %v5455, 16
        %v5547 = vrot.slane %v5545, 1
        %v5548 = vsel %vm486, %v5543, %v5547
        %v5550 = vshrl.u32 %v5392, 16
        %v5552 = vshll.u32 %v5392, 16
        %v5554 = vrot.slane %v5552, 1
        %v5555 = vor.u32 %v5550, %v5554
        %v5557 = vshll.u32 %v5456, 16
        %v5559 = vrot.slane %v5557, 1
        %v5560 = vsel %vm486, %v5555, %v5559
        %v5562 = vshrl.u32 %v5393, 16
        %v5564 = vshll.u32 %v5393, 16
        %v5566 = vrot.slane %v5564, 1
        %v5567 = vor.u32 %v5562, %v5566
        %v5569 = vshll.u32 %v5457, 16
        %v5571 = vrot.slane %v5569, 1
        %v5572 = vsel %vm486, %v5567, %v5571
        %v5574 = vshrl.u32 %v5394, 16
        %v5576 = vshll.u32 %v5394, 16
        %v5578 = vrot.slane %v5576, 1
        %v5579 = vor.u32 %v5574, %v5578
        %v5581 = vshll.u32 %v5458, 16
        %v5583 = vrot.slane %v5581, 1
        %v5584 = vsel %vm486, %v5579, %v5583
        %v5586 = vshrl.u32 %v5395, 16
        %v5588 = vshll.u32 %v5395, 16
        %v5590 = vrot.slane %v5588, 1
        %v5591 = vor.u32 %v5586, %v5590
        %v5593 = vshll.u32 %v5459, 16
        %v5595 = vrot.slane %v5593, 1
        %v5596 = vsel %vm486, %v5591, %v5595
        %v5598 = vshrl.u32 %v5396, 16
        %v5600 = vshll.u32 %v5396, 16
        %v5602 = vrot.slane %v5600, 1
        %v5603 = vor.u32 %v5598, %v5602
        %v5605 = vshll.u32 %v5460, 16
        %v5607 = vrot.slane %v5605, 1
        %v5608 = vsel %vm486, %v5603, %v5607
        %v5610 = vshrl.u32 %v5397, 16
        %v5612 = vshll.u32 %v5397, 16
        %v5614 = vrot.slane %v5612, 1
        %v5615 = vor.u32 %v5610, %v5614
        %v5617 = vshll.u32 %v5461, 16
        %v5619 = vrot.slane %v5617, 1
        %v5620 = vsel %vm486, %v5615, %v5619
        %v5622 = vshrl.u32 %v5398, 16
        %v5624 = vshll.u32 %v5398, 16
        %v5626 = vrot.slane %v5624, 1
        %v5627 = vor.u32 %v5622, %v5626
        %v5629 = vshll.u32 %v5462, 16
        %v5631 = vrot.slane %v5629, 1
        %v5632 = vsel %vm486, %v5627, %v5631
        %v5634 = vshrl.u32 %v5399, 16
        %v5636 = vshll.u32 %v5399, 16
        %v5638 = vrot.slane %v5636, 1
        %v5639 = vor.u32 %v5634, %v5638
        %v5641 = vshll.u32 %v5463, 16
        %v5643 = vrot.slane %v5641, 1
        %v5644 = vsel %vm486, %v5639, %v5643
        %v5646 = vshrl.u32 %v5400, 16
        %v5648 = vshll.u32 %v5400, 16
        %v5650 = vrot.slane %v5648, 1
        %v5651 = vor.u32 %v5646, %v5650
        %v5653 = vshll.u32 %v5464, 16
        %v5655 = vrot.slane %v5653, 1
        %v5656 = vsel %vm486, %v5651, %v5655
        %v5673 = vrot.slane %v5385, 1
        %v5674 = vrot.slane %v5449, 1
        %v5675 = vsel %vm695, %v5673, %v5674
        %v5676 = vrot.slane %v5386, 1
        %v5677 = vrot.slane %v5450, 1
        %v5678 = vsel %vm695, %v5676, %v5677
        %v5679 = vrot.slane %v5387, 1
        %v5680 = vrot.slane %v5451, 1
        %v5681 = vsel %vm695, %v5679, %v5680
        %v5682 = vrot.slane %v5388, 1
        %v5683 = vrot.slane %v5452, 1
        %v5684 = vsel %vm695, %v5682, %v5683
        %v5685 = vrot.slane %v5389, 1
        %v5686 = vrot.slane %v5453, 1
        %v5687 = vsel %vm695, %v5685, %v5686
        %v5688 = vrot.slane %v5390, 1
        %v5689 = vrot.slane %v5454, 1
        %v5690 = vsel %vm695, %v5688, %v5689
        %v5691 = vrot.slane %v5391, 1
        %v5692 = vrot.slane %v5455, 1
        %v5693 = vsel %vm695, %v5691, %v5692
        %v5694 = vrot.slane %v5392, 1
        %v5695 = vrot.slane %v5456, 1
        %v5696 = vsel %vm695, %v5694, %v5695
        %v5697 = vrot.slane %v5393, 1
        %v5698 = vrot.slane %v5457, 1
        %v5699 = vsel %vm695, %v5697, %v5698
        %v5700 = vrot.slane %v5394, 1
        %v5701 = vrot.slane %v5458, 1
        %v5702 = vsel %vm695, %v5700, %v5701
        %v5703 = vrot.slane %v5395, 1
        %v5704 = vrot.slane %v5459, 1
        %v5705 = vsel %vm695, %v5703, %v5704
        %v5706 = vrot.slane %v5396, 1
        %v5707 = vrot.slane %v5460, 1
        %v5708 = vsel %vm695, %v5706, %v5707
        %v5709 = vrot.slane %v5397, 1
        %v5710 = vrot.slane %v5461, 1
        %v5711 = vsel %vm695, %v5709, %v5710
        %v5712 = vrot.slane %v5398, 1
        %v5713 = vrot.slane %v5462, 1
        %v5714 = vsel %vm695, %v5712, %v5713
        %v5715 = vrot.slane %v5399, 1
        %v5716 = vrot.slane %v5463, 1
        %v5717 = vsel %vm695, %v5715, %v5716
        %v5718 = vrot.slane %v5400, 1
        %v5719 = vrot.slane %v5464, 1
        %v5720 = vsel %vm695, %v5718, %v5719
        %s5737 = scalar_lea.vmem [#allocation3], 384
        %v5738 = vld [vmem:[%s5737] sm:$0xf]
        %v5739 = vld [vmem:[%s5737 + $0x4] sm:$0xf]
        %v5740 = vld [vmem:[%s5737 + $0x8] sm:$0xf]
        %v5741 = vld [vmem:[%s5737 + $0xc] sm:$0xf]
        %v5742 = vld [vmem:[%s5737 + $0x10] sm:$0xf]
        %v5743 = vld [vmem:[%s5737 + $0x14] sm:$0xf]
        %v5744 = vld [vmem:[%s5737 + $0x18] sm:$0xf]
        %v5745 = vld [vmem:[%s5737 + $0x1c] sm:$0xf]
        %v5746 = vld [vmem:[%s5737 + $0x20] sm:$0xf]
        %v5747 = vld [vmem:[%s5737 + $0x24] sm:$0xf]
        %v5748 = vld [vmem:[%s5737 + $0x28] sm:$0xf]
        %v5749 = vld [vmem:[%s5737 + $0x2c] sm:$0xf]
        %v5750 = vld [vmem:[%s5737 + $0x30] sm:$0xf]
        %v5751 = vld [vmem:[%s5737 + $0x34] sm:$0xf]
        %v5752 = vld [vmem:[%s5737 + $0x38] sm:$0xf]
        %v5753 = vld [vmem:[%s5737 + $0x3c] sm:$0xf]
        %v5754 = vld [vmem:[%s5737 + $0x40] sm:$0xf]
        %v5755 = vld [vmem:[%s5737 + $0x44] sm:$0xf]
        %v5756 = vld [vmem:[%s5737 + $0x48] sm:$0xf]
        %v5757 = vld [vmem:[%s5737 + $0x4c] sm:$0xf]
        %v5758 = vld [vmem:[%s5737 + $0x50] sm:$0xf]
        %v5759 = vld [vmem:[%s5737 + $0x54] sm:$0xf]
        %v5760 = vld [vmem:[%s5737 + $0x58] sm:$0xf]
        %v5761 = vld [vmem:[%s5737 + $0x5c] sm:$0xf]
        %v5762 = vld [vmem:[%s5737 + $0x60] sm:$0xf]
        %v5763 = vld [vmem:[%s5737 + $0x64] sm:$0xf]
        %v5764 = vld [vmem:[%s5737 + $0x68] sm:$0xf]
        %v5765 = vld [vmem:[%s5737 + $0x6c] sm:$0xf]
        %v5766 = vld [vmem:[%s5737 + $0x70] sm:$0xf]
        %v5767 = vld [vmem:[%s5737 + $0x74] sm:$0xf]
        %v5768 = vld [vmem:[%s5737 + $0x78] sm:$0xf]
        %v5769 = vld [vmem:[%s5737 + $0x7c] sm:$0xf]
        %v5770 = vld [vmem:[%s5737 + $0x80] sm:$0xf]
        %v5771 = vld [vmem:[%s5737 + $0x84] sm:$0xf]
        %v5772 = vld [vmem:[%s5737 + $0x88] sm:$0xf]
        %v5773 = vld [vmem:[%s5737 + $0x8c] sm:$0xf]
        %v5774 = vld [vmem:[%s5737 + $0x90] sm:$0xf]
        %v5775 = vld [vmem:[%s5737 + $0x94] sm:$0xf]
        %v5776 = vld [vmem:[%s5737 + $0x98] sm:$0xf]
        %v5777 = vld [vmem:[%s5737 + $0x9c] sm:$0xf]
        %v5778 = vld [vmem:[%s5737 + $0xa0] sm:$0xf]
        %v5779 = vld [vmem:[%s5737 + $0xa4] sm:$0xf]
        %v5780 = vld [vmem:[%s5737 + $0xa8] sm:$0xf]
        %v5781 = vld [vmem:[%s5737 + $0xac] sm:$0xf]
        %v5782 = vld [vmem:[%s5737 + $0xb0] sm:$0xf]
        %v5783 = vld [vmem:[%s5737 + $0xb4] sm:$0xf]
        %v5784 = vld [vmem:[%s5737 + $0xb8] sm:$0xf]
        %v5785 = vld [vmem:[%s5737 + $0xbc] sm:$0xf]
        %v5834 = vunpack.c.l.b16 %v5738
        %v5835 = vunpack.c.l.b16 %v5739
        %v5836 = vunpack.c.l.b16 %v5740
        %v5837 = vunpack.c.l.b16 %v5741
        %v5838 = vunpack.c.l.b16 %v5742
        %v5839 = vunpack.c.l.b16 %v5743
        %v5840 = vunpack.c.l.b16 %v5744
        %v5841 = vunpack.c.l.b16 %v5745
        %v5842 = vunpack.c.l.b16 %v5746
        %v5843 = vunpack.c.l.b16 %v5747
        %v5844 = vunpack.c.l.b16 %v5748
        %v5845 = vunpack.c.l.b16 %v5749
        %v5846 = vunpack.c.l.b16 %v5750
        %v5847 = vunpack.c.l.b16 %v5751
        %v5848 = vunpack.c.l.b16 %v5752
        %v5849 = vunpack.c.l.b16 %v5753
        %v5850 = vunpack.c.l.b16 %v5754
        %v5851 = vunpack.c.l.b16 %v5755
        %v5852 = vunpack.c.l.b16 %v5756
        %v5853 = vunpack.c.l.b16 %v5757
        %v5854 = vunpack.c.l.b16 %v5758
        %v5855 = vunpack.c.l.b16 %v5759
        %v5856 = vunpack.c.l.b16 %v5760
        %v5857 = vunpack.c.l.b16 %v5761
        %v5858 = vunpack.c.l.b16 %v5762
        %v5859 = vunpack.c.l.b16 %v5763
        %v5860 = vunpack.c.l.b16 %v5764
        %v5861 = vunpack.c.l.b16 %v5765
        %v5862 = vunpack.c.l.b16 %v5766
        %v5863 = vunpack.c.l.b16 %v5767
        %v5864 = vunpack.c.l.b16 %v5768
        %v5865 = vunpack.c.l.b16 %v5769
        %v5866 = vunpack.c.l.b16 %v5770
        %v5867 = vunpack.c.l.b16 %v5771
        %v5868 = vunpack.c.l.b16 %v5772
        %v5869 = vunpack.c.l.b16 %v5773
        %v5870 = vunpack.c.l.b16 %v5774
        %v5871 = vunpack.c.l.b16 %v5775
        %v5872 = vunpack.c.l.b16 %v5776
        %v5873 = vunpack.c.l.b16 %v5777
        %v5874 = vunpack.c.l.b16 %v5778
        %v5875 = vunpack.c.l.b16 %v5779
        %v5876 = vunpack.c.l.b16 %v5780
        %v5877 = vunpack.c.l.b16 %v5781
        %v5878 = vunpack.c.l.b16 %v5782
        %v5879 = vunpack.c.l.b16 %v5783
        %v5880 = vunpack.c.l.b16 %v5784
        %v5881 = vunpack.c.l.b16 %v5785
        %v5882 = vpack.c.b16 %v5835, %v5834
        %v5883 = vpack.c.b16 %v5837, %v5836
        %v5884 = vpack.c.b16 %v5839, %v5838
        %v5885 = vpack.c.b16 %v5841, %v5840
        %v5886 = vpack.c.b16 %v5843, %v5842
        %v5887 = vpack.c.b16 %v5845, %v5844
        %v5888 = vpack.c.b16 %v5847, %v5846
        %v5889 = vpack.c.b16 %v5849, %v5848
        %v5890 = vpack.c.b16 %v5851, %v5850
        %v5891 = vpack.c.b16 %v5853, %v5852
        %v5892 = vpack.c.b16 %v5855, %v5854
        %v5893 = vpack.c.b16 %v5857, %v5856
        %v5894 = vpack.c.b16 %v5859, %v5858
        %v5895 = vpack.c.b16 %v5861, %v5860
        %v5896 = vpack.c.b16 %v5863, %v5862
        %v5897 = vpack.c.b16 %v5865, %v5864
        %v5898 = vpack.c.b16 %v5867, %v5866
        %v5899 = vpack.c.b16 %v5869, %v5868
        %v5900 = vpack.c.b16 %v5871, %v5870
        %v5901 = vpack.c.b16 %v5873, %v5872
        %v5902 = vpack.c.b16 %v5875, %v5874
        %v5903 = vpack.c.b16 %v5877, %v5876
        %v5904 = vpack.c.b16 %v5879, %v5878
        %v5905 = vpack.c.b16 %v5881, %v5880
        %5930 = vmatpush.bf16.msra.mxu0 %v5889
        %5931 = vmatpush.bf16.msra.mxu0 %v5888
        %5932 = vmatpush.bf16.msra.mxu0 %v5887
        %5933 = vmatpush.bf16.msra.mxu0 %v5886
        %5934 = vmatpush.bf16.msra.mxu0 %v5885
        %5935 = vmatpush.bf16.msra.mxu0 %v5884
        %5936 = vmatpush.bf16.msra.mxu0 %v5883
        %5937 = vmatpush.bf16.msra.mxu0 %v5882
        %5938 = vmatmul.bf16.gmra.mxu0 %v5385
        %v5939 = vpop.f32.mrf.mxu0
        %v5940 = vadd.f32 0.0, %v5939
        %v5941 = vpop.f32.mrf.mxu0
        %v5942 = vadd.f32 0.0, %v5941
        %5943 = vmatmul.bf16.gmra.mxu0 %v5386
        %v5944 = vpop.f32.mrf.mxu0
        %v5945 = vadd.f32 0.0, %v5944
        %v5946 = vpop.f32.mrf.mxu0
        %v5947 = vadd.f32 0.0, %v5946
        %5948 = vmatmul.bf16.gmra.mxu0 %v5387
        %v5949 = vpop.f32.mrf.mxu0
        %v5950 = vadd.f32 0.0, %v5949
        %v5951 = vpop.f32.mrf.mxu0
        %v5952 = vadd.f32 0.0, %v5951
        %5953 = vmatmul.bf16.gmra.mxu0 %v5388
        %v5954 = vpop.f32.mrf.mxu0
        %v5955 = vadd.f32 0.0, %v5954
        %v5956 = vpop.f32.mrf.mxu0
        %v5957 = vadd.f32 0.0, %v5956
        %5958 = vmatmul.bf16.gmra.mxu0 %v5389
        %v5959 = vpop.f32.mrf.mxu0
        %v5960 = vadd.f32 0.0, %v5959
        %v5961 = vpop.f32.mrf.mxu0
        %v5962 = vadd.f32 0.0, %v5961
        %5963 = vmatmul.bf16.gmra.mxu0 %v5390
        %v5964 = vpop.f32.mrf.mxu0
        %v5965 = vadd.f32 0.0, %v5964
        %v5966 = vpop.f32.mrf.mxu0
        %v5967 = vadd.f32 0.0, %v5966
        %5968 = vmatmul.bf16.gmra.mxu0 %v5391
        %v5969 = vpop.f32.mrf.mxu0
        %v5970 = vadd.f32 0.0, %v5969
        %v5971 = vpop.f32.mrf.mxu0
        %v5972 = vadd.f32 0.0, %v5971
        %5973 = vmatmul.bf16.gmra.mxu0 %v5392
        %v5974 = vpop.f32.mrf.mxu0
        %v5975 = vadd.f32 0.0, %v5974
        %v5976 = vpop.f32.mrf.mxu0
        %v5977 = vadd.f32 0.0, %v5976
        %5978 = vmatmul.bf16.gmra.mxu0 %v5393
        %v5979 = vpop.f32.mrf.mxu0
        %v5980 = vadd.f32 0.0, %v5979
        %v5981 = vpop.f32.mrf.mxu0
        %v5982 = vadd.f32 0.0, %v5981
        %5983 = vmatmul.bf16.gmra.mxu0 %v5394
        %v5984 = vpop.f32.mrf.mxu0
        %v5985 = vadd.f32 0.0, %v5984
        %v5986 = vpop.f32.mrf.mxu0
        %v5987 = vadd.f32 0.0, %v5986
        %5988 = vmatmul.bf16.gmra.mxu0 %v5395
        %v5989 = vpop.f32.mrf.mxu0
        %v5990 = vadd.f32 0.0, %v5989
        %v5991 = vpop.f32.mrf.mxu0
        %v5992 = vadd.f32 0.0, %v5991
        %5993 = vmatmul.bf16.gmra.mxu0 %v5396
        %v5994 = vpop.f32.mrf.mxu0
        %v5995 = vadd.f32 0.0, %v5994
        %v5996 = vpop.f32.mrf.mxu0
        %v5997 = vadd.f32 0.0, %v5996
        %5998 = vmatmul.bf16.gmra.mxu0 %v5397
        %v5999 = vpop.f32.mrf.mxu0
        %v6000 = vadd.f32 0.0, %v5999
        %v6001 = vpop.f32.mrf.mxu0
        %v6002 = vadd.f32 0.0, %v6001
        %6003 = vmatmul.bf16.gmra.mxu0 %v5398
        %v6004 = vpop.f32.mrf.mxu0
        %v6005 = vadd.f32 0.0, %v6004
        %v6006 = vpop.f32.mrf.mxu0
        %v6007 = vadd.f32 0.0, %v6006
        %6008 = vmatmul.bf16.gmra.mxu0 %v5399
        %v6009 = vpop.f32.mrf.mxu0
        %v6010 = vadd.f32 0.0, %v6009
        %v6011 = vpop.f32.mrf.mxu0
        %v6012 = vadd.f32 0.0, %v6011
        %6013 = vmatmul.bf16.gmra.mxu0 %v5400
        %v6014 = vpop.f32.mrf.mxu0
        %v6015 = vadd.f32 0.0, %v6014
        %v6016 = vpop.f32.mrf.mxu0
        %v6017 = vadd.f32 0.0, %v6016
        %6018 = vdwg.mxu0
        %6019 = vmatpush.bf16.msra.mxu0 %v5897
        %6020 = vmatpush.bf16.msra.mxu0 %v5896
        %6021 = vmatpush.bf16.msra.mxu0 %v5895
        %6022 = vmatpush.bf16.msra.mxu0 %v5894
        %6023 = vmatpush.bf16.msra.mxu0 %v5893
        %6024 = vmatpush.bf16.msra.mxu0 %v5892
        %6025 = vmatpush.bf16.msra.mxu0 %v5891
        %6026 = vmatpush.bf16.msra.mxu0 %v5890
        %6027 = vmatmul.bf16.gmra.mxu0 %v5476
        %v6028 = vpop.f32.mrf.mxu0
        %v6029 = vadd.f32 %v5940, %v6028
        %v6030 = vpop.f32.mrf.mxu0
        %v6031 = vadd.f32 %v5942, %v6030
        %6032 = vmatmul.bf16.gmra.mxu0 %v5488
        %v6033 = vpop.f32.mrf.mxu0
        %v6034 = vadd.f32 %v5945, %v6033
        %v6035 = vpop.f32.mrf.mxu0
        %v6036 = vadd.f32 %v5947, %v6035
        %6037 = vmatmul.bf16.gmra.mxu0 %v5500
        %v6038 = vpop.f32.mrf.mxu0
        %v6039 = vadd.f32 %v5950, %v6038
        %v6040 = vpop.f32.mrf.mxu0
        %v6041 = vadd.f32 %v5952, %v6040
        %6042 = vmatmul.bf16.gmra.mxu0 %v5512
        %v6043 = vpop.f32.mrf.mxu0
        %v6044 = vadd.f32 %v5955, %v6043
        %v6045 = vpop.f32.mrf.mxu0
        %v6046 = vadd.f32 %v5957, %v6045
        %6047 = vmatmul.bf16.gmra.mxu0 %v5524
        %v6048 = vpop.f32.mrf.mxu0
        %v6049 = vadd.f32 %v5960, %v6048
        %v6050 = vpop.f32.mrf.mxu0
        %v6051 = vadd.f32 %v5962, %v6050
        %6052 = vmatmul.bf16.gmra.mxu0 %v5536
        %v6053 = vpop.f32.mrf.mxu0
        %v6054 = vadd.f32 %v5965, %v6053
        %v6055 = vpop.f32.mrf.mxu0
        %v6056 = vadd.f32 %v5967, %v6055
        %6057 = vmatmul.bf16.gmra.mxu0 %v5548
        %v6058 = vpop.f32.mrf.mxu0
        %v6059 = vadd.f32 %v5970, %v6058
        %v6060 = vpop.f32.mrf.mxu0
        %v6061 = vadd.f32 %v5972, %v6060
        %6062 = vmatmul.bf16.gmra.mxu0 %v5560
        %v6063 = vpop.f32.mrf.mxu0
        %v6064 = vadd.f32 %v5975, %v6063
        %v6065 = vpop.f32.mrf.mxu0
        %v6066 = vadd.f32 %v5977, %v6065
        %6067 = vmatmul.bf16.gmra.mxu0 %v5572
        %v6068 = vpop.f32.mrf.mxu0
        %v6069 = vadd.f32 %v5980, %v6068
        %v6070 = vpop.f32.mrf.mxu0
        %v6071 = vadd.f32 %v5982, %v6070
        %6072 = vmatmul.bf16.gmra.mxu0 %v5584
        %v6073 = vpop.f32.mrf.mxu0
        %v6074 = vadd.f32 %v5985, %v6073
        %v6075 = vpop.f32.mrf.mxu0
        %v6076 = vadd.f32 %v5987, %v6075
        %6077 = vmatmul.bf16.gmra.mxu0 %v5596
        %v6078 = vpop.f32.mrf.mxu0
        %v6079 = vadd.f32 %v5990, %v6078
        %v6080 = vpop.f32.mrf.mxu0
        %v6081 = vadd.f32 %v5992, %v6080
        %6082 = vmatmul.bf16.gmra.mxu0 %v5608
        %v6083 = vpop.f32.mrf.mxu0
        %v6084 = vadd.f32 %v5995, %v6083
        %v6085 = vpop.f32.mrf.mxu0
        %v6086 = vadd.f32 %v5997, %v6085
        %6087 = vmatmul.bf16.gmra.mxu0 %v5620
        %v6088 = vpop.f32.mrf.mxu0
        %v6089 = vadd.f32 %v6000, %v6088
        %v6090 = vpop.f32.mrf.mxu0
        %v6091 = vadd.f32 %v6002, %v6090
        %6092 = vmatmul.bf16.gmra.mxu0 %v5632
        %v6093 = vpop.f32.mrf.mxu0
        %v6094 = vadd.f32 %v6005, %v6093
        %v6095 = vpop.f32.mrf.mxu0
        %v6096 = vadd.f32 %v6007, %v6095
        %6097 = vmatmul.bf16.gmra.mxu0 %v5644
        %v6098 = vpop.f32.mrf.mxu0
        %v6099 = vadd.f32 %v6010, %v6098
        %v6100 = vpop.f32.mrf.mxu0
        %v6101 = vadd.f32 %v6012, %v6100
        %6102 = vmatmul.bf16.gmra.mxu0 %v5656
        %v6103 = vpop.f32.mrf.mxu0
        %v6104 = vadd.f32 %v6015, %v6103
        %v6105 = vpop.f32.mrf.mxu0
        %v6106 = vadd.f32 %v6017, %v6105
        %6107 = vdwg.mxu0
        %6108 = vmatpush.bf16.msra.mxu0 %v5905
        %6109 = vmatpush.bf16.msra.mxu0 %v5904
        %6110 = vmatpush.bf16.msra.mxu0 %v5903
        %6111 = vmatpush.bf16.msra.mxu0 %v5902
        %6112 = vmatpush.bf16.msra.mxu0 %v5901
        %6113 = vmatpush.bf16.msra.mxu0 %v5900
        %6114 = vmatpush.bf16.msra.mxu0 %v5899
        %6115 = vmatpush.bf16.msra.mxu0 %v5898
        %6116 = vmatmul.bf16.gmra.mxu0 %v5675
        %v6117 = vpop.f32.mrf.mxu0
        %v6118 = vadd.f32 %v6029, %v6117
        %v6119 = vpop.f32.mrf.mxu0
        %v6120 = vadd.f32 %v6031, %v6119
        %6121 = vmatmul.bf16.gmra.mxu0 %v5678
        %v6122 = vpop.f32.mrf.mxu0
        %v6123 = vadd.f32 %v6034, %v6122
        %v6124 = vpop.f32.mrf.mxu0
        %v6125 = vadd.f32 %v6036, %v6124
        %6126 = vmatmul.bf16.gmra.mxu0 %v5681
        %v6127 = vpop.f32.mrf.mxu0
        %v6128 = vadd.f32 %v6039, %v6127
        %v6129 = vpop.f32.mrf.mxu0
        %v6130 = vadd.f32 %v6041, %v6129
        %6131 = vmatmul.bf16.gmra.mxu0 %v5684
        %v6132 = vpop.f32.mrf.mxu0
        %v6133 = vadd.f32 %v6044, %v6132
        %v6134 = vpop.f32.mrf.mxu0
        %v6135 = vadd.f32 %v6046, %v6134
        %6136 = vmatmul.bf16.gmra.mxu0 %v5687
        %v6137 = vpop.f32.mrf.mxu0
        %v6138 = vadd.f32 %v6049, %v6137
        %v6139 = vpop.f32.mrf.mxu0
        %v6140 = vadd.f32 %v6051, %v6139
        %6141 = vmatmul.bf16.gmra.mxu0 %v5690
        %v6142 = vpop.f32.mrf.mxu0
        %v6143 = vadd.f32 %v6054, %v6142
        %v6144 = vpop.f32.mrf.mxu0
        %v6145 = vadd.f32 %v6056, %v6144
        %6146 = vmatmul.bf16.gmra.mxu0 %v5693
        %v6147 = vpop.f32.mrf.mxu0
        %v6148 = vadd.f32 %v6059, %v6147
        %v6149 = vpop.f32.mrf.mxu0
        %v6150 = vadd.f32 %v6061, %v6149
        %6151 = vmatmul.bf16.gmra.mxu0 %v5696
        %v6152 = vpop.f32.mrf.mxu0
        %v6153 = vadd.f32 %v6064, %v6152
        %v6154 = vpop.f32.mrf.mxu0
        %v6155 = vadd.f32 %v6066, %v6154
        %6156 = vmatmul.bf16.gmra.mxu0 %v5699
        %v6157 = vpop.f32.mrf.mxu0
        %v6158 = vadd.f32 %v6069, %v6157
        %v6159 = vpop.f32.mrf.mxu0
        %v6160 = vadd.f32 %v6071, %v6159
        %6161 = vmatmul.bf16.gmra.mxu0 %v5702
        %v6162 = vpop.f32.mrf.mxu0
        %v6163 = vadd.f32 %v6074, %v6162
        %v6164 = vpop.f32.mrf.mxu0
        %v6165 = vadd.f32 %v6076, %v6164
        %6166 = vmatmul.bf16.gmra.mxu0 %v5705
        %v6167 = vpop.f32.mrf.mxu0
        %v6168 = vadd.f32 %v6079, %v6167
        %v6169 = vpop.f32.mrf.mxu0
        %v6170 = vadd.f32 %v6081, %v6169
        %6171 = vmatmul.bf16.gmra.mxu0 %v5708
        %v6172 = vpop.f32.mrf.mxu0
        %v6173 = vadd.f32 %v6084, %v6172
        %v6174 = vpop.f32.mrf.mxu0
        %v6175 = vadd.f32 %v6086, %v6174
        %6176 = vmatmul.bf16.gmra.mxu0 %v5711
        %v6177 = vpop.f32.mrf.mxu0
        %v6178 = vadd.f32 %v6089, %v6177
        %v6179 = vpop.f32.mrf.mxu0
        %v6180 = vadd.f32 %v6091, %v6179
        %6181 = vmatmul.bf16.gmra.mxu0 %v5714
        %v6182 = vpop.f32.mrf.mxu0
        %v6183 = vadd.f32 %v6094, %v6182
        %v6184 = vpop.f32.mrf.mxu0
        %v6185 = vadd.f32 %v6096, %v6184
        %6186 = vmatmul.bf16.gmra.mxu0 %v5717
        %v6187 = vpop.f32.mrf.mxu0
        %v6188 = vadd.f32 %v6099, %v6187
        %v6189 = vpop.f32.mrf.mxu0
        %v6190 = vadd.f32 %v6101, %v6189
        %6191 = vmatmul.bf16.gmra.mxu0 %v5720
        %v6192 = vpop.f32.mrf.mxu0
        %v6193 = vadd.f32 %v6104, %v6192
        %v6194 = vpop.f32.mrf.mxu0
        %v6195 = vadd.f32 %v6106, %v6194
        %6196 = vdwg.mxu0
        %v6197 = vadd.f32 %v5145, %v6118
        %v6198 = vadd.f32 %v5147, %v6120
        %v6199 = vadd.f32 %v5150, %v6123
        %v6200 = vadd.f32 %v5152, %v6125
        %v6201 = vadd.f32 %v5155, %v6128
        %v6202 = vadd.f32 %v5157, %v6130
        %v6203 = vadd.f32 %v5160, %v6133
        %v6204 = vadd.f32 %v5162, %v6135
        %v6205 = vadd.f32 %v5165, %v6138
        %v6206 = vadd.f32 %v5167, %v6140
        %v6207 = vadd.f32 %v5170, %v6143
        %v6208 = vadd.f32 %v5172, %v6145
        %v6209 = vadd.f32 %v5175, %v6148
        %v6210 = vadd.f32 %v5177, %v6150
        %v6211 = vadd.f32 %v5180, %v6153
        %v6212 = vadd.f32 %v5182, %v6155
        %v6213 = vadd.f32 %v5185, %v6158
        %v6214 = vadd.f32 %v5187, %v6160
        %v6215 = vadd.f32 %v5190, %v6163
        %v6216 = vadd.f32 %v5192, %v6165
        %v6217 = vadd.f32 %v5195, %v6168
        %v6218 = vadd.f32 %v5197, %v6170
        %v6219 = vadd.f32 %v5200, %v6173
        %v6220 = vadd.f32 %v5202, %v6175
        %v6221 = vadd.f32 %v5205, %v6178
        %v6222 = vadd.f32 %v5207, %v6180
        %v6223 = vadd.f32 %v5210, %v6183
        %v6224 = vadd.f32 %v5212, %v6185
        %v6225 = vadd.f32 %v5215, %v6188
        %v6226 = vadd.f32 %v5217, %v6190
        %v6227 = vadd.f32 %v5220, %v6193
        %v6228 = vadd.f32 %v5222, %v6195
        %v6229 = vld [vmem:[%s5] sm:$0x1]
        %v6231 = vperm.slane %v6229, 0
        %v6233 = vmul.f32 %v6197, %v6231
        %v6234 = vmul.f32 %v6198, %v6231
        %v6235 = vmul.f32 %v6199, %v6231
        %v6236 = vmul.f32 %v6200, %v6231
        %v6237 = vmul.f32 %v6201, %v6231
        %v6238 = vmul.f32 %v6202, %v6231
        %v6239 = vmul.f32 %v6203, %v6231
        %v6240 = vmul.f32 %v6204, %v6231
        %v6241 = vmul.f32 %v6205, %v6231
        %v6242 = vmul.f32 %v6206, %v6231
        %v6243 = vmul.f32 %v6207, %v6231
        %v6244 = vmul.f32 %v6208, %v6231
        %v6245 = vmul.f32 %v6209, %v6231
        %v6246 = vmul.f32 %v6210, %v6231
        %v6247 = vmul.f32 %v6211, %v6231
        %v6248 = vmul.f32 %v6212, %v6231
        %v6249 = vmul.f32 %v6213, %v6231
        %v6250 = vmul.f32 %v6214, %v6231
        %v6251 = vmul.f32 %v6215, %v6231
        %v6252 = vmul.f32 %v6216, %v6231
        %v6253 = vmul.f32 %v6217, %v6231
        %v6254 = vmul.f32 %v6218, %v6231
        %v6255 = vmul.f32 %v6219, %v6231
        %v6256 = vmul.f32 %v6220, %v6231
        %v6257 = vmul.f32 %v6221, %v6231
        %v6258 = vmul.f32 %v6222, %v6231
        %v6259 = vmul.f32 %v6223, %v6231
        %v6260 = vmul.f32 %v6224, %v6231
        %v6261 = vmul.f32 %v6225, %v6231
        %v6262 = vmul.f32 %v6226, %v6231
        %v6263 = vmul.f32 %v6227, %v6231
        %v6264 = vmul.f32 %v6228, %v6231
        %v6265 = vld [vmem:[%s6] sm:$0x1]
        %v6267 = vperm.slane %v6265, 0
        %v6269 = vadd.f32 %v6233, %v6267
        %v6270 = vadd.f32 %v6234, %v6267
        %v6271 = vadd.f32 %v6235, %v6267
        %v6272 = vadd.f32 %v6236, %v6267
        %v6273 = vadd.f32 %v6237, %v6267
        %v6274 = vadd.f32 %v6238, %v6267
        %v6275 = vadd.f32 %v6239, %v6267
        %v6276 = vadd.f32 %v6240, %v6267
        %v6277 = vadd.f32 %v6241, %v6267
        %v6278 = vadd.f32 %v6242, %v6267
        %v6279 = vadd.f32 %v6243, %v6267
        %v6280 = vadd.f32 %v6244, %v6267
        %v6281 = vadd.f32 %v6245, %v6267
        %v6282 = vadd.f32 %v6246, %v6267
        %v6283 = vadd.f32 %v6247, %v6267
        %v6284 = vadd.f32 %v6248, %v6267
        %v6285 = vadd.f32 %v6249, %v6267
        %v6286 = vadd.f32 %v6250, %v6267
        %v6287 = vadd.f32 %v6251, %v6267
        %v6288 = vadd.f32 %v6252, %v6267
        %v6289 = vadd.f32 %v6253, %v6267
        %v6290 = vadd.f32 %v6254, %v6267
        %v6291 = vadd.f32 %v6255, %v6267
        %v6292 = vadd.f32 %v6256, %v6267
        %v6293 = vadd.f32 %v6257, %v6267
        %v6294 = vadd.f32 %v6258, %v6267
        %v6295 = vadd.f32 %v6259, %v6267
        %v6296 = vadd.f32 %v6260, %v6267
        %v6297 = vadd.f32 %v6261, %v6267
        %v6298 = vadd.f32 %v6262, %v6267
        %v6299 = vadd.f32 %v6263, %v6267
        %v6300 = vadd.f32 %v6264, %v6267
        %vm6301 = vsmask.f32 3328
        %vm6302 = vsmask.f32 7440
        %vm6303 = vmor %vm6301, %vm6302
        %v6305 = vshrl.u32 %v809, 16
        %v6307 = vrot.slane %v6305, 4
        %v6308 = vshll.u32 %v809, 16
        %v6310 = vrot.slane %v6308, 5
        %v6311 = vor.u32 %v6307, %v6310
        %v6312 = vrot.slane %v6311, 4
        %v6314 = vshll.u32 %v810, 16
        %v6316 = vrot.slane %v6314, 5
        %v6317 = vsel %vm6303, %v6312, %v6316
        %v6318 = vshrl.u32 %v810, 16
        %v6320 = vrot.slane %v6318, 4
        %v6321 = vor.u32 %v6320, %v6316
        %v6322 = vrot.slane %v6321, 4
        %v6324 = vshll.u32 %v811, 16
        %v6326 = vrot.slane %v6324, 5
        %v6327 = vsel %vm6303, %v6322, %v6326
        %v6329 = vshrl.u32 %v812, 16
        %v6331 = vrot.slane %v6329, 4
        %v6332 = vshll.u32 %v812, 16
        %v6334 = vrot.slane %v6332, 5
        %v6335 = vor.u32 %v6331, %v6334
        %v6336 = vrot.slane %v6335, 4
        %v6338 = vshll.u32 %v813, 16
        %v6340 = vrot.slane %v6338, 5
        %v6341 = vsel %vm6303, %v6336, %v6340
        %v6342 = vshrl.u32 %v813, 16
        %v6344 = vrot.slane %v6342, 4
        %v6345 = vor.u32 %v6344, %v6340
        %v6346 = vrot.slane %v6345, 4
        %v6348 = vshll.u32 %v814, 16
        %v6350 = vrot.slane %v6348, 5
        %v6351 = vsel %vm6303, %v6346, %v6350
        %v6353 = vshrl.u32 %v815, 16
        %v6355 = vrot.slane %v6353, 4
        %v6356 = vshll.u32 %v815, 16
        %v6358 = vrot.slane %v6356, 5
        %v6359 = vor.u32 %v6355, %v6358
        %v6360 = vrot.slane %v6359, 4
        %v6362 = vshll.u32 %v816, 16
        %v6364 = vrot.slane %v6362, 5
        %v6365 = vsel %vm6303, %v6360, %v6364
        %v6366 = vshrl.u32 %v816, 16
        %v6368 = vrot.slane %v6366, 4
        %v6369 = vor.u32 %v6368, %v6364
        %v6370 = vrot.slane %v6369, 4
        %v6372 = vshll.u32 %v817, 16
        %v6374 = vrot.slane %v6372, 5
        %v6375 = vsel %vm6303, %v6370, %v6374
        %v6377 = vshrl.u32 %v818, 16
        %v6379 = vrot.slane %v6377, 4
        %v6380 = vshll.u32 %v818, 16
        %v6382 = vrot.slane %v6380, 5
        %v6383 = vor.u32 %v6379, %v6382
        %v6384 = vrot.slane %v6383, 4
        %v6386 = vshll.u32 %v819, 16
        %v6388 = vrot.slane %v6386, 5
        %v6389 = vsel %vm6303, %v6384, %v6388
        %v6390 = vshrl.u32 %v819, 16
        %v6392 = vrot.slane %v6390, 4
        %v6393 = vor.u32 %v6392, %v6388
        %v6394 = vrot.slane %v6393, 4
        %v6396 = vshll.u32 %v820, 16
        %v6398 = vrot.slane %v6396, 5
        %v6399 = vsel %vm6303, %v6394, %v6398
        %v6401 = vshrl.u32 %v821, 16
        %v6403 = vrot.slane %v6401, 4
        %v6404 = vshll.u32 %v821, 16
        %v6406 = vrot.slane %v6404, 5
        %v6407 = vor.u32 %v6403, %v6406
        %v6408 = vrot.slane %v6407, 4
        %v6410 = vshll.u32 %v822, 16
        %v6412 = vrot.slane %v6410, 5
        %v6413 = vsel %vm6303, %v6408, %v6412
        %v6414 = vshrl.u32 %v822, 16
        %v6416 = vrot.slane %v6414, 4
        %v6417 = vor.u32 %v6416, %v6412
        %v6418 = vrot.slane %v6417, 4
        %v6420 = vshll.u32 %v823, 16
        %v6422 = vrot.slane %v6420, 5
        %v6423 = vsel %vm6303, %v6418, %v6422
        %v6425 = vshrl.u32 %v824, 16
        %v6427 = vrot.slane %v6425, 4
        %v6428 = vshll.u32 %v824, 16
        %v6430 = vrot.slane %v6428, 5
        %v6431 = vor.u32 %v6427, %v6430
        %v6432 = vrot.slane %v6431, 4
        %v6434 = vshll.u32 %v825, 16
        %v6436 = vrot.slane %v6434, 5
        %v6437 = vsel %vm6303, %v6432, %v6436
        %v6438 = vshrl.u32 %v825, 16
        %v6440 = vrot.slane %v6438, 4
        %v6441 = vor.u32 %v6440, %v6436
        %v6442 = vrot.slane %v6441, 4
        %v6444 = vshll.u32 %v826, 16
        %v6446 = vrot.slane %v6444, 5
        %v6447 = vsel %vm6303, %v6442, %v6446
        %v6449 = vshrl.u32 %v827, 16
        %v6451 = vrot.slane %v6449, 4
        %v6452 = vshll.u32 %v827, 16
        %v6454 = vrot.slane %v6452, 5
        %v6455 = vor.u32 %v6451, %v6454
        %v6456 = vrot.slane %v6455, 4
        %v6458 = vshll.u32 %v828, 16
        %v6460 = vrot.slane %v6458, 5
        %v6461 = vsel %vm6303, %v6456, %v6460
        %v6462 = vshrl.u32 %v828, 16
        %v6464 = vrot.slane %v6462, 4
        %v6465 = vor.u32 %v6464, %v6460
        %v6466 = vrot.slane %v6465, 4
        %v6468 = vshll.u32 %v829, 16
        %v6470 = vrot.slane %v6468, 5
        %v6471 = vsel %vm6303, %v6466, %v6470
        %v6473 = vshrl.u32 %v830, 16
        %v6475 = vrot.slane %v6473, 4
        %v6476 = vshll.u32 %v830, 16
        %v6478 = vrot.slane %v6476, 5
        %v6479 = vor.u32 %v6475, %v6478
        %v6480 = vrot.slane %v6479, 4
        %v6482 = vshll.u32 %v831, 16
        %v6484 = vrot.slane %v6482, 5
        %v6485 = vsel %vm6303, %v6480, %v6484
        %v6486 = vshrl.u32 %v831, 16
        %v6488 = vrot.slane %v6486, 4
        %v6489 = vor.u32 %v6488, %v6484
        %v6490 = vrot.slane %v6489, 4
        %v6492 = vshll.u32 %v832, 16
        %v6494 = vrot.slane %v6492, 5
        %v6495 = vsel %vm6303, %v6490, %v6494
        %v6497 = vshrl.u32 %v833, 16
        %v6499 = vrot.slane %v6497, 4
        %v6500 = vshll.u32 %v833, 16
        %v6502 = vrot.slane %v6500, 5
        %v6503 = vor.u32 %v6499, %v6502
        %v6504 = vrot.slane %v6503, 4
        %v6506 = vshll.u32 %v834, 16
        %v6508 = vrot.slane %v6506, 5
        %v6509 = vsel %vm6303, %v6504, %v6508
        %v6510 = vshrl.u32 %v834, 16
        %v6512 = vrot.slane %v6510, 4
        %v6513 = vor.u32 %v6512, %v6508
        %v6514 = vrot.slane %v6513, 4
        %v6516 = vshll.u32 %v835, 16
        %v6518 = vrot.slane %v6516, 5
        %v6519 = vsel %vm6303, %v6514, %v6518
        %v6521 = vshrl.u32 %v836, 16
        %v6523 = vrot.slane %v6521, 4
        %v6524 = vshll.u32 %v836, 16
        %v6526 = vrot.slane %v6524, 5
        %v6527 = vor.u32 %v6523, %v6526
        %v6528 = vrot.slane %v6527, 4
        %v6530 = vshll.u32 %v837, 16
        %v6532 = vrot.slane %v6530, 5
        %v6533 = vsel %vm6303, %v6528, %v6532
        %v6534 = vshrl.u32 %v837, 16
        %v6536 = vrot.slane %v6534, 4
        %v6537 = vor.u32 %v6536, %v6532
        %v6538 = vrot.slane %v6537, 4
        %v6540 = vshll.u32 %v838, 16
        %v6542 = vrot.slane %v6540, 5
        %v6543 = vsel %vm6303, %v6538, %v6542
        %v6545 = vshrl.u32 %v839, 16
        %v6547 = vrot.slane %v6545, 4
        %v6548 = vshll.u32 %v839, 16
        %v6550 = vrot.slane %v6548, 5
        %v6551 = vor.u32 %v6547, %v6550
        %v6552 = vrot.slane %v6551, 4
        %v6554 = vshll.u32 %v840, 16
        %v6556 = vrot.slane %v6554, 5
        %v6557 = vsel %vm6303, %v6552, %v6556
        %v6558 = vshrl.u32 %v840, 16
        %v6560 = vrot.slane %v6558, 4
        %v6561 = vor.u32 %v6560, %v6556
        %v6562 = vrot.slane %v6561, 4
        %v6564 = vshll.u32 %v841, 16
        %v6566 = vrot.slane %v6564, 5
        %v6567 = vsel %vm6303, %v6562, %v6566
        %v6569 = vshrl.u32 %v842, 16
        %v6571 = vrot.slane %v6569, 4
        %v6572 = vshll.u32 %v842, 16
        %v6574 = vrot.slane %v6572, 5
        %v6575 = vor.u32 %v6571, %v6574
        %v6576 = vrot.slane %v6575, 4
        %v6578 = vshll.u32 %v843, 16
        %v6580 = vrot.slane %v6578, 5
        %v6581 = vsel %vm6303, %v6576, %v6580
        %v6582 = vshrl.u32 %v843, 16
        %v6584 = vrot.slane %v6582, 4
        %v6585 = vor.u32 %v6584, %v6580
        %v6586 = vrot.slane %v6585, 4
        %v6588 = vshll.u32 %v844, 16
        %v6590 = vrot.slane %v6588, 5
        %v6591 = vsel %vm6303, %v6586, %v6590
        %v6593 = vshrl.u32 %v845, 16
        %v6595 = vrot.slane %v6593, 4
        %v6596 = vshll.u32 %v845, 16
        %v6598 = vrot.slane %v6596, 5
        %v6599 = vor.u32 %v6595, %v6598
        %v6600 = vrot.slane %v6599, 4
        %v6602 = vshll.u32 %v846, 16
        %v6604 = vrot.slane %v6602, 5
        %v6605 = vsel %vm6303, %v6600, %v6604
        %v6606 = vshrl.u32 %v846, 16
        %v6608 = vrot.slane %v6606, 4
        %v6609 = vor.u32 %v6608, %v6604
        %v6610 = vrot.slane %v6609, 4
        %v6612 = vshll.u32 %v847, 16
        %v6614 = vrot.slane %v6612, 5
        %v6615 = vsel %vm6303, %v6610, %v6614
        %v6617 = vshrl.u32 %v848, 16
        %v6619 = vrot.slane %v6617, 4
        %v6620 = vshll.u32 %v848, 16
        %v6622 = vrot.slane %v6620, 5
        %v6623 = vor.u32 %v6619, %v6622
        %v6624 = vrot.slane %v6623, 4
        %v6626 = vshll.u32 %v849, 16
        %v6628 = vrot.slane %v6626, 5
        %v6629 = vsel %vm6303, %v6624, %v6628
        %v6630 = vshrl.u32 %v849, 16
        %v6632 = vrot.slane %v6630, 4
        %v6633 = vor.u32 %v6632, %v6628
        %v6634 = vrot.slane %v6633, 4
        %v6636 = vshll.u32 %v850, 16
        %v6638 = vrot.slane %v6636, 5
        %v6639 = vsel %vm6303, %v6634, %v6638
        %v6641 = vshrl.u32 %v851, 16
        %v6643 = vrot.slane %v6641, 4
        %v6644 = vshll.u32 %v851, 16
        %v6646 = vrot.slane %v6644, 5
        %v6647 = vor.u32 %v6643, %v6646
        %v6648 = vrot.slane %v6647, 4
        %v6650 = vshll.u32 %v852, 16
        %v6652 = vrot.slane %v6650, 5
        %v6653 = vsel %vm6303, %v6648, %v6652
        %v6654 = vshrl.u32 %v852, 16
        %v6656 = vrot.slane %v6654, 4
        %v6657 = vor.u32 %v6656, %v6652
        %v6658 = vrot.slane %v6657, 4
        %v6660 = vshll.u32 %v853, 16
        %v6662 = vrot.slane %v6660, 5
        %v6663 = vsel %vm6303, %v6658, %v6662
        %v6665 = vshrl.u32 %v854, 16
        %v6667 = vrot.slane %v6665, 4
        %v6668 = vshll.u32 %v854, 16
        %v6670 = vrot.slane %v6668, 5
        %v6671 = vor.u32 %v6667, %v6670
        %v6672 = vrot.slane %v6671, 4
        %v6674 = vshll.u32 %v855, 16
        %v6676 = vrot.slane %v6674, 5
        %v6677 = vsel %vm6303, %v6672, %v6676
        %v6678 = vshrl.u32 %v855, 16
        %v6680 = vrot.slane %v6678, 4
        %v6681 = vor.u32 %v6680, %v6676
        %v6682 = vrot.slane %v6681, 4
        %v6684 = vshll.u32 %v856, 16
        %v6686 = vrot.slane %v6684, 5
        %v6687 = vsel %vm6303, %v6682, %v6686
        %v6720 = vunpack.c.l.bf16 %v6317
        %v6721 = vunpack.c.l.bf16 %v6327
        %v6722 = vunpack.c.l.bf16 %v6341
        %v6723 = vunpack.c.l.bf16 %v6351
        %v6724 = vunpack.c.l.bf16 %v6365
        %v6725 = vunpack.c.l.bf16 %v6375
        %v6726 = vunpack.c.l.bf16 %v6389
        %v6727 = vunpack.c.l.bf16 %v6399
        %v6728 = vunpack.c.l.bf16 %v6413
        %v6729 = vunpack.c.l.bf16 %v6423
        %v6730 = vunpack.c.l.bf16 %v6437
        %v6731 = vunpack.c.l.bf16 %v6447
        %v6732 = vunpack.c.l.bf16 %v6461
        %v6733 = vunpack.c.l.bf16 %v6471
        %v6734 = vunpack.c.l.bf16 %v6485
        %v6735 = vunpack.c.l.bf16 %v6495
        %v6736 = vunpack.c.l.bf16 %v6509
        %v6737 = vunpack.c.l.bf16 %v6519
        %v6738 = vunpack.c.l.bf16 %v6533
        %v6739 = vunpack.c.l.bf16 %v6543
        %v6740 = vunpack.c.l.bf16 %v6557
        %v6741 = vunpack.c.l.bf16 %v6567
        %v6742 = vunpack.c.l.bf16 %v6581
        %v6743 = vunpack.c.l.bf16 %v6591
        %v6744 = vunpack.c.l.bf16 %v6605
        %v6745 = vunpack.c.l.bf16 %v6615
        %v6746 = vunpack.c.l.bf16 %v6629
        %v6747 = vunpack.c.l.bf16 %v6639
        %v6748 = vunpack.c.l.bf16 %v6653
        %v6749 = vunpack.c.l.bf16 %v6663
        %v6750 = vunpack.c.l.bf16 %v6677
        %v6751 = vunpack.c.l.bf16 %v6687
        %v6752 = vadd.f32 %v6269, %v6720
        %v6753 = vadd.f32 %v6270, %v6721
        %v6754 = vadd.f32 %v6271, %v6722
        %v6755 = vadd.f32 %v6272, %v6723
        %v6756 = vadd.f32 %v6273, %v6724
        %v6757 = vadd.f32 %v6274, %v6725
        %v6758 = vadd.f32 %v6275, %v6726
        %v6759 = vadd.f32 %v6276, %v6727
        %v6760 = vadd.f32 %v6277, %v6728
        %v6761 = vadd.f32 %v6278, %v6729
        %v6762 = vadd.f32 %v6279, %v6730
        %v6763 = vadd.f32 %v6280, %v6731
        %v6764 = vadd.f32 %v6281, %v6732
        %v6765 = vadd.f32 %v6282, %v6733
        %v6766 = vadd.f32 %v6283, %v6734
        %v6767 = vadd.f32 %v6284, %v6735
        %v6768 = vadd.f32 %v6285, %v6736
        %v6769 = vadd.f32 %v6286, %v6737
        %v6770 = vadd.f32 %v6287, %v6738
        %v6771 = vadd.f32 %v6288, %v6739
        %v6772 = vadd.f32 %v6289, %v6740
        %v6773 = vadd.f32 %v6290, %v6741
        %v6774 = vadd.f32 %v6291, %v6742
        %v6775 = vadd.f32 %v6292, %v6743
        %v6776 = vadd.f32 %v6293, %v6744
        %v6777 = vadd.f32 %v6294, %v6745
        %v6778 = vadd.f32 %v6295, %v6746
        %v6779 = vadd.f32 %v6296, %v6747
        %v6780 = vadd.f32 %v6297, %v6748
        %v6781 = vadd.f32 %v6298, %v6749
        %v6782 = vadd.f32 %v6299, %v6750
        %v6783 = vadd.f32 %v6300, %v6751
        %v6784 = vmax.f32 %v6752, 0.0
        %v6785 = vmax.f32 %v6753, 0.0
        %v6786 = vmax.f32 %v6754, 0.0
        %v6787 = vmax.f32 %v6755, 0.0
        %v6788 = vmax.f32 %v6756, 0.0
        %v6789 = vmax.f32 %v6757, 0.0
        %v6790 = vmax.f32 %v6758, 0.0
        %v6791 = vmax.f32 %v6759, 0.0
        %v6792 = vmax.f32 %v6760, 0.0
        %v6793 = vmax.f32 %v6761, 0.0
        %v6794 = vmax.f32 %v6762, 0.0
        %v6795 = vmax.f32 %v6763, 0.0
        %v6796 = vmax.f32 %v6764, 0.0
        %v6797 = vmax.f32 %v6765, 0.0
        %v6798 = vmax.f32 %v6766, 0.0
        %v6799 = vmax.f32 %v6767, 0.0
        %v6800 = vmax.f32 %v6768, 0.0
        %v6801 = vmax.f32 %v6769, 0.0
        %v6802 = vmax.f32 %v6770, 0.0
        %v6803 = vmax.f32 %v6771, 0.0
        %v6804 = vmax.f32 %v6772, 0.0
        %v6805 = vmax.f32 %v6773, 0.0
        %v6806 = vmax.f32 %v6774, 0.0
        %v6807 = vmax.f32 %v6775, 0.0
        %v6808 = vmax.f32 %v6776, 0.0
        %v6809 = vmax.f32 %v6777, 0.0
        %v6810 = vmax.f32 %v6778, 0.0
        %v6811 = vmax.f32 %v6779, 0.0
        %v6812 = vmax.f32 %v6780, 0.0
        %v6813 = vmax.f32 %v6781, 0.0
        %v6814 = vmax.f32 %v6782, 0.0
        %v6815 = vmax.f32 %v6783, 0.0
        %6816 = vst [vmem:[%s288] sm:$0xff] %v6784
        %6817 = vst [vmem:[%s288 + $0x8] sm:$0xff] %v6785
        %6818 = vst [vmem:[%s288 + $0x10] sm:$0xff] %v6786
        %6819 = vst [vmem:[%s288 + $0x18] sm:$0xff] %v6787
        %6820 = vst [vmem:[%s288 + $0x20] sm:$0xff] %v6788
        %6821 = vst [vmem:[%s288 + $0x28] sm:$0xff] %v6789
        %6822 = vst [vmem:[%s288 + $0x30] sm:$0xff] %v6790
        %6823 = vst [vmem:[%s288 + $0x38] sm:$0xff] %v6791
        %6824 = vst [vmem:[%s288 + $0x40] sm:$0xff] %v6792
        %6825 = vst [vmem:[%s288 + $0x48] sm:$0xff] %v6793
        %6826 = vst [vmem:[%s288 + $0x50] sm:$0xff] %v6794
        %6827 = vst [vmem:[%s288 + $0x58] sm:$0xff] %v6795
        %6828 = vst [vmem:[%s288 + $0x60] sm:$0xff] %v6796
        %6829 = vst [vmem:[%s288 + $0x68] sm:$0xff] %v6797
        %6830 = vst [vmem:[%s288 + $0x70] sm:$0xff] %v6798
        %6831 = vst [vmem:[%s288 + $0x78] sm:$0xff] %v6799
        %6832 = vst [vmem:[%s288 + $0x80] sm:$0xff] %v6800
        %6833 = vst [vmem:[%s288 + $0x88] sm:$0xff] %v6801
        %6834 = vst [vmem:[%s288 + $0x90] sm:$0xff] %v6802
        %6835 = vst [vmem:[%s288 + $0x98] sm:$0xff] %v6803
        %6836 = vst [vmem:[%s288 + $0xa0] sm:$0xff] %v6804
        %6837 = vst [vmem:[%s288 + $0xa8] sm:$0xff] %v6805
        %6838 = vst [vmem:[%s288 + $0xb0] sm:$0xff] %v6806
        %6839 = vst [vmem:[%s288 + $0xb8] sm:$0xff] %v6807
        %6840 = vst [vmem:[%s288 + $0xc0] sm:$0xff] %v6808
        %6841 = vst [vmem:[%s288 + $0xc8] sm:$0xff] %v6809
        %6842 = vst [vmem:[%s288 + $0xd0] sm:$0xff] %v6810
        %6843 = vst [vmem:[%s288 + $0xd8] sm:$0xff] %v6811
        %6844 = vst [vmem:[%s288 + $0xe0] sm:$0xff] %v6812
        %6845 = vst [vmem:[%s288 + $0xe8] sm:$0xff] %v6813
        %6846 = vst [vmem:[%s288 + $0xf0] sm:$0xff] %v6814
        %6847 = vst [vmem:[%s288 + $0xf8] sm:$0xff] %v6815
        %s6848 = sand.u32 %s182, 1
        %s6849 = scalar_lea.sflag [#allocation5], %s6848
        %s6850 = sand.u32 %s182, 1
        %s6851 = smul.addr %s6850, 256
        %s6852 = scalar_lea.vmem [#allocation6], %s6851
        // Predicated region
        $region53: #{tpu_custom_call.1} parent=47 // pred_check
          %p6853 = pneg %p192
        $region54: #{tpu_custom_call.1} parent=47 // pred_check_branch
          %6855 = sbr.rel (%p6853) target = $region56
        $region55: #{tpu_custom_call.1} parent=47 // pred_region
          %6857 = vsyncadd %s6849, 0
          %s6858 = smul.addr %s22, 32
          %s6859 = smul.addr %s6858, 8
          %s6860 = scalar_lea.hbm %s7, %s6859
          %s6861 = sshll.u32 %s6852, 4
          %s6862 = int_to_ptr.vmem [resolvable:$true] %s6861
          %s6863 = sshll.u32 %s6860, 4
          %s6864 = int_to_ptr.hbm [resolvable:$true] %s6863
          %6869 = dma.vmem_to_hbm [thread:$0]  %s6862, 4096, %s6864, %s6849, 128, 128, 8
        $region56: #{tpu_custom_call.1} parent=47 // pred_fallthru
          _
      $region48: #{tpu_custom_call.1} parent=5 // pred_fallthru
        _
      %p6870 = scmp.le.s32.totalorder 2, %s17
      // Predicated region
      $region57: #{tpu_custom_call.1} parent=5 // pred_check
        %p6871 = pneg %p6870
      $region58: #{tpu_custom_call.1} parent=5 // pred_check_branch
        %6873 = sbr.rel (%p6871) target = $region60
      $region59: #{tpu_custom_call.1} parent=5 // pred_region
        %s6874 = ssub.s32 %s17, 2
        // Predicated region
        $region61: #{tpu_custom_call.1} parent=59 // pred_check
          %p6875 = pneg %p198
        $region62: #{tpu_custom_call.1} parent=59 // pred_check_branch
          %6877 = sbr.rel (%p6875) target = $region64
        $region63: #{tpu_custom_call.1} parent=59 // pred_region
          %s6878 = sand.u32 %s183, 1
          %s6879 = scalar_lea.sflag [#allocation5], %s6878
          %s6880 = sand.u32 %s183, 1
          %s6881 = smul.addr %s6880, 256
          %s6882 = scalar_lea.vmem [#allocation6], %s6881
          %6884 = dma.done %s6879, 4096
        $region64: #{tpu_custom_call.1} parent=59 // pred_fallthru
          _
      $region60: #{tpu_custom_call.1} parent=5 // pred_fallthru
        _
    $region6: #{tpu_custom_call.1} parent=1 // loop_footer
      %s21 = sadd.s32 1, %s17
    $region7: #{tpu_custom_call.1} parent=1 // loop_footer_branch
      %16 = sbr.rel target = $region3
    $region8: #{tpu_custom_call.1} parent=1 // loop_exit
      _
    %6885 = vsyncpa [#allocation4], 1
    %s6886 = scalar_lea.sflag [#allocation4], 1
    %6887 = vsyncpa %s6886, 1
    %6888 = vsyncpa [#allocation5], 1
    %s6889 = scalar_lea.sflag [#allocation5], 1
    %6890 = vsyncpa %s6889, 1

</llo_original>
